<compile_context>
chip_gen: v5e
topology: v5e:2x2
jax: 0.10.0
libtpu: 0.0.40
codegen_flags: <defaults>
</compile_context>

<pallas_src>
import functools

import jax
import jax.numpy as jnp
from jax.experimental import pallas as pl
from jax.experimental.pallas import tpu as pltpu

EPS = 1e-3  # nn.BatchNorm2d(c2, eps=0.001)


def _round_up(x, m):
    return (x + m - 1) // m * m


# ------------------------------- fused kernel --------------------------------

def _bottleneck_kernel(xa_ref, xb_ref, w1_ref, b1_ref, w2_ref, b2_ref,
                       o_ref, h1_ref, *, H, W, bh, wt, add):
    """One (batch, row-tile) step of Bottleneck.

    xa_ref: (bh, wp, c1p)  rows [i*bh, i*bh+bh)   of spatially/channel padded x
    xb_ref: (2,  wp, c1p)  rows [i*bh+bh, i*bh+bh+2)  (bottom halo)
    h1_ref: (bh+2, wp, cmid) VMEM scratch holding the SiLU'd cv1 slab (bf16)
    o_ref : (bh*wt, c2p)   flattened output row tile
    """
    i = pl.program_id(1)
    wp = xa_ref.shape[1]
    c1p = xa_ref.shape[2]
    cmid = h1_ref.shape[2]

    # ---- cv1: 1x1 conv + folded BN bias + SiLU, applied to the slab ----------
    def cv1(xpiece, row_start):
        n = xpiece.shape[0]
        h = jnp.dot(xpiece.reshape(n * wp, c1p), w1_ref[...],
                    preferred_element_type=jnp.float32)
        h = h + b1_ref[...]
        h = h * jax.nn.sigmoid(h)                       # SiLU
        h = h.reshape(n, wp, cmid)
        # zero the spatial-padding ring so the 3x3 conv sees true zero padding
        rows = jax.lax.broadcasted_iota(jnp.int32, h.shape, 0) + row_start
        cols = jax.lax.broadcasted_iota(jnp.int32, h.shape, 1)
        keep = (rows >= 1) & (rows <= H) & (cols >= 1) & (cols <= W)
        return jnp.where(keep, h, 0.0).astype(h1_ref.dtype)

    h1_ref[0:bh, :, :] = cv1(xa_ref[...], i * bh)
    h1_ref[bh:bh + 2, :, :] = cv1(xb_ref[...], (i + 1) * bh)

    # ---- cv2: 3x3 conv (pad=1) as 9 shifted lane-dense matmuls, f32 acc ------
    acc = None
    for t in range(9):
        ky, kx = divmod(t, 3)
        lhs = h1_ref[ky:ky + bh, kx:kx + wt, :].reshape(bh * wt, cmid)
        mm = jnp.dot(lhs, w2_ref[t], preferred_element_type=jnp.float32)
        acc = mm if acc is None else acc + mm

    # ---- single fused epilogue: BN bias + SiLU (+ residual), then cast -------
    acc = acc + b2_ref[...]
    y = acc * jax.nn.sigmoid(acc)
    if add:                                             # shortcut (c1 == c2)
        res = jnp.concatenate(
            [xa_ref[1:bh, 1:wt + 1, :], xb_ref[0:1, 1:wt + 1, :]], axis=0)
        y = y + res.reshape(bh * wt, c1p).astype(jnp.float32)
    o_ref[...] = y.astype(o_ref.dtype)


# --------------------------------- wrapper -----------------------------------

def fold_bn(w_oihw, gamma, beta, mean, var):
    """Fold eval-mode BatchNorm into conv weight (OIHW) + bias."""
    scale = gamma / jnp.sqrt(var + EPS)
    return w_oihw * scale[:, None, None, None], beta - mean * scale


def prepare_params(raw):
    """Fold BN, pad channels to 128-lane multiples, cast weights to bf16."""
    w1, b1 = fold_bn(raw["w1"], raw["g1"], raw["be1"], raw["m1"], raw["v1"])
    w2, b2 = fold_bn(raw["w2"], raw["g2"], raw["be2"], raw["m2"], raw["v2"])
    c_, c1 = int(w1.shape[0]), int(w1.shape[1])
    c2 = int(w2.shape[0])
    c1p, cmid, c2p = _round_up(c1, 128), _round_up(c_, 128), _round_up(c2, 128)

    w1_k = jnp.zeros((c1p, cmid), jnp.float32).at[:c1, :c_].set(
        jnp.transpose(w1[:, :, 0, 0], (1, 0)))
    b1_k = jnp.zeros((1, cmid), jnp.float32).at[0, :c_].set(b1)
    w2_t = jnp.transpose(w2, (2, 3, 1, 0)).reshape(9, c_, c2)      # (9, Cin, Cout)
    w2_k = jnp.zeros((9, cmid, c2p), jnp.float32).at[:, :c_, :c2].set(w2_t)
    b2_k = jnp.zeros((1, c2p), jnp.float32).at[0, :c2].set(b2)
    return (w1_k.astype(jnp.bfloat16), b1_k, w2_k.astype(jnp.bfloat16), b2_k,
            (c1, c_, c2, c1p, cmid, c2p))


def _choose_row_tile(H, wp, wt, c1p, cmid, c2p, budget=6 << 20):
    """Largest even row tile dividing H whose VMEM working set fits the budget."""
    cands = [bh for bh in range(2, min(H, 512) + 1, 2) if H % bh == 0]
    if not cands:
        raise ValueError("H must be an even integer >= 2 for this tiling")

    def footprint(bh):
        return (2 * bh * wp * c1p * 2          # double-buffered main x block (bf16)
                + 2 * 2 * wp * c1p * 2         # double-buffered 2-row halo block
                + (bh + 2) * wp * cmid * 2     # cv1 slab scratch (bf16)
                + 2 * bh * wt * c2p * 2        # double-buffered output block (bf16)
                + 2 * bh * wt * c2p * 4)       # f32 accumulator + epilogue temps

    fitting = [bh for bh in cands if footprint(bh) <= budget]
    return max(fitting) if fitting else min(cands)


def bottleneck_pallas(x_nchw, params, add=True, row_tile=None):
    w1_k, b1_k, w2_k, b2_k, dims = params
    c1, c_, c2, c1p, cmid, c2p = dims
    B, C1, H, W = x_nchw.shape
    assert C1 == c1, "input channels do not match cv1 weights"
    if add:
        assert c1 == c2 and c1p == c2p, "Bottleneck shortcut requires c1 == c2"

    wt = _round_up(W, 16)          # compute width (bf16 sublane tile = 16)
    wp = wt + 16                   # padded slab width (>= W+2, multiple of 16)

    bh = row_tile if row_tile is not None else _choose_row_tile(
        H, wp, wt, c1p, cmid, c2p)
    assert bh >= 2 and bh % 2 == 0 and H % bh == 0, "row tile must be even and divide H"
    nH = H // bh
    half = bh // 2

    # NCHW -> NHWC, channel pad to lane multiple, spatial pad (1 row/col zeros).
    # TODO(synk): callers that can supply NHWC directly skip these two transposes.
    x_nhwc = jnp.transpose(x_nchw, (0, 2, 3, 1)).astype(jnp.bfloat16)
    xp = jnp.pad(x_nhwc, ((0, 0), (1, 1), (1, wp - W - 1), (0, c1p - c1)))

    kernel = functools.partial(_bottleneck_kernel, H=H, W=W, bh=bh, wt=wt, add=add)

    call_kwargs = {}
    cp_cls = getattr(pltpu, "CompilerParams", None) or getattr(pltpu, "TPUCompilerParams", None)
    if cp_cls is not None:
        call_kwargs["compiler_params"] = cp_cls(
            dimension_semantics=("parallel", "parallel"),
            vmem_limit_bytes=32 * 1024 * 1024)
    if hasattr(pl, "CostEstimate"):
        flops = (2 * B * (H + 2 * nH) * wp * c1p * cmid
                 + 2 * B * H * wt * 9 * cmid * c2p)
        trans = B * (H + 2 * nH) * wp * cmid + B * H * wt * c2p
        bytes_acc = (xp.size * 2 + w1_k.size * 2 + w2_k.size * 2
                     + b1_k.size * 4 + b2_k.size * 4 + B * H * wt * c2p * 2)
        call_kwargs["cost_estimate"] = pl.CostEstimate(
            flops=int(flops), transcendentals=int(trans),
            bytes_accessed=int(bytes_acc))

    out_flat = pl.pallas_call(
        kernel,
        grid=(B, nH),
        in_specs=[
            # main row block: padded-x rows [i*bh, i*bh+bh)
            pl.BlockSpec((None, bh, wp, c1p), lambda b, i: (b, i, 0, 0)),
            # 2-row bottom halo: padded-x rows [(i+1)*bh, (i+1)*bh+2)
            pl.BlockSpec((None, 2, wp, c1p), lambda b, i: (b, (i + 1) * half, 0, 0)),
            pl.BlockSpec((c1p, cmid), lambda b, i: (0, 0)),
            pl.BlockSpec((1, cmid), lambda b, i: (0, 0)),
            pl.BlockSpec((9, cmid, c2p), lambda b, i: (0, 0, 0)),
            pl.BlockSpec((1, c2p), lambda b, i: (0, 0)),
        ],
        out_specs=pl.BlockSpec((None, bh * wt, c2p), lambda b, i: (b, i, 0)),
        out_shape=jax.ShapeDtypeStruct((B, H * wt, c2p), jnp.bfloat16),
        scratch_shapes=[pltpu.VMEM((bh + 2, wp, cmid), jnp.bfloat16)],
        **call_kwargs,
    )(xp, xp, w1_k, b1_k, w2_k, b2_k)

    y = out_flat.reshape(B, H, wt, c2p)[:, :, :W, :c2].astype(jnp.float32)
    return jnp.transpose(y, (0, 3, 1, 2))                         # back to NCHW


# ---------------------------- pure-JAX reference ------------------------------

def bottleneck_ref(x_nchw, raw, add=True):
    def conv_bn_silu(x, w, g, be, m, v, pad):
        y = jax.lax.conv_general_dilated(
            x, w, window_strides=(1, 1), padding=[(pad, pad), (pad, pad)],
            dimension_numbers=("NCHW", "OIHW", "NCHW"))
        s = g / jnp.sqrt(v + EPS)
        y = y * s[None, :, None, None] + (be - m * s)[None, :, None, None]
        return y * jax.nn.sigmoid(y)

    h = conv_bn_silu(x_nchw, raw["w1"], raw["g1"], raw["be1"], raw["m1"], raw["v1"], 0)
    y = conv_bn_silu(h, raw["w2"], raw["g2"], raw["be2"], raw["m2"], raw["v2"], 1)
    return x_nchw + y if add else y


# ------------------------------------ main ------------------------------------

if __name__ == "__main__":
    key = jax.random.PRNGKey(0)
    B, C1, H, W = 2, 4, 16, 16
    c2 = C1                      # shortcut requires c1 == c2
    e = 0.5
    c_ = max(1, int(c2 * e))

    ks = jax.random.split(key, 11)
    raw = {
        "w1": jax.random.normal(ks[0], (c_, C1, 1, 1), jnp.float32) * 0.3,
        "g1": jax.random.uniform(ks[1], (c_,), jnp.float32, 0.5, 1.5),
        "be1": jax.random.normal(ks[2], (c_,), jnp.float32) * 0.1,
        "m1": jax.random.normal(ks[3], (c_,), jnp.float32) * 0.1,
        "v1": jax.random.uniform(ks[4], (c_,), jnp.float32, 0.5, 1.5),
        "w2": jax.random.normal(ks[5], (c2, c_, 3, 3), jnp.float32) * 0.3,
        "g2": jax.random.uniform(ks[6], (c2,), jnp.float32, 0.5, 1.5),
        "be2": jax.random.normal(ks[7], (c2,), jnp.float32) * 0.1,
        "m2": jax.random.normal(ks[8], (c2,), jnp.float32) * 0.1,
        "v2": jax.random.uniform(ks[9], (c2,), jnp.float32, 0.5, 1.5),
    }
    x = jax.random.normal(ks[10], (B, C1, H, W), jnp.float32)

    params = prepare_params(raw)
    # row_tile=8 -> grid (B, 2): exercises the multi-tile halo path.
    out = bottleneck_pallas(x, params, add=True, row_tile=8)
    out = jax.block_until_ready(out)

    ref = jax.block_until_ready(bottleneck_ref(x, raw, add=True))
    assert out.shape == (B, c2, H, W), out.shape
    # bf16 activations/weights with f32 accumulation -> loosened tolerance.
    if not jnp.allclose(out, ref, rtol=3e-2, atol=3e-2):
        err = float(jnp.max(jnp.abs(out - ref)))
        raise AssertionError(f"Pallas Bottleneck mismatch (max abs err {err:.4f})")

    print("KERNEL_OK")
</pallas_src>

<mosaic_0001>
module attributes {stable_mosaic.version = 11 : i64} {
  func.func @_bottleneck_kernel(%arg0: i32, %arg1: i32, %arg2: memref<1x8x32x128xbf16, #tpu.memory_space<vmem>>, %arg3: memref<1x2x32x128xbf16, #tpu.memory_space<vmem>>, %arg4: memref<128x128xbf16, #tpu.memory_space<vmem>>, %arg5: memref<1x128xf32, #tpu.memory_space<vmem>>, %arg6: memref<9x128x128xbf16, #tpu.memory_space<vmem>>, %arg7: memref<1x128xf32, #tpu.memory_space<vmem>>, %arg8: memref<1x128x128xbf16, #tpu.memory_space<vmem>>, %arg9: memref<10x32x128xbf16, #tpu.memory_space<vmem>>) attributes {dimension_semantics = [#tpu.dimension_semantics<parallel>, #tpu.dimension_semantics<parallel>], iteration_bounds = array<i64: 2, 2>, scalar_prefetch = 0 : i64, scratch_operands = 1 : i64, tpu.core_type = #tpu.core_type<tc>, window_params = [{transform_indices = @transform_0, window_bounds = array<i64: 1, 8, 32, 128>}, {transform_indices = @transform_1, window_bounds = array<i64: 1, 2, 32, 128>}, {pipeline_mode = #tpu.pipeline_mode<synchronous>, transform_indices = @transform_2, window_bounds = array<i64: 128, 128>}, {pipeline_mode = #tpu.pipeline_mode<synchronous>, transform_indices = @transform_3, window_bounds = array<i64: 1, 128>}, {pipeline_mode = #tpu.pipeline_mode<synchronous>, transform_indices = @transform_4, window_bounds = array<i64: 9, 128, 128>}, {pipeline_mode = #tpu.pipeline_mode<synchronous>, transform_indices = @transform_5, window_bounds = array<i64: 1, 128>}, {transform_indices = @transform_6, window_bounds = array<i64: 1, 128, 128>}]} {
    %c0 = arith.constant 0 : index
    %c0_0 = arith.constant 0 : index
    %c0_1 = arith.constant 0 : index
    %c0_2 = arith.constant 0 : index
    %0 = vector.load %arg2[%c0, %c0_0, %c0_1, %c0_2] : memref<1x8x32x128xbf16, #tpu.memory_space<vmem>>, vector<1x8x32x128xbf16>
    %1 = vector.shape_cast %0 : vector<1x8x32x128xbf16> to vector<8x32x128xbf16>
    %c8_i32 = arith.constant 8 : i32
    %2 = arith.muli %arg1, %c8_i32 : i32
    %3 = vector.shape_cast %1 : vector<8x32x128xbf16> to vector<256x128xbf16>
    %c0_3 = arith.constant 0 : index
    %c0_4 = arith.constant 0 : index
    %4 = vector.load %arg4[%c0_3, %c0_4] : memref<128x128xbf16, #tpu.memory_space<vmem>>, vector<128x128xbf16>
    %cst = arith.constant dense<0.000000e+00> : vector<256x128xf32>
    %5 = tpu.matmul %3, %4, %cst {dimension_numbers = #tpu.dot_dimension_numbers<[1], [0], [0], [1], [0, 0, 1, 1], [], []>} : vector<256x128xbf16>, vector<128x128xbf16>, vector<256x128xf32> -> vector<256x128xf32>
    %c0_5 = arith.constant 0 : index
    %c0_6 = arith.constant 0 : index
    %6 = vector.load %arg5[%c0_5, %c0_6] : memref<1x128xf32, #tpu.memory_space<vmem>>, vector<1x128xf32>
    %7 = vector.broadcast %6 : vector<1x128xf32> to vector<256x128xf32>
    %8 = arith.addf %5, %7 : vector<256x128xf32>
    %9 = arith.negf %8 : vector<256x128xf32>
    %10 = math.exp %9 : vector<256x128xf32>
    %cst_7 = arith.constant 1.000000e+00 : f32
    %11 = vector.broadcast %cst_7 : f32 to vector<256x128xf32>
    %12 = arith.addf %11, %10 : vector<256x128xf32>
    %13 = arith.divf %11, %12 : vector<256x128xf32>
    %14 = arith.mulf %8, %13 : vector<256x128xf32>
    %15 = vector.shape_cast %14 : vector<256x128xf32> to vector<8x32x128xf32>
    %16 = tpu.iota {dimensions = array<i32: 0>} : vector<8x32x128xi32>
    %17 = vector.broadcast %2 : i32 to vector<8x32x128xi32>
    %18 = arith.addi %16, %17 : vector<8x32x128xi32>
    %19 = tpu.iota {dimensions = array<i32: 1>} : vector<8x32x128xi32>
    %c1_i32 = arith.constant 1 : i32
    %20 = vector.broadcast %c1_i32 : i32 to vector<8x32x128xi32>
    %21 = arith.cmpi sge, %18, %20 : vector<8x32x128xi32>
    %c16_i32 = arith.constant 16 : i32
    %22 = vector.broadcast %c16_i32 : i32 to vector<8x32x128xi32>
    %23 = arith.cmpi sle, %18, %22 : vector<8x32x128xi32>
    %24 = arith.andi %21, %23 : vector<8x32x128xi1>
    %c1_i32_8 = arith.constant 1 : i32
    %25 = vector.broadcast %c1_i32_8 : i32 to vector<8x32x128xi32>
    %26 = arith.cmpi sge, %19, %25 : vector<8x32x128xi32>
    %27 = arith.andi %24, %26 : vector<8x32x128xi1>
    %c16_i32_9 = arith.constant 16 : i32
    %28 = vector.broadcast %c16_i32_9 : i32 to vector<8x32x128xi32>
    %29 = arith.cmpi sle, %19, %28 : vector<8x32x128xi32>
    %30 = arith.andi %27, %29 : vector<8x32x128xi1>
    %cst_10 = arith.constant 0.000000e+00 : f32
    %31 = vector.broadcast %cst_10 : f32 to vector<8x32x128xf32>
    %32 = arith.select %30, %15, %31 : vector<8x32x128xi1>, vector<8x32x128xf32>
    %33 = arith.truncf %32 : vector<8x32x128xf32> to vector<8x32x128xbf16>
    %c0_11 = arith.constant 0 : index
    %c0_12 = arith.constant 0 : index
    %c0_13 = arith.constant 0 : index
    %34 = vector.load %arg9[%c0_11, %c0_12, %c0_13] : memref<10x32x128xbf16, #tpu.memory_space<vmem>>, vector<8x32x128xbf16>
    tpu.vector_store %arg9[%c0_11, %c0_12, %c0_13], %33 {strides = array<i32>} : memref<10x32x128xbf16, #tpu.memory_space<vmem>>, vector<8x32x128xbf16>,
    %c0_14 = arith.constant 0 : index
    %c0_15 = arith.constant 0 : index
    %c0_16 = arith.constant 0 : index
    %c0_17 = arith.constant 0 : index
    %35 = vector.load %arg3[%c0_14, %c0_15, %c0_16, %c0_17] : memref<1x2x32x128xbf16, #tpu.memory_space<vmem>>, vector<1x2x32x128xbf16>
    %36 = vector.shape_cast %35 : vector<1x2x32x128xbf16> to vector<2x32x128xbf16>
    %c1_i32_18 = arith.constant 1 : i32
    %37 = arith.addi %arg1, %c1_i32_18 : i32
    %c8_i32_19 = arith.constant 8 : i32
    %38 = arith.muli %37, %c8_i32_19 : i32
    %39 = vector.shape_cast %36 : vector<2x32x128xbf16> to vector<64x128xbf16>
    %c0_20 = arith.constant 0 : index
    %c0_21 = arith.constant 0 : index
    %40 = vector.load %arg4[%c0_20, %c0_21] : memref<128x128xbf16, #tpu.memory_space<vmem>>, vector<128x128xbf16>
    %cst_22 = arith.constant dense<0.000000e+00> : vector<64x128xf32>
    %41 = tpu.matmul %39, %40, %cst_22 {dimension_numbers = #tpu.dot_dimension_numbers<[1], [0], [0], [1], [0, 0, 1, 1], [], []>} : vector<64x128xbf16>, vector<128x128xbf16>, vector<64x128xf32> -> vector<64x128xf32>
    %c0_23 = arith.constant 0 : index
    %c0_24 = arith.constant 0 : index
    %42 = vector.load %arg5[%c0_23, %c0_24] : memref<1x128xf32, #tpu.memory_space<vmem>>, vector<1x128xf32>
    %43 = vector.broadcast %42 : vector<1x128xf32> to vector<64x128xf32>
    %44 = arith.addf %41, %43 : vector<64x128xf32>
    %45 = arith.negf %44 : vector<64x128xf32>
    %46 = math.exp %45 : vector<64x128xf32>
    %cst_25 = arith.constant 1.000000e+00 : f32
    %47 = vector.broadcast %cst_25 : f32 to vector<64x128xf32>
    %48 = arith.addf %47, %46 : vector<64x128xf32>
    %49 = arith.divf %47, %48 : vector<64x128xf32>
    %50 = arith.mulf %44, %49 : vector<64x128xf32>
    %51 = vector.shape_cast %50 : vector<64x128xf32> to vector<2x32x128xf32>
    %52 = tpu.iota {dimensions = array<i32: 0>} : vector<2x32x128xi32>
    %53 = vector.broadcast %38 : i32 to vector<2x32x128xi32>
    %54 = arith.addi %52, %53 : vector<2x32x128xi32>
    %55 = tpu.iota {dimensions = array<i32: 1>} : vector<2x32x128xi32>
    %c1_i32_26 = arith.constant 1 : i32
    %56 = vector.broadcast %c1_i32_26 : i32 to vector<2x32x128xi32>
    %57 = arith.cmpi sge, %54, %56 : vector<2x32x128xi32>
    %c16_i32_27 = arith.constant 16 : i32
    %58 = vector.broadcast %c16_i32_27 : i32 to vector<2x32x128xi32>
    %59 = arith.cmpi sle, %54, %58 : vector<2x32x128xi32>
    %60 = arith.andi %57, %59 : vector<2x32x128xi1>
    %c1_i32_28 = arith.constant 1 : i32
    %61 = vector.broadcast %c1_i32_28 : i32 to vector<2x32x128xi32>
    %62 = arith.cmpi sge, %55, %61 : vector<2x32x128xi32>
    %63 = arith.andi %60, %62 : vector<2x32x128xi1>
    %c16_i32_29 = arith.constant 16 : i32
    %64 = vector.broadcast %c16_i32_29 : i32 to vector<2x32x128xi32>
    %65 = arith.cmpi sle, %55, %64 : vector<2x32x128xi32>
    %66 = arith.andi %63, %65 : vector<2x32x128xi1>
    %cst_30 = arith.constant 0.000000e+00 : f32
    %67 = vector.broadcast %cst_30 : f32 to vector<2x32x128xf32>
    %68 = arith.select %66, %51, %67 : vector<2x32x128xi1>, vector<2x32x128xf32>
    %69 = arith.truncf %68 : vector<2x32x128xf32> to vector<2x32x128xbf16>
    %c8 = arith.constant 8 : index
    %c0_31 = arith.constant 0 : index
    %c0_32 = arith.constant 0 : index
    %70 = vector.load %arg9[%c8, %c0_31, %c0_32] : memref<10x32x128xbf16, #tpu.memory_space<vmem>>, vector<2x32x128xbf16>
    tpu.vector_store %arg9[%c8, %c0_31, %c0_32], %69 {strides = array<i32>} : memref<10x32x128xbf16, #tpu.memory_space<vmem>>, vector<2x32x128xbf16>,
    %c0_33 = arith.constant 0 : index
    %c0_34 = arith.constant 0 : index
    %c0_35 = arith.constant 0 : index
    %71 = vector.load %arg9[%c0_33, %c0_34, %c0_35] : memref<10x32x128xbf16, #tpu.memory_space<vmem>>, vector<8x16x128xbf16>
    %72 = vector.shape_cast %71 : vector<8x16x128xbf16> to vector<128x128xbf16>
    %c0_36 = arith.constant 0 : index
    %c0_37 = arith.constant 0 : index
    %c0_38 = arith.constant 0 : index
    %73 = vector.load %arg6[%c0_36, %c0_37, %c0_38] : memref<9x128x128xbf16, #tpu.memory_space<vmem>>, vector<1x128x128xbf16>
    %74 = vector.shape_cast %73 : vector<1x128x128xbf16> to vector<128x128xbf16>
    %cst_39 = arith.constant dense<0.000000e+00> : vector<128x128xf32>
    %75 = tpu.matmul %72, %74, %cst_39 {dimension_numbers = #tpu.dot_dimension_numbers<[1], [0], [0], [1], [0, 0, 1, 1], [], []>} : vector<128x128xbf16>, vector<128x128xbf16>, vector<128x128xf32> -> vector<128x128xf32>
    %c0_40 = arith.constant 0 : index
    %c1 = arith.constant 1 : index
    %c0_41 = arith.constant 0 : index
    %76 = vector.load %arg9[%c0_40, %c1, %c0_41] : memref<10x32x128xbf16, #tpu.memory_space<vmem>>, vector<8x16x128xbf16>
    %77 = vector.shape_cast %76 : vector<8x16x128xbf16> to vector<128x128xbf16>
    %c1_42 = arith.constant 1 : index
    %c0_43 = arith.constant 0 : index
    %c0_44 = arith.constant 0 : index
    %78 = vector.load %arg6[%c1_42, %c0_43, %c0_44] : memref<9x128x128xbf16, #tpu.memory_space<vmem>>, vector<1x128x128xbf16>
    %79 = vector.shape_cast %78 : vector<1x128x128xbf16> to vector<128x128xbf16>
    %cst_45 = arith.constant dense<0.000000e+00> : vector<128x128xf32>
    %80 = tpu.matmul %77, %79, %cst_45 {dimension_numbers = #tpu.dot_dimension_numbers<[1], [0], [0], [1], [0, 0, 1, 1], [], []>} : vector<128x128xbf16>, vector<128x128xbf16>, vector<128x128xf32> -> vector<128x128xf32>
    %81 = arith.addf %75, %80 : vector<128x128xf32>
    %c0_46 = arith.constant 0 : index
    %c2 = arith.constant 2 : index
    %c0_47 = arith.constant 0 : index
    %82 = vector.load %arg9[%c0_46, %c2, %c0_47] : memref<10x32x128xbf16, #tpu.memory_space<vmem>>, vector<8x16x128xbf16>
    %83 = vector.shape_cast %82 : vector<8x16x128xbf16> to vector<128x128xbf16>
    %c2_48 = arith.constant 2 : index
    %c0_49 = arith.constant 0 : index
    %c0_50 = arith.constant 0 : index
    %84 = vector.load %arg6[%c2_48, %c0_49, %c0_50] : memref<9x128x128xbf16, #tpu.memory_space<vmem>>, vector<1x128x128xbf16>
    %85 = vector.shape_cast %84 : vector<1x128x128xbf16> to vector<128x128xbf16>
    %cst_51 = arith.constant dense<0.000000e+00> : vector<128x128xf32>
    %86 = tpu.matmul %83, %85, %cst_51 {dimension_numbers = #tpu.dot_dimension_numbers<[1], [0], [0], [1], [0, 0, 1, 1], [], []>} : vector<128x128xbf16>, vector<128x128xbf16>, vector<128x128xf32> -> vector<128x128xf32>
    %87 = arith.addf %81, %86 : vector<128x128xf32>
    %c1_52 = arith.constant 1 : index
    %c0_53 = arith.constant 0 : index
    %c0_54 = arith.constant 0 : index
    %88 = vector.load %arg9[%c1_52, %c0_53, %c0_54] : memref<10x32x128xbf16, #tpu.memory_space<vmem>>, vector<8x16x128xbf16>
    %89 = vector.shape_cast %88 : vector<8x16x128xbf16> to vector<128x128xbf16>
    %c3 = arith.constant 3 : index
    %c0_55 = arith.constant 0 : index
    %c0_56 = arith.constant 0 : index
    %90 = vector.load %arg6[%c3, %c0_55, %c0_56] : memref<9x128x128xbf16, #tpu.memory_space<vmem>>, vector<1x128x128xbf16>
    %91 = vector.shape_cast %90 : vector<1x128x128xbf16> to vector<128x128xbf16>
    %cst_57 = arith.constant dense<0.000000e+00> : vector<128x128xf32>
    %92 = tpu.matmul %89, %91, %cst_57 {dimension_numbers = #tpu.dot_dimension_numbers<[1], [0], [0], [1], [0, 0, 1, 1], [], []>} : vector<128x128xbf16>, vector<128x128xbf16>, vector<128x128xf32> -> vector<128x128xf32>
    %93 = arith.addf %87, %92 : vector<128x128xf32>
    %c1_58 = arith.constant 1 : index
    %c1_59 = arith.constant 1 : index
    %c0_60 = arith.constant 0 : index
    %94 = vector.load %arg9[%c1_58, %c1_59, %c0_60] : memref<10x32x128xbf16, #tpu.memory_space<vmem>>, vector<8x16x128xbf16>
    %95 = vector.shape_cast %94 : vector<8x16x128xbf16> to vector<128x128xbf16>
    %c4 = arith.constant 4 : index
    %c0_61 = arith.constant 0 : index
    %c0_62 = arith.constant 0 : index
    %96 = vector.load %arg6[%c4, %c0_61, %c0_62] : memref<9x128x128xbf16, #tpu.memory_space<vmem>>, vector<1x128x128xbf16>
    %97 = vector.shape_cast %96 : vector<1x128x128xbf16> to vector<128x128xbf16>
    %cst_63 = arith.constant dense<0.000000e+00> : vector<128x128xf32>
    %98 = tpu.matmul %95, %97, %cst_63 {dimension_numbers = #tpu.dot_dimension_numbers<[1], [0], [0], [1], [0, 0, 1, 1], [], []>} : vector<128x128xbf16>, vector<128x128xbf16>, vector<128x128xf32> -> vector<128x128xf32>
    %99 = arith.addf %93, %98 : vector<128x128xf32>
    %c1_64 = arith.constant 1 : index
    %c2_65 = arith.constant 2 : index
    %c0_66 = arith.constant 0 : index
    %100 = vector.load %arg9[%c1_64, %c2_65, %c0_66] : memref<10x32x128xbf16, #tpu.memory_space<vmem>>, vector<8x16x128xbf16>
    %101 = vector.shape_cast %100 : vector<8x16x128xbf16> to vector<128x128xbf16>
    %c5 = arith.constant 5 : index
    %c0_67 = arith.constant 0 : index
    %c0_68 = arith.constant 0 : index
    %102 = vector.load %arg6[%c5, %c0_67, %c0_68] : memref<9x128x128xbf16, #tpu.memory_space<vmem>>, vector<1x128x128xbf16>
    %103 = vector.shape_cast %102 : vector<1x128x128xbf16> to vector<128x128xbf16>
    %cst_69 = arith.constant dense<0.000000e+00> : vector<128x128xf32>
    %104 = tpu.matmul %101, %103, %cst_69 {dimension_numbers = #tpu.dot_dimension_numbers<[1], [0], [0], [1], [0, 0, 1, 1], [], []>} : vector<128x128xbf16>, vector<128x128xbf16>, vector<128x128xf32> -> vector<128x128xf32>
    %105 = arith.addf %99, %104 : vector<128x128xf32>
    %c2_70 = arith.constant 2 : index
    %c0_71 = arith.constant 0 : index
    %c0_72 = arith.constant 0 : index
    %106 = vector.load %arg9[%c2_70, %c0_71, %c0_72] : memref<10x32x128xbf16, #tpu.memory_space<vmem>>, vector<8x16x128xbf16>
    %107 = vector.shape_cast %106 : vector<8x16x128xbf16> to vector<128x128xbf16>
    %c6 = arith.constant 6 : index
    %c0_73 = arith.constant 0 : index
    %c0_74 = arith.constant 0 : index
    %108 = vector.load %arg6[%c6, %c0_73, %c0_74] : memref<9x128x128xbf16, #tpu.memory_space<vmem>>, vector<1x128x128xbf16>
    %109 = vector.shape_cast %108 : vector<1x128x128xbf16> to vector<128x128xbf16>
    %cst_75 = arith.constant dense<0.000000e+00> : vector<128x128xf32>
    %110 = tpu.matmul %107, %109, %cst_75 {dimension_numbers = #tpu.dot_dimension_numbers<[1], [0], [0], [1], [0, 0, 1, 1], [], []>} : vector<128x128xbf16>, vector<128x128xbf16>, vector<128x128xf32> -> vector<128x128xf32>
    %111 = arith.addf %105, %110 : vector<128x128xf32>
    %c2_76 = arith.constant 2 : index
    %c1_77 = arith.constant 1 : index
    %c0_78 = arith.constant 0 : index
    %112 = vector.load %arg9[%c2_76, %c1_77, %c0_78] : memref<10x32x128xbf16, #tpu.memory_space<vmem>>, vector<8x16x128xbf16>
    %113 = vector.shape_cast %112 : vector<8x16x128xbf16> to vector<128x128xbf16>
    %c7 = arith.constant 7 : index
    %c0_79 = arith.constant 0 : index
    %c0_80 = arith.constant 0 : index
    %114 = vector.load %arg6[%c7, %c0_79, %c0_80] : memref<9x128x128xbf16, #tpu.memory_space<vmem>>, vector<1x128x128xbf16>
    %115 = vector.shape_cast %114 : vector<1x128x128xbf16> to vector<128x128xbf16>
    %cst_81 = arith.constant dense<0.000000e+00> : vector<128x128xf32>
    %116 = tpu.matmul %113, %115, %cst_81 {dimension_numbers = #tpu.dot_dimension_numbers<[1], [0], [0], [1], [0, 0, 1, 1], [], []>} : vector<128x128xbf16>, vector<128x128xbf16>, vector<128x128xf32> -> vector<128x128xf32>
    %117 = arith.addf %111, %116 : vector<128x128xf32>
    %c2_82 = arith.constant 2 : index
    %c2_83 = arith.constant 2 : index
    %c0_84 = arith.constant 0 : index
    %118 = vector.load %arg9[%c2_82, %c2_83, %c0_84] : memref<10x32x128xbf16, #tpu.memory_space<vmem>>, vector<8x16x128xbf16>
    %119 = vector.shape_cast %118 : vector<8x16x128xbf16> to vector<128x128xbf16>
    %c8_85 = arith.constant 8 : index
    %c0_86 = arith.constant 0 : index
    %c0_87 = arith.constant 0 : index
    %120 = vector.load %arg6[%c8_85, %c0_86, %c0_87] : memref<9x128x128xbf16, #tpu.memory_space<vmem>>, vector<1x128x128xbf16>
    %121 = vector.shape_cast %120 : vector<1x128x128xbf16> to vector<128x128xbf16>
    %cst_88 = arith.constant dense<0.000000e+00> : vector<128x128xf32>
    %122 = tpu.matmul %119, %121, %cst_88 {dimension_numbers = #tpu.dot_dimension_numbers<[1], [0], [0], [1], [0, 0, 1, 1], [], []>} : vector<128x128xbf16>, vector<128x128xbf16>, vector<128x128xf32> -> vector<128x128xf32>
    %123 = arith.addf %117, %122 : vector<128x128xf32>
    %c0_89 = arith.constant 0 : index
    %c0_90 = arith.constant 0 : index
    %124 = vector.load %arg7[%c0_89, %c0_90] : memref<1x128xf32, #tpu.memory_space<vmem>>, vector<1x128xf32>
    %125 = vector.broadcast %124 : vector<1x128xf32> to vector<128x128xf32>
    %126 = arith.addf %123, %125 : vector<128x128xf32>
    %127 = arith.negf %126 : vector<128x128xf32>
    %128 = math.exp %127 : vector<128x128xf32>
    %cst_91 = arith.constant 1.000000e+00 : f32
    %129 = vector.broadcast %cst_91 : f32 to vector<128x128xf32>
    %130 = arith.addf %129, %128 : vector<128x128xf32>
    %131 = arith.divf %129, %130 : vector<128x128xf32>
    %132 = arith.mulf %126, %131 : vector<128x128xf32>
    %c0_92 = arith.constant 0 : index
    %c1_93 = arith.constant 1 : index
    %c1_94 = arith.constant 1 : index
    %c0_95 = arith.constant 0 : index
    %133 = vector.load %arg2[%c0_92, %c1_93, %c1_94, %c0_95] : memref<1x8x32x128xbf16, #tpu.memory_space<vmem>>, vector<1x7x16x128xbf16>
    %134 = vector.shape_cast %133 : vector<1x7x16x128xbf16> to vector<7x16x128xbf16>
    %c0_96 = arith.constant 0 : index
    %c0_97 = arith.constant 0 : index
    %c1_98 = arith.constant 1 : index
    %c0_99 = arith.constant 0 : index
    %135 = vector.load %arg3[%c0_96, %c0_97, %c1_98, %c0_99] : memref<1x2x32x128xbf16, #tpu.memory_space<vmem>>, vector<1x1x16x128xbf16>
    %136 = vector.shape_cast %135 : vector<1x1x16x128xbf16> to vector<1x16x128xbf16>
    %137 = tpu.concatenate %134, %136 in 0 : vector<7x16x128xbf16>, vector<1x16x128xbf16> -> vector<8x16x128xbf16>
    %138 = vector.shape_cast %137 : vector<8x16x128xbf16> to vector<128x128xbf16>
    %139 = arith.extf %138 : vector<128x128xbf16> to vector<128x128xf32>
    %140 = arith.addf %132, %139 : vector<128x128xf32>
    %141 = arith.truncf %140 : vector<128x128xf32> to vector<128x128xbf16>
    %c0_100 = arith.constant 0 : index
    %c0_101 = arith.constant 0 : index
    %c0_102 = arith.constant 0 : index
    %142 = vector.load %arg8[%c0_100, %c0_101, %c0_102] : memref<1x128x128xbf16, #tpu.memory_space<vmem>>, vector<1x128x128xbf16>
    %143 = vector.shape_cast %142 : vector<1x128x128xbf16> to vector<128x128xbf16>
    %144 = vector.shape_cast %141 : vector<128x128xbf16> to vector<1x128x128xbf16>
    tpu.vector_store %arg8[%c0_100, %c0_101, %c0_102], %144 {strides = array<i32>} : memref<1x128x128xbf16, #tpu.memory_space<vmem>>, vector<1x128x128xbf16>,
    return
  }
  func.func @transform_0(%arg0: i32, %arg1: i32) -> (i32, i32, i32, i32) {
    %c0_i32 = arith.constant 0 : i32
    %c0_i32_0 = arith.constant 0 : i32
    %c0_i32_1 = arith.constant 0 : i32
    return %arg0, %arg1, %c0_i32, %c0_i32_0 : i32, i32, i32, i32
  }
  func.func @transform_1(%arg0: i32, %arg1: i32) -> (i32, i32, i32, i32) {
    %c1_i32 = arith.constant 1 : i32
    %0 = arith.addi %arg1, %c1_i32 : i32
    %c4_i32 = arith.constant 4 : i32
    %1 = arith.muli %0, %c4_i32 : i32
    %c0_i32 = arith.constant 0 : i32
    %c0_i32_0 = arith.constant 0 : i32
    %c0_i32_1 = arith.constant 0 : i32
    return %arg0, %1, %c0_i32, %c0_i32_0 : i32, i32, i32, i32
  }
  func.func @transform_2(%arg0: i32, %arg1: i32) -> (i32, i32) {
    %c0_i32 = arith.constant 0 : i32
    %c0_i32_0 = arith.constant 0 : i32
    %c0_i32_1 = arith.constant 0 : i32
    return %c0_i32, %c0_i32_0 : i32, i32
  }
  func.func @transform_3(%arg0: i32, %arg1: i32) -> (i32, i32) {
    %c0_i32 = arith.constant 0 : i32
    %c0_i32_0 = arith.constant 0 : i32
    %c0_i32_1 = arith.constant 0 : i32
    return %c0_i32, %c0_i32_0 : i32, i32
  }
  func.func @transform_4(%arg0: i32, %arg1: i32) -> (i32, i32, i32) {
    %c0_i32 = arith.constant 0 : i32
    %c0_i32_0 = arith.constant 0 : i32
    %c0_i32_1 = arith.constant 0 : i32
    %c0_i32_2 = arith.constant 0 : i32
    return %c0_i32, %c0_i32_0, %c0_i32_1 : i32, i32, i32
  }
  func.func @transform_5(%arg0: i32, %arg1: i32) -> (i32, i32) {
    %c0_i32 = arith.constant 0 : i32
    %c0_i32_0 = arith.constant 0 : i32
    %c0_i32_1 = arith.constant 0 : i32
    return %c0_i32, %c0_i32_0 : i32, i32
  }
  func.func @transform_6(%arg0: i32, %arg1: i32) -> (i32, i32, i32) {
    %c0_i32 = arith.constant 0 : i32
    %c0_i32_0 = arith.constant 0 : i32
    return %arg0, %arg1, %c0_i32 : i32, i32, i32
  }
}

</mosaic_0001>

<llo_original>
// kernel: tpu_custom_call.1
$region0: #{tpu_custom_call.1}
  #allocation0 [shape = 'u32[]', space=smem, size = 0x4, offset = 0x4, fixed_abs, tag = 'smem constant byte address 0x4 - core index']
  #allocation1 [shape = 'u32[72,128]{1,0:T(1,128)}', space=vmem, size = 0x9000, scoped, tag = 'internal scratch']
  #allocation2 [shape = 'bf16[10,32,128]{2,1,0:T(8,128)(2,1)}', space=vmem, size = 0x14000, scoped, tag = 'scratch operand']
  %s0 = inlined_call_operand.hbm [shape: bf16[2,18,32,128], index: 0, kind: input, shape index: {}]
  %s1 = inlined_call_operand.hbm [shape: bf16[2,18,32,128], index: 1, kind: input, shape index: {}]
  %s2 = inlined_call_operand.hbm [shape: bf16[128,128], index: 2, kind: input, shape index: {}]
  %s3 = inlined_call_operand.vmem [shape: f32[1,128], index: 3, kind: input, shape index: {}]
  %s4 = inlined_call_operand.hbm [shape: bf16[9,128,128], index: 4, kind: input, shape index: {}]
  %s5 = inlined_call_operand.vmem [shape: f32[1,128], index: 5, kind: input, shape index: {}]
  %s6 = inlined_call_operand.hbm [shape: bf16[2,256,128], index: 6, kind: output, shape index: {}]
  %s7 = sld [smem:[#allocation0]]
  $region73: #{tpu_custom_call.1} parent=0
    _
  %s9 = ssub.s32 1, %s7
  %s10 = scalar_select 0, %s9, %s7
  $region1: #{tpu_custom_call.1} parent=0
    #allocation3 [shape = 'u8[131072]{0}', space=vmem, size = 0x20000, scoped, tag = 'input window, operand 0']
    #allocation4 [shape = 's32[2]{0}', space=sflag, size = 0x8, scoped, tag = 'scoped memory for tpu_custom_call.1']
    #allocation5 [shape = 's32[2]{0}', space=sflag, size = 0x8, scoped, tag = 'scoped memory for tpu_custom_call.1']
    #allocation6 [shape = 'u8[32768]{0}', space=vmem, size = 0x8000, scoped, tag = 'input window, operand 1']
    #allocation7 [shape = 's32[2]{0}', space=sflag, size = 0x8, scoped, tag = 'scoped memory for tpu_custom_call.1']
    #allocation8 [shape = 'u8[32768]{0}', space=vmem, size = 0x8000, scoped, tag = 'input window, operand 2, single buffered']
    #allocation9 [shape = 'u8[294912]{0}', space=vmem, size = 0x48000, scoped, tag = 'input window, operand 4, single buffered']
    #allocation10 [shape = 's32[1]{0}', space=sflag, size = 0x4, scoped, tag = 'scoped memory for tpu_custom_call.1']
    #allocation11 [shape = 'u8[65536]{0}', space=vmem, size = 0x10000, scoped, tag = 'output window, operand 0']
    %11 = vsyncpa [#allocation4], 0
    %s12 = scalar_lea.sflag [#allocation4], 1
    %13 = vsyncpa %s12, 0
    %14 = vsyncpa [#allocation7], 0
    %s15 = scalar_lea.sflag [#allocation7], 1
    %16 = vsyncpa %s15, 0
    %17 = vsyncpa [#allocation10], 0
    %18 = vsyncpa [#allocation5], 0
    %s19 = scalar_lea.sflag [#allocation5], 1
    %20 = vsyncpa %s19, 0
    loop: start=0, step=1, limit=6
    $region2: #{tpu_custom_call.1} parent=1 // loop_pre_header
      _
    $region3: #{tpu_custom_call.1} parent=1 // loop_header
      %s22 = sphi 0, %s26
      %p23 = scmp.ge.s32.totalorder %s22, 6
      %s29 = sphi 0, %s41
      %s30 = sphi 0, %s37
      %s31 = sphi 0, %s29
      %s32 = sphi 0, %s30
      %s33 = sphi 0, %s31
      %s34 = sphi 0, %s32
      %s46 = sphi 0, %s48
      %s49 = sphi 0, %s46
      %s50 = sphi 0, %s49
      %s66 = sphi 0, %s50
      %s78 = sphi 0, %s80
      %s81 = sphi 0, %s78
      %s82 = sphi 0, %s81
      %s98 = sphi 0, %s82
      %s102 = sphi 0, %s102
      %s104 = sphi 0, %s102
      %s105 = sphi 0, %s104
      %s119 = sphi 0, %s105
      %s123 = sphi 0, %s123
      %s125 = sphi 0, %s123
      %s126 = sphi 0, %s125
      %s140 = sphi 0, %s126
      %s144 = sphi 0, %s144
      %s146 = sphi 0, %s144
      %s147 = sphi 0, %s146
      %s161 = sphi 0, %s147
      %s165 = sphi 0, %s165
      %s167 = sphi 0, %s165
      %s168 = sphi 0, %s167
      %s182 = sphi 0, %s168
      %s190 = sphi 0, %s192
      %s193 = sphi 0, %s190
      %s194 = sphi 0, %s193
      %s210 = sphi 0, %s194
    $region4: #{tpu_custom_call.1} parent=1 // loop_header_branch
      %25 = sbr.rel (%p23) target = $region8
    $region5: #{tpu_custom_call.1} parent=1 // loop_body
      %s27 = ssub.s32 %s22, 1
      %s28 = ssub.s32 %s22, 2
      %s35 = sadd.s32 1, %s30
      %p36 = scmp.ge.s32.totalorder %s35, 2
      %s37 = scalar_select %p36, 0, %s35
      %s38 = sadd.s32 1, %s29
      %s39 = scalar_select %p36, %s38, %s29
      %p40 = scmp.ge.s32.totalorder %s39, 2
      %s41 = scalar_select %p40, 0, %s39
      %s42 = ssub.s32 %s29, %s41
      %s43 = ssub.s32 %s30, %s37
      %s44 = sor.u32 %s42, %s43
      %p45 = scmp.eq.s32.totalorder %s44, 0
      %s47 = sadd.s32 %s46, 1
      %s48 = scalar_select %p45, %s46, %s47
      %p51 = pneg %p45
      %p52 = scmp.eq.s32.totalorder %s22, 3
      %p53 = por %p51, %p52
      %p54 = scmp.ne.s32.totalorder %s46, %s49
      %p55 = scmp.eq.s32.totalorder %s22, 0
      %p56 = por %p54, %p55
      %p57 = scmp.ne.s32.totalorder %s46, %s49
      %p58 = scmp.eq.s32.totalorder %s27, 3
      %p59 = por %p57, %p58
      %p60 = scmp.ne.s32.totalorder %s49, %s50
      %p61 = scmp.eq.s32.totalorder %s27, 0
      %p62 = por %p60, %p61
      %p63 = scmp.ne.s32.totalorder %s49, %s50
      %p64 = scmp.eq.s32.totalorder %s28, 3
      %p65 = por %p63, %p64
      %p67 = scmp.ne.s32.totalorder %s50, %s66
      %p68 = scmp.eq.s32.totalorder %s28, 0
      %p69 = por %p67, %p68
      %s70 = sadd.s32 %s30, 1
      %s71 = smul.u32 %s70, 4
      %s72 = sadd.s32 %s37, 1
      %s73 = smul.u32 %s72, 4
      %s74 = ssub.s32 %s29, %s41
      %s75 = ssub.s32 %s71, %s73
      %s76 = sor.u32 %s74, %s75
      %p77 = scmp.eq.s32.totalorder %s76, 0
      %s79 = sadd.s32 %s78, 1
      %s80 = scalar_select %p77, %s78, %s79
      %p83 = pneg %p77
      %p84 = scmp.eq.s32.totalorder %s22, 3
      %p85 = por %p83, %p84
      %p86 = scmp.ne.s32.totalorder %s78, %s81
      %p87 = scmp.eq.s32.totalorder %s22, 0
      %p88 = por %p86, %p87
      %p89 = scmp.ne.s32.totalorder %s78, %s81
      %p90 = scmp.eq.s32.totalorder %s27, 3
      %p91 = por %p89, %p90
      %p92 = scmp.ne.s32.totalorder %s81, %s82
      %p93 = scmp.eq.s32.totalorder %s27, 0
      %p94 = por %p92, %p93
      %p95 = scmp.ne.s32.totalorder %s81, %s82
      %p96 = scmp.eq.s32.totalorder %s28, 3
      %p97 = por %p95, %p96
      %p99 = scmp.ne.s32.totalorder %s82, %s98
      %p100 = scmp.eq.s32.totalorder %s28, 0
      %p101 = por %p99, %p100
      %s103 = sadd.s32 %s102, 1
      %p106 = scmp.eq.s32.totalorder %s22, 3
      %p107 = scmp.ne.s32.totalorder %s102, %s104
      %p108 = scmp.eq.s32.totalorder %s22, 0
      %p109 = por %p107, %p108
      %p110 = scmp.ne.s32.totalorder %s102, %s104
      %p111 = scmp.eq.s32.totalorder %s27, 3
      %p112 = por %p110, %p111
      %p113 = scmp.ne.s32.totalorder %s104, %s105
      %p114 = scmp.eq.s32.totalorder %s27, 0
      %p115 = por %p113, %p114
      %p116 = scmp.ne.s32.totalorder %s104, %s105
      %p117 = scmp.eq.s32.totalorder %s28, 3
      %p118 = por %p116, %p117
      %p120 = scmp.ne.s32.totalorder %s105, %s119
      %p121 = scmp.eq.s32.totalorder %s28, 0
      %p122 = por %p120, %p121
      %s124 = sadd.s32 %s123, 1
      %p127 = scmp.eq.s32.totalorder %s22, 3
      %p128 = scmp.ne.s32.totalorder %s123, %s125
      %p129 = scmp.eq.s32.totalorder %s22, 0
      %p130 = por %p128, %p129
      %p131 = scmp.ne.s32.totalorder %s123, %s125
      %p132 = scmp.eq.s32.totalorder %s27, 3
      %p133 = por %p131, %p132
      %p134 = scmp.ne.s32.totalorder %s125, %s126
      %p135 = scmp.eq.s32.totalorder %s27, 0
      %p136 = por %p134, %p135
      %p137 = scmp.ne.s32.totalorder %s125, %s126
      %p138 = scmp.eq.s32.totalorder %s28, 3
      %p139 = por %p137, %p138
      %p141 = scmp.ne.s32.totalorder %s126, %s140
      %p142 = scmp.eq.s32.totalorder %s28, 0
      %p143 = por %p141, %p142
      %s145 = sadd.s32 %s144, 1
      %p148 = scmp.eq.s32.totalorder %s22, 3
      %p149 = scmp.ne.s32.totalorder %s144, %s146
      %p150 = scmp.eq.s32.totalorder %s22, 0
      %p151 = por %p149, %p150
      %p152 = scmp.ne.s32.totalorder %s144, %s146
      %p153 = scmp.eq.s32.totalorder %s27, 3
      %p154 = por %p152, %p153
      %p155 = scmp.ne.s32.totalorder %s146, %s147
      %p156 = scmp.eq.s32.totalorder %s27, 0
      %p157 = por %p155, %p156
      %p158 = scmp.ne.s32.totalorder %s146, %s147
      %p159 = scmp.eq.s32.totalorder %s28, 3
      %p160 = por %p158, %p159
      %p162 = scmp.ne.s32.totalorder %s147, %s161
      %p163 = scmp.eq.s32.totalorder %s28, 0
      %p164 = por %p162, %p163
      %s166 = sadd.s32 %s165, 1
      %p169 = scmp.eq.s32.totalorder %s22, 3
      %p170 = scmp.ne.s32.totalorder %s165, %s167
      %p171 = scmp.eq.s32.totalorder %s22, 0
      %p172 = por %p170, %p171
      %p173 = scmp.ne.s32.totalorder %s165, %s167
      %p174 = scmp.eq.s32.totalorder %s27, 3
      %p175 = por %p173, %p174
      %p176 = scmp.ne.s32.totalorder %s167, %s168
      %p177 = scmp.eq.s32.totalorder %s27, 0
      %p178 = por %p176, %p177
      %p179 = scmp.ne.s32.totalorder %s167, %s168
      %p180 = scmp.eq.s32.totalorder %s28, 3
      %p181 = por %p179, %p180
      %p183 = scmp.ne.s32.totalorder %s168, %s182
      %p184 = scmp.eq.s32.totalorder %s28, 0
      %p185 = por %p183, %p184
      %s186 = ssub.s32 %s29, %s41
      %s187 = ssub.s32 %s30, %s37
      %s188 = sor.u32 %s186, %s187
      %p189 = scmp.eq.s32.totalorder %s188, 0
      %s191 = sadd.s32 %s190, 1
      %s192 = scalar_select %p189, %s190, %s191
      %p195 = pneg %p189
      %p196 = scmp.eq.s32.totalorder %s22, 3
      %p197 = por %p195, %p196
      %p198 = scmp.ne.s32.totalorder %s190, %s193
      %p199 = scmp.eq.s32.totalorder %s22, 0
      %p200 = por %p198, %p199
      %p201 = scmp.ne.s32.totalorder %s190, %s193
      %p202 = scmp.eq.s32.totalorder %s27, 3
      %p203 = por %p201, %p202
      %p204 = scmp.ne.s32.totalorder %s193, %s194
      %p205 = scmp.eq.s32.totalorder %s27, 0
      %p206 = por %p204, %p205
      %p207 = scmp.ne.s32.totalorder %s193, %s194
      %p208 = scmp.eq.s32.totalorder %s28, 3
      %p209 = por %p207, %p208
      %p211 = scmp.ne.s32.totalorder %s194, %s210
      %p212 = scmp.eq.s32.totalorder %s28, 0
      %p213 = por %p211, %p212
      %p214 = scmp.le.s32.totalorder 1, %s22
      %p215 = scmp.lt.s32.totalorder %s22, 5
      %p216 = pnand %p214, %p215
      %p217 = pneg %p216
      // Predicated region
      $region9: #{tpu_custom_call.1} parent=5 // pred_check
        _
      $region10: #{tpu_custom_call.1} parent=5 // pred_check_branch
        %219 = sbr.rel (%p216) target = $region12
      $region11: #{tpu_custom_call.1} parent=5 // pred_region
        %s220 = ssub.s32 %s22, 1
        // Predicated region
        $region13: #{tpu_custom_call.1} parent=11 // pred_check
          %p221 = pneg %p115
        $region14: #{tpu_custom_call.1} parent=11 // pred_check_branch
          %223 = sbr.rel (%p221) target = $region16
        $region15: #{tpu_custom_call.1} parent=11 // pred_region
          %225 = vsyncadd [#allocation7], 0
          %s226 = sshll.u32 %s2, 4
          %s227 = int_to_ptr.hbm [resolvable:$true] %s226
          %s228 = sshll.u32 [#allocation8], 4
          %s229 = int_to_ptr.vmem [resolvable:$true] %s228
          %234 = dma.hbm_to_vmem [thread:$0]  %s227, 1024, %s229, [#allocation7], 64, 64, 4
        $region16: #{tpu_custom_call.1} parent=11 // pred_fallthru
          _
        // Predicated region
        $region17: #{tpu_custom_call.1} parent=11 // pred_check
          %p235 = pneg %p136
        $region18: #{tpu_custom_call.1} parent=11 // pred_check_branch
          %237 = sbr.rel (%p235) target = $region20
        $region19: #{tpu_custom_call.1} parent=11 // pred_region
          _
        $region20: #{tpu_custom_call.1} parent=11 // pred_fallthru
          _
        // Predicated region
        $region21: #{tpu_custom_call.1} parent=11 // pred_check
          %p238 = pneg %p157
        $region22: #{tpu_custom_call.1} parent=11 // pred_check_branch
          %240 = sbr.rel (%p238) target = $region24
        $region23: #{tpu_custom_call.1} parent=11 // pred_region
          %242 = vsyncadd [#allocation10], 0
          %s243 = sshll.u32 %s4, 4
          %s244 = int_to_ptr.hbm [resolvable:$true] %s243
          %s245 = sshll.u32 [#allocation9], 4
          %s246 = int_to_ptr.vmem [resolvable:$true] %s245
          %251 = dma.hbm_to_vmem [thread:$0]  %s244, 9216, %s246, [#allocation10], 64, 64, 4
        $region24: #{tpu_custom_call.1} parent=11 // pred_fallthru
          _
        // Predicated region
        $region25: #{tpu_custom_call.1} parent=11 // pred_check
          %p252 = pneg %p178
        $region26: #{tpu_custom_call.1} parent=11 // pred_check_branch
          %254 = sbr.rel (%p252) target = $region28
        $region27: #{tpu_custom_call.1} parent=11 // pred_region
          _
        $region28: #{tpu_custom_call.1} parent=11 // pred_fallthru
          _
      $region12: #{tpu_custom_call.1} parent=5 // pred_fallthru
        _
      %p255 = scmp.lt.s32.totalorder %s22, 4
      // Predicated region
      $region29: #{tpu_custom_call.1} parent=5 // pred_check
        %p256 = pneg %p255
      $region30: #{tpu_custom_call.1} parent=5 // pred_check_branch
        %258 = sbr.rel (%p256) target = $region32
      $region31: #{tpu_custom_call.1} parent=5 // pred_region
        // Predicated region
        $region33: #{tpu_custom_call.1} parent=31 // pred_check
          %p259 = pneg %p56
        $region34: #{tpu_custom_call.1} parent=31 // pred_check_branch
          %261 = sbr.rel (%p259) target = $region36
        $region35: #{tpu_custom_call.1} parent=31 // pred_region
          %s262 = sand.u32 %s46, 1
          %s263 = scalar_lea.sflag [#allocation4], %s262
          %s264 = sand.u32 %s46, 1
          %s265 = smul.addr %s264, 128
          %s266 = scalar_lea.vmem [#allocation3], %s265
          %s267 = smul.u32 8, %s30
          %s268 = ssub.s32 18, %s267
          %p269 = scmp.lt.s32.totalorder %s268, 8
          %s270 = scalar_select %p269, %s268, 8
          %s271 = smul.u32 4, %s270
          %s272 = smul.u32 %s271, 4
          %s273 = ssub.s32 128, %s272
          %s274 = sshll.u32 %s273, 4
          %275 = vsyncadd %s263, %s274
          %p276 = scmp.ne.s32.totalorder 0, %s272
          %s277 = smul.addr %s267, 4
          %s278 = smul.addr %s29, 72
          %s279 = sadd.s32 %s277, %s278
          %s280 = smul.addr %s279, 4
          %s281 = scalar_lea.hbm %s0, %s280
          %s282 = smul.u32 %s270, 4
          %s283 = smul.u32 4, %s282
          %s284 = sshll.u32 %s281, 4
          %s285 = int_to_ptr.hbm [resolvable:$true] %s284
          %s286 = sshll.u32 %s266, 4
          %s287 = int_to_ptr.vmem [resolvable:$true] %s286
          %s288 = sshll.u32 %s283, 4
          %292 = dma.hbm_to_vmem [thread:$0]  (%p276), %s285, %s288, %s287, %s263, 64, 64, 4
        $region36: #{tpu_custom_call.1} parent=31 // pred_fallthru
          _
        // Predicated region
        $region37: #{tpu_custom_call.1} parent=31 // pred_check
          %p293 = pneg %p88
        $region38: #{tpu_custom_call.1} parent=31 // pred_check_branch
          %295 = sbr.rel (%p293) target = $region40
        $region39: #{tpu_custom_call.1} parent=31 // pred_region
          %s296 = sand.u32 %s22, 1
          %s297 = scalar_lea.sflag [#allocation7], %s296
          %s298 = sand.u32 %s78, 1
          %s299 = smul.addr %s298, 32
          %s300 = scalar_lea.vmem [#allocation6], %s299
          %s301 = sadd.s32 %s30, 1
          %s302 = smul.u32 %s301, 4
          %s303 = smul.u32 2, %s302
          %305 = vsyncadd %s297, 0
          %s306 = smul.addr %s303, 4
          %s307 = smul.addr %s29, 72
          %s308 = sadd.s32 %s306, %s307
          %s309 = smul.addr %s308, 4
          %s310 = scalar_lea.hbm %s1, %s309
          %s311 = sshll.u32 %s310, 4
          %s312 = int_to_ptr.hbm [resolvable:$true] %s311
          %s313 = sshll.u32 %s300, 4
          %s314 = int_to_ptr.vmem [resolvable:$true] %s313
          %319 = dma.hbm_to_vmem [thread:$0]  %s312, 512, %s314, %s297, 64, 64, 4
        $region40: #{tpu_custom_call.1} parent=31 // pred_fallthru
          _
      $region32: #{tpu_custom_call.1} parent=5 // pred_fallthru
        _
      %p320 = scmp.le.s32.totalorder 1, %s22
      %p321 = scmp.lt.s32.totalorder %s22, 5
      %p322 = pnand %p320, %p321
      %p323 = pneg %p322
      // Predicated region
      $region41: #{tpu_custom_call.1} parent=5 // pred_check
        _
      $region42: #{tpu_custom_call.1} parent=5 // pred_check_branch
        %325 = sbr.rel (%p322) target = $region44
      $region43: #{tpu_custom_call.1} parent=5 // pred_region
        %s326 = ssub.s32 %s22, 1
        %s327 = sand.u32 %s49, 1
        %s328 = scalar_lea.sflag [#allocation4], %s327
        %s329 = sand.u32 %s49, 1
        %s330 = smul.addr %s329, 128
        %s331 = scalar_lea.vmem [#allocation3], %s330
        // Predicated region
        $region45: #{tpu_custom_call.1} parent=43 // pred_check
          %p332 = pneg %p62
        $region46: #{tpu_custom_call.1} parent=43 // pred_check_branch
          %334 = sbr.rel (%p332) target = $region48
        $region47: #{tpu_custom_call.1} parent=43 // pred_region
          %336 = dma.done %s328, 2048
        $region48: #{tpu_custom_call.1} parent=43 // pred_fallthru
          _
        %s337 = sand.u32 %s27, 1
        %s338 = scalar_lea.sflag [#allocation7], %s337
        %s339 = sand.u32 %s81, 1
        %s340 = smul.addr %s339, 32
        %s341 = scalar_lea.vmem [#allocation6], %s340
        // Predicated region
        $region49: #{tpu_custom_call.1} parent=43 // pred_check
          %p342 = pneg %p94
        $region50: #{tpu_custom_call.1} parent=43 // pred_check_branch
          %344 = sbr.rel (%p342) target = $region52
        $region51: #{tpu_custom_call.1} parent=43 // pred_region
          %346 = dma.done %s338, 512
        $region52: #{tpu_custom_call.1} parent=43 // pred_fallthru
          _
        // Predicated region
        $region53: #{tpu_custom_call.1} parent=43 // pred_check
          %p347 = pneg %p115
        $region54: #{tpu_custom_call.1} parent=43 // pred_check_branch
          %349 = sbr.rel (%p347) target = $region56
        $region55: #{tpu_custom_call.1} parent=43 // pred_region
          %351 = dma.done [#allocation7], 1024
        $region56: #{tpu_custom_call.1} parent=43 // pred_fallthru
          _
        // Predicated region
        $region57: #{tpu_custom_call.1} parent=43 // pred_check
          %p352 = pneg %p157
        $region58: #{tpu_custom_call.1} parent=43 // pred_check_branch
          %354 = sbr.rel (%p352) target = $region60
        $region59: #{tpu_custom_call.1} parent=43 // pred_region
          %356 = dma.done [#allocation10], 9216
        $region60: #{tpu_custom_call.1} parent=43 // pred_fallthru
          _
        %s357 = sand.u32 %s49, 1
        %s358 = scalar_lea.sflag [#allocation4], %s357
        %s359 = sand.u32 %s49, 1
        %s360 = smul.addr %s359, 128
        %s361 = scalar_lea.vmem [#allocation3], %s360
        %p362 = pneg %p62
        %p363 = pneg %p59
        %s364 = sand.u32 %s27, 1
        %s365 = scalar_lea.sflag [#allocation7], %s364
        %s366 = sand.u32 %s81, 1
        %s367 = smul.addr %s366, 32
        %s368 = scalar_lea.vmem [#allocation6], %s367
        %p369 = pneg %p94
        %p370 = pneg %p91
        %p371 = pneg %p115
        %p372 = pneg %p112
        %p373 = pneg %p136
        %p374 = pneg %p133
        %p375 = pneg %p157
        %p376 = pneg %p154
        %p377 = pneg %p178
        %p378 = pneg %p175
        %p379 = pneg %p206
        %p380 = pneg %p203
        %s381 = sand.u32 %s193, 1
        %s382 = scalar_lea.sflag [#allocation5], %s381
        %s383 = sand.u32 %s193, 1
        %s384 = smul.addr %s383, 64
        %s385 = scalar_lea.vmem [#allocation11], %s384
        %s386 = smul.u32 8, %s32
        %s387 = ssub.s32 18, %s386
        %p388 = scmp.lt.s32.totalorder %s387, 8
        %s389 = scalar_select %p388, %s387, 8
        %s390 = smul.u32 4, %s389
        %s391 = smul.u32 %s390, 4
        %s392 = sadd.s32 %s32, 1
        %s393 = smul.u32 %s392, 4
        %s394 = smul.u32 2, %s393
        %s395 = smul.u32 16, %s32
        %v396 = vld [vmem:[%s331] sm:$0xf]
        %v397 = vld [vmem:[%s331 + $0x4] sm:$0xf]
        %v398 = vld [vmem:[%s331 + $0x8] sm:$0xf]
        %v399 = vld [vmem:[%s331 + $0xc] sm:$0xf]
        %v400 = vld [vmem:[%s331 + $0x10] sm:$0xf]
        %v401 = vld [vmem:[%s331 + $0x14] sm:$0xf]
        %v402 = vld [vmem:[%s331 + $0x18] sm:$0xf]
        %v403 = vld [vmem:[%s331 + $0x1c] sm:$0xf]
        %v404 = vld [vmem:[%s331 + $0x20] sm:$0xf]
        %v405 = vld [vmem:[%s331 + $0x24] sm:$0xf]
        %v406 = vld [vmem:[%s331 + $0x28] sm:$0xf]
        %v407 = vld [vmem:[%s331 + $0x2c] sm:$0xf]
        %v408 = vld [vmem:[%s331 + $0x30] sm:$0xf]
        %v409 = vld [vmem:[%s331 + $0x34] sm:$0xf]
        %v410 = vld [vmem:[%s331 + $0x38] sm:$0xf]
        %v411 = vld [vmem:[%s331 + $0x3c] sm:$0xf]
        %v412 = vld [vmem:[%s331 + $0x40] sm:$0xf]
        %v413 = vld [vmem:[%s331 + $0x44] sm:$0xf]
        %v414 = vld [vmem:[%s331 + $0x48] sm:$0xf]
        %v415 = vld [vmem:[%s331 + $0x4c] sm:$0xf]
        %v416 = vld [vmem:[%s331 + $0x50] sm:$0xf]
        %v417 = vld [vmem:[%s331 + $0x54] sm:$0xf]
        %v418 = vld [vmem:[%s331 + $0x58] sm:$0xf]
        %v419 = vld [vmem:[%s331 + $0x5c] sm:$0xf]
        %v420 = vld [vmem:[%s331 + $0x60] sm:$0xf]
        %v421 = vld [vmem:[%s331 + $0x64] sm:$0xf]
        %v422 = vld [vmem:[%s331 + $0x68] sm:$0xf]
        %v423 = vld [vmem:[%s331 + $0x6c] sm:$0xf]
        %v424 = vld [vmem:[%s331 + $0x70] sm:$0xf]
        %v425 = vld [vmem:[%s331 + $0x74] sm:$0xf]
        %v426 = vld [vmem:[%s331 + $0x78] sm:$0xf]
        %v427 = vld [vmem:[%s331 + $0x7c] sm:$0xf]
        %s428 = smul.u32 %s32, 8
        %v429 = vld [vmem:[#allocation8] sm:$0xf]
        %v430 = vld [vmem:[#allocation8 + $0x4] sm:$0xf]
        %v431 = vld [vmem:[#allocation8 + $0x8] sm:$0xf]
        %v432 = vld [vmem:[#allocation8 + $0xc] sm:$0xf]
        %v433 = vld [vmem:[#allocation8 + $0x10] sm:$0xf]
        %v434 = vld [vmem:[#allocation8 + $0x14] sm:$0xf]
        %v435 = vld [vmem:[#allocation8 + $0x18] sm:$0xf]
        %v436 = vld [vmem:[#allocation8 + $0x1c] sm:$0xf]
        %v437 = vld [vmem:[#allocation8 + $0x20] sm:$0xf]
        %v438 = vld [vmem:[#allocation8 + $0x24] sm:$0xf]
        %v439 = vld [vmem:[#allocation8 + $0x28] sm:$0xf]
        %v440 = vld [vmem:[#allocation8 + $0x2c] sm:$0xf]
        %v441 = vld [vmem:[#allocation8 + $0x30] sm:$0xf]
        %v442 = vld [vmem:[#allocation8 + $0x34] sm:$0xf]
        %v443 = vld [vmem:[#allocation8 + $0x38] sm:$0xf]
        %v444 = vld [vmem:[#allocation8 + $0x3c] sm:$0xf]
        %v445 = vld [vmem:[%s3] sm:$0x1]
        %v447 = vperm.slane %v445, 0
        %v481 = vunpack.c.l.b16 %v396
        %v482 = vunpack.c.l.b16 %v397
        %v483 = vunpack.c.l.b16 %v398
        %v484 = vunpack.c.l.b16 %v399
        %v485 = vunpack.c.l.b16 %v400
        %v486 = vunpack.c.l.b16 %v401
        %v487 = vunpack.c.l.b16 %v402
        %v488 = vunpack.c.l.b16 %v403
        %v489 = vunpack.c.l.b16 %v404
        %v490 = vunpack.c.l.b16 %v405
        %v491 = vunpack.c.l.b16 %v406
        %v492 = vunpack.c.l.b16 %v407
        %v493 = vunpack.c.l.b16 %v408
        %v494 = vunpack.c.l.b16 %v409
        %v495 = vunpack.c.l.b16 %v410
        %v496 = vunpack.c.l.b16 %v411
        %v497 = vunpack.c.l.b16 %v412
        %v498 = vunpack.c.l.b16 %v413
        %v499 = vunpack.c.l.b16 %v414
        %v500 = vunpack.c.l.b16 %v415
        %v501 = vunpack.c.l.b16 %v416
        %v502 = vunpack.c.l.b16 %v417
        %v503 = vunpack.c.l.b16 %v418
        %v504 = vunpack.c.l.b16 %v419
        %v505 = vunpack.c.l.b16 %v420
        %v506 = vunpack.c.l.b16 %v421
        %v507 = vunpack.c.l.b16 %v422
        %v508 = vunpack.c.l.b16 %v423
        %v509 = vunpack.c.l.b16 %v424
        %v510 = vunpack.c.l.b16 %v425
        %v511 = vunpack.c.l.b16 %v426
        %v512 = vunpack.c.l.b16 %v427
        %v513 = vpack.c.b16 %v482, %v481
        %v514 = vpack.c.b16 %v484, %v483
        %v515 = vpack.c.b16 %v486, %v485
        %v516 = vpack.c.b16 %v488, %v487
        %v517 = vpack.c.b16 %v490, %v489
        %v518 = vpack.c.b16 %v492, %v491
        %v519 = vpack.c.b16 %v494, %v493
        %v520 = vpack.c.b16 %v496, %v495
        %v521 = vpack.c.b16 %v498, %v497
        %v522 = vpack.c.b16 %v500, %v499
        %v523 = vpack.c.b16 %v502, %v501
        %v524 = vpack.c.b16 %v504, %v503
        %v525 = vpack.c.b16 %v506, %v505
        %v526 = vpack.c.b16 %v508, %v507
        %v527 = vpack.c.b16 %v510, %v509
        %v528 = vpack.c.b16 %v512, %v511
        %v561 = vunpack.c.l.b16 %v429
        %v562 = vunpack.c.l.b16 %v430
        %v563 = vunpack.c.l.b16 %v431
        %v564 = vunpack.c.l.b16 %v432
        %v565 = vunpack.c.l.b16 %v433
        %v566 = vunpack.c.l.b16 %v434
        %v567 = vunpack.c.l.b16 %v435
        %v568 = vunpack.c.l.b16 %v436
        %v569 = vunpack.c.l.b16 %v437
        %v570 = vunpack.c.l.b16 %v438
        %v571 = vunpack.c.l.b16 %v439
        %v572 = vunpack.c.l.b16 %v440
        %v573 = vunpack.c.l.b16 %v441
        %v574 = vunpack.c.l.b16 %v442
        %v575 = vunpack.c.l.b16 %v443
        %v576 = vunpack.c.l.b16 %v444
        %v577 = vpack.c.b16 %v562, %v561
        %v578 = vpack.c.b16 %v564, %v563
        %v579 = vpack.c.b16 %v566, %v565
        %v580 = vpack.c.b16 %v568, %v567
        %v581 = vpack.c.b16 %v570, %v569
        %v582 = vpack.c.b16 %v572, %v571
        %v583 = vpack.c.b16 %v574, %v573
        %v584 = vpack.c.b16 %v576, %v575
        %593 = vmatpush.bf16.msra.mxu0 %v584
        %594 = vmatpush.bf16.msra.mxu0 %v583
        %595 = vmatpush.bf16.msra.mxu0 %v582
        %596 = vmatpush.bf16.msra.mxu0 %v581
        %597 = vmatpush.bf16.msra.mxu0 %v580
        %598 = vmatpush.bf16.msra.mxu0 %v579
        %599 = vmatpush.bf16.msra.mxu0 %v578
        %600 = vmatpush.bf16.msra.mxu0 %v577
        %601 = vmatmul.bf16.gmra.mxu0 %v513
        %v602 = vpop.f32.mrf.mxu0
        %v603 = vadd.f32 %v447, %v602
        %v604 = vpop.f32.mrf.mxu0
        %v605 = vadd.f32 %v447, %v604
        %606 = vmatmul.bf16.gmra.mxu0 %v514
        %v607 = vpop.f32.mrf.mxu0
        %v608 = vadd.f32 %v447, %v607
        %v609 = vpop.f32.mrf.mxu0
        %v610 = vadd.f32 %v447, %v609
        %611 = vmatmul.bf16.gmra.mxu0 %v515
        %v612 = vpop.f32.mrf.mxu0
        %v613 = vadd.f32 %v447, %v612
        %v614 = vpop.f32.mrf.mxu0
        %v615 = vadd.f32 %v447, %v614
        %616 = vmatmul.bf16.gmra.mxu0 %v516
        %v617 = vpop.f32.mrf.mxu0
        %v618 = vadd.f32 %v447, %v617
        %v619 = vpop.f32.mrf.mxu0
        %v620 = vadd.f32 %v447, %v619
        %621 = vmatmul.bf16.gmra.mxu0 %v517
        %v622 = vpop.f32.mrf.mxu0
        %v623 = vadd.f32 %v447, %v622
        %v624 = vpop.f32.mrf.mxu0
        %v625 = vadd.f32 %v447, %v624
        %626 = vmatmul.bf16.gmra.mxu0 %v518
        %v627 = vpop.f32.mrf.mxu0
        %v628 = vadd.f32 %v447, %v627
        %v629 = vpop.f32.mrf.mxu0
        %v630 = vadd.f32 %v447, %v629
        %631 = vmatmul.bf16.gmra.mxu0 %v519
        %v632 = vpop.f32.mrf.mxu0
        %v633 = vadd.f32 %v447, %v632
        %v634 = vpop.f32.mrf.mxu0
        %v635 = vadd.f32 %v447, %v634
        %636 = vmatmul.bf16.gmra.mxu0 %v520
        %v637 = vpop.f32.mrf.mxu0
        %v638 = vadd.f32 %v447, %v637
        %v639 = vpop.f32.mrf.mxu0
        %v640 = vadd.f32 %v447, %v639
        %641 = vmatmul.bf16.gmra.mxu0 %v521
        %v642 = vpop.f32.mrf.mxu0
        %v643 = vadd.f32 %v447, %v642
        %v644 = vpop.f32.mrf.mxu0
        %v645 = vadd.f32 %v447, %v644
        %646 = vmatmul.bf16.gmra.mxu0 %v522
        %v647 = vpop.f32.mrf.mxu0
        %v648 = vadd.f32 %v447, %v647
        %v649 = vpop.f32.mrf.mxu0
        %v650 = vadd.f32 %v447, %v649
        %651 = vmatmul.bf16.gmra.mxu0 %v523
        %v652 = vpop.f32.mrf.mxu0
        %v653 = vadd.f32 %v447, %v652
        %v654 = vpop.f32.mrf.mxu0
        %v655 = vadd.f32 %v447, %v654
        %656 = vmatmul.bf16.gmra.mxu0 %v524
        %v657 = vpop.f32.mrf.mxu0
        %v658 = vadd.f32 %v447, %v657
        %v659 = vpop.f32.mrf.mxu0
        %v660 = vadd.f32 %v447, %v659
        %661 = vmatmul.bf16.gmra.mxu0 %v525
        %v662 = vpop.f32.mrf.mxu0
        %v663 = vadd.f32 %v447, %v662
        %v664 = vpop.f32.mrf.mxu0
        %v665 = vadd.f32 %v447, %v664
        %666 = vmatmul.bf16.gmra.mxu0 %v526
        %v667 = vpop.f32.mrf.mxu0
        %v668 = vadd.f32 %v447, %v667
        %v669 = vpop.f32.mrf.mxu0
        %v670 = vadd.f32 %v447, %v669
        %671 = vmatmul.bf16.gmra.mxu0 %v527
        %v672 = vpop.f32.mrf.mxu0
        %v673 = vadd.f32 %v447, %v672
        %v674 = vpop.f32.mrf.mxu0
        %v675 = vadd.f32 %v447, %v674
        %676 = vmatmul.bf16.gmra.mxu0 %v528
        %v677 = vpop.f32.mrf.mxu0
        %v678 = vadd.f32 %v447, %v677
        %v679 = vpop.f32.mrf.mxu0
        %v680 = vadd.f32 %v447, %v679
        %681 = vdwg.mxu0
        %v682 = vxor.u32 %v603, 2147483648
        %v683 = vxor.u32 %v605, 2147483648
        %v684 = vxor.u32 %v608, 2147483648
        %v685 = vxor.u32 %v610, 2147483648
        %v686 = vxor.u32 %v613, 2147483648
        %v687 = vxor.u32 %v615, 2147483648
        %v688 = vxor.u32 %v618, 2147483648
        %v689 = vxor.u32 %v620, 2147483648
        %v690 = vxor.u32 %v623, 2147483648
        %v691 = vxor.u32 %v625, 2147483648
        %v692 = vxor.u32 %v628, 2147483648
        %v693 = vxor.u32 %v630, 2147483648
        %v694 = vxor.u32 %v633, 2147483648
        %v695 = vxor.u32 %v635, 2147483648
        %v696 = vxor.u32 %v638, 2147483648
        %v697 = vxor.u32 %v640, 2147483648
        %v698 = vxor.u32 %v643, 2147483648
        %v699 = vxor.u32 %v645, 2147483648
        %v700 = vxor.u32 %v648, 2147483648
        %v701 = vxor.u32 %v650, 2147483648
        %v702 = vxor.u32 %v653, 2147483648
        %v703 = vxor.u32 %v655, 2147483648
        %v704 = vxor.u32 %v658, 2147483648
        %v705 = vxor.u32 %v660, 2147483648
        %v706 = vxor.u32 %v663, 2147483648
        %v707 = vxor.u32 %v665, 2147483648
        %v708 = vxor.u32 %v668, 2147483648
        %v709 = vxor.u32 %v670, 2147483648
        %v710 = vxor.u32 %v673, 2147483648
        %v711 = vxor.u32 %v675, 2147483648
        %v712 = vxor.u32 %v678, 2147483648
        %v713 = vxor.u32 %v680, 2147483648
        %v714 = vmul.f32 %v682, 1.442695
        %v715 = vpow.pop %v714
        %v716 = vmul.f32 %v683, 1.442695
        %v717 = vpow.pop %v716
        %v718 = vmul.f32 %v684, 1.442695
        %v719 = vpow.pop %v718
        %v720 = vmul.f32 %v685, 1.442695
        %v721 = vpow.pop %v720
        %v722 = vmul.f32 %v686, 1.442695
        %v723 = vpow.pop %v722
        %v724 = vmul.f32 %v687, 1.442695
        %v725 = vpow.pop %v724
        %v726 = vmul.f32 %v688, 1.442695
        %v727 = vpow.pop %v726
        %v728 = vmul.f32 %v689, 1.442695
        %v729 = vpow.pop %v728
        %v730 = vmul.f32 %v690, 1.442695
        %v731 = vpow.pop %v730
        %v732 = vmul.f32 %v691, 1.442695
        %v733 = vpow.pop %v732
        %v734 = vmul.f32 %v692, 1.442695
        %v735 = vpow.pop %v734
        %v736 = vmul.f32 %v693, 1.442695
        %v737 = vpow.pop %v736
        %v738 = vmul.f32 %v694, 1.442695
        %v739 = vpow.pop %v738
        %v740 = vmul.f32 %v695, 1.442695
        %v741 = vpow.pop %v740
        %v742 = vmul.f32 %v696, 1.442695
        %v743 = vpow.pop %v742
        %v744 = vmul.f32 %v697, 1.442695
        %v745 = vpow.pop %v744
        %v746 = vmul.f32 %v698, 1.442695
        %v747 = vpow.pop %v746
        %v748 = vmul.f32 %v699, 1.442695
        %v749 = vpow.pop %v748
        %v750 = vmul.f32 %v700, 1.442695
        %v751 = vpow.pop %v750
        %v752 = vmul.f32 %v701, 1.442695
        %v753 = vpow.pop %v752
        %v754 = vmul.f32 %v702, 1.442695
        %v755 = vpow.pop %v754
        %v756 = vmul.f32 %v703, 1.442695
        %v757 = vpow.pop %v756
        %v758 = vmul.f32 %v704, 1.442695
        %v759 = vpow.pop %v758
        %v760 = vmul.f32 %v705, 1.442695
        %v761 = vpow.pop %v760
        %v762 = vmul.f32 %v706, 1.442695
        %v763 = vpow.pop %v762
        %v764 = vmul.f32 %v707, 1.442695
        %v765 = vpow.pop %v764
        %v766 = vmul.f32 %v708, 1.442695
        %v767 = vpow.pop %v766
        %v768 = vmul.f32 %v709, 1.442695
        %v769 = vpow.pop %v768
        %v770 = vmul.f32 %v710, 1.442695
        %v771 = vpow.pop %v770
        %v772 = vmul.f32 %v711, 1.442695
        %v773 = vpow.pop %v772
        %v774 = vmul.f32 %v712, 1.442695
        %v775 = vpow.pop %v774
        %v776 = vmul.f32 %v713, 1.442695
        %v777 = vpow.pop %v776
        %v778 = vadd.f32 %v715, 1.0
        %v779 = vadd.f32 %v717, 1.0
        %v780 = vadd.f32 %v719, 1.0
        %v781 = vadd.f32 %v721, 1.0
        %v782 = vadd.f32 %v723, 1.0
        %v783 = vadd.f32 %v725, 1.0
        %v784 = vadd.f32 %v727, 1.0
        %v785 = vadd.f32 %v729, 1.0
        %v786 = vadd.f32 %v731, 1.0
        %v787 = vadd.f32 %v733, 1.0
        %v788 = vadd.f32 %v735, 1.0
        %v789 = vadd.f32 %v737, 1.0
        %v790 = vadd.f32 %v739, 1.0
        %v791 = vadd.f32 %v741, 1.0
        %v792 = vadd.f32 %v743, 1.0
        %v793 = vadd.f32 %v745, 1.0
        %v794 = vadd.f32 %v747, 1.0
        %v795 = vadd.f32 %v749, 1.0
        %v796 = vadd.f32 %v751, 1.0
        %v797 = vadd.f32 %v753, 1.0
        %v798 = vadd.f32 %v755, 1.0
        %v799 = vadd.f32 %v757, 1.0
        %v800 = vadd.f32 %v759, 1.0
        %v801 = vadd.f32 %v761, 1.0
        %v802 = vadd.f32 %v763, 1.0
        %v803 = vadd.f32 %v765, 1.0
        %v804 = vadd.f32 %v767, 1.0
        %v805 = vadd.f32 %v769, 1.0
        %v806 = vadd.f32 %v771, 1.0
        %v807 = vadd.f32 %v773, 1.0
        %v808 = vadd.f32 %v775, 1.0
        %v809 = vadd.f32 %v777, 1.0
        %v810 = vrcp.pop %v778
        %v811 = vmul.f32 %v778, %v810
        %v812 = vsub.f32 1.0, %v811
        %v813 = vmul.f32 %v810, %v812
        %v814 = vadd.f32 %v810, %v813
        %vm815 = vweird.f32 %v778
        %vm816 = vweird.f32 %v810
        %vm817 = vmor %vm815, %vm816
        %v818 = vsel %vm817, %v810, %v814
        %v819 = vand.u32 2147483647, %v778
        %vm820 = vcmp.eq.f32.partialorder %v819, 8.507059e+37
        %v821 = vand.u32 %v778, 2147483648
        %v822 = vor.u32 1.1754944e-38, %v821
        %v823 = vsel %vm820, %v822, %v818
        %v824 = vmul.f32 1.0, %v823
        %v825 = vrcp.pop %v779
        %v826 = vmul.f32 %v779, %v825
        %v827 = vsub.f32 1.0, %v826
        %v828 = vmul.f32 %v825, %v827
        %v829 = vadd.f32 %v825, %v828
        %vm830 = vweird.f32 %v779
        %vm831 = vweird.f32 %v825
        %vm832 = vmor %vm830, %vm831
        %v833 = vsel %vm832, %v825, %v829
        %v834 = vand.u32 2147483647, %v779
        %vm835 = vcmp.eq.f32.partialorder %v834, 8.507059e+37
        %v836 = vand.u32 %v779, 2147483648
        %v837 = vor.u32 1.1754944e-38, %v836
        %v838 = vsel %vm835, %v837, %v833
        %v839 = vmul.f32 1.0, %v838
        %v840 = vrcp.pop %v780
        %v841 = vmul.f32 %v780, %v840
        %v842 = vsub.f32 1.0, %v841
        %v843 = vmul.f32 %v840, %v842
        %v844 = vadd.f32 %v840, %v843
        %vm845 = vweird.f32 %v780
        %vm846 = vweird.f32 %v840
        %vm847 = vmor %vm845, %vm846
        %v848 = vsel %vm847, %v840, %v844
        %v849 = vand.u32 2147483647, %v780
        %vm850 = vcmp.eq.f32.partialorder %v849, 8.507059e+37
        %v851 = vand.u32 %v780, 2147483648
        %v852 = vor.u32 1.1754944e-38, %v851
        %v853 = vsel %vm850, %v852, %v848
        %v854 = vmul.f32 1.0, %v853
        %v855 = vrcp.pop %v781
        %v856 = vmul.f32 %v781, %v855
        %v857 = vsub.f32 1.0, %v856
        %v858 = vmul.f32 %v855, %v857
        %v859 = vadd.f32 %v855, %v858
        %vm860 = vweird.f32 %v781
        %vm861 = vweird.f32 %v855
        %vm862 = vmor %vm860, %vm861
        %v863 = vsel %vm862, %v855, %v859
        %v864 = vand.u32 2147483647, %v781
        %vm865 = vcmp.eq.f32.partialorder %v864, 8.507059e+37
        %v866 = vand.u32 %v781, 2147483648
        %v867 = vor.u32 1.1754944e-38, %v866
        %v868 = vsel %vm865, %v867, %v863
        %v869 = vmul.f32 1.0, %v868
        %v870 = vrcp.pop %v782
        %v871 = vmul.f32 %v782, %v870
        %v872 = vsub.f32 1.0, %v871
        %v873 = vmul.f32 %v870, %v872
        %v874 = vadd.f32 %v870, %v873
        %vm875 = vweird.f32 %v782
        %vm876 = vweird.f32 %v870
        %vm877 = vmor %vm875, %vm876
        %v878 = vsel %vm877, %v870, %v874
        %v879 = vand.u32 2147483647, %v782
        %vm880 = vcmp.eq.f32.partialorder %v879, 8.507059e+37
        %v881 = vand.u32 %v782, 2147483648
        %v882 = vor.u32 1.1754944e-38, %v881
        %v883 = vsel %vm880, %v882, %v878
        %v884 = vmul.f32 1.0, %v883
        %v885 = vrcp.pop %v783
        %v886 = vmul.f32 %v783, %v885
        %v887 = vsub.f32 1.0, %v886
        %v888 = vmul.f32 %v885, %v887
        %v889 = vadd.f32 %v885, %v888
        %vm890 = vweird.f32 %v783
        %vm891 = vweird.f32 %v885
        %vm892 = vmor %vm890, %vm891
        %v893 = vsel %vm892, %v885, %v889
        %v894 = vand.u32 2147483647, %v783
        %vm895 = vcmp.eq.f32.partialorder %v894, 8.507059e+37
        %v896 = vand.u32 %v783, 2147483648
        %v897 = vor.u32 1.1754944e-38, %v896
        %v898 = vsel %vm895, %v897, %v893
        %v899 = vmul.f32 1.0, %v898
        %v900 = vrcp.pop %v784
        %v901 = vmul.f32 %v784, %v900
        %v902 = vsub.f32 1.0, %v901
        %v903 = vmul.f32 %v900, %v902
        %v904 = vadd.f32 %v900, %v903
        %vm905 = vweird.f32 %v784
        %vm906 = vweird.f32 %v900
        %vm907 = vmor %vm905, %vm906
        %v908 = vsel %vm907, %v900, %v904
        %v909 = vand.u32 2147483647, %v784
        %vm910 = vcmp.eq.f32.partialorder %v909, 8.507059e+37
        %v911 = vand.u32 %v784, 2147483648
        %v912 = vor.u32 1.1754944e-38, %v911
        %v913 = vsel %vm910, %v912, %v908
        %v914 = vmul.f32 1.0, %v913
        %v915 = vrcp.pop %v785
        %v916 = vmul.f32 %v785, %v915
        %v917 = vsub.f32 1.0, %v916
        %v918 = vmul.f32 %v915, %v917
        %v919 = vadd.f32 %v915, %v918
        %vm920 = vweird.f32 %v785
        %vm921 = vweird.f32 %v915
        %vm922 = vmor %vm920, %vm921
        %v923 = vsel %vm922, %v915, %v919
        %v924 = vand.u32 2147483647, %v785
        %vm925 = vcmp.eq.f32.partialorder %v924, 8.507059e+37
        %v926 = vand.u32 %v785, 2147483648
        %v927 = vor.u32 1.1754944e-38, %v926
        %v928 = vsel %vm925, %v927, %v923
        %v929 = vmul.f32 1.0, %v928
        %v930 = vrcp.pop %v786
        %v931 = vmul.f32 %v786, %v930
        %v932 = vsub.f32 1.0, %v931
        %v933 = vmul.f32 %v930, %v932
        %v934 = vadd.f32 %v930, %v933
        %vm935 = vweird.f32 %v786
        %vm936 = vweird.f32 %v930
        %vm937 = vmor %vm935, %vm936
        %v938 = vsel %vm937, %v930, %v934
        %v939 = vand.u32 2147483647, %v786
        %vm940 = vcmp.eq.f32.partialorder %v939, 8.507059e+37
        %v941 = vand.u32 %v786, 2147483648
        %v942 = vor.u32 1.1754944e-38, %v941
        %v943 = vsel %vm940, %v942, %v938
        %v944 = vmul.f32 1.0, %v943
        %v945 = vrcp.pop %v787
        %v946 = vmul.f32 %v787, %v945
        %v947 = vsub.f32 1.0, %v946
        %v948 = vmul.f32 %v945, %v947
        %v949 = vadd.f32 %v945, %v948
        %vm950 = vweird.f32 %v787
        %vm951 = vweird.f32 %v945
        %vm952 = vmor %vm950, %vm951
        %v953 = vsel %vm952, %v945, %v949
        %v954 = vand.u32 2147483647, %v787
        %vm955 = vcmp.eq.f32.partialorder %v954, 8.507059e+37
        %v956 = vand.u32 %v787, 2147483648
        %v957 = vor.u32 1.1754944e-38, %v956
        %v958 = vsel %vm955, %v957, %v953
        %v959 = vmul.f32 1.0, %v958
        %v960 = vrcp.pop %v788
        %v961 = vmul.f32 %v788, %v960
        %v962 = vsub.f32 1.0, %v961
        %v963 = vmul.f32 %v960, %v962
        %v964 = vadd.f32 %v960, %v963
        %vm965 = vweird.f32 %v788
        %vm966 = vweird.f32 %v960
        %vm967 = vmor %vm965, %vm966
        %v968 = vsel %vm967, %v960, %v964
        %v969 = vand.u32 2147483647, %v788
        %vm970 = vcmp.eq.f32.partialorder %v969, 8.507059e+37
        %v971 = vand.u32 %v788, 2147483648
        %v972 = vor.u32 1.1754944e-38, %v971
        %v973 = vsel %vm970, %v972, %v968
        %v974 = vmul.f32 1.0, %v973
        %v975 = vrcp.pop %v789
        %v976 = vmul.f32 %v789, %v975
        %v977 = vsub.f32 1.0, %v976
        %v978 = vmul.f32 %v975, %v977
        %v979 = vadd.f32 %v975, %v978
        %vm980 = vweird.f32 %v789
        %vm981 = vweird.f32 %v975
        %vm982 = vmor %vm980, %vm981
        %v983 = vsel %vm982, %v975, %v979
        %v984 = vand.u32 2147483647, %v789
        %vm985 = vcmp.eq.f32.partialorder %v984, 8.507059e+37
        %v986 = vand.u32 %v789, 2147483648
        %v987 = vor.u32 1.1754944e-38, %v986
        %v988 = vsel %vm985, %v987, %v983
        %v989 = vmul.f32 1.0, %v988
        %v990 = vrcp.pop %v790
        %v991 = vmul.f32 %v790, %v990
        %v992 = vsub.f32 1.0, %v991
        %v993 = vmul.f32 %v990, %v992
        %v994 = vadd.f32 %v990, %v993
        %vm995 = vweird.f32 %v790
        %vm996 = vweird.f32 %v990
        %vm997 = vmor %vm995, %vm996
        %v998 = vsel %vm997, %v990, %v994
        %v999 = vand.u32 2147483647, %v790
        %vm1000 = vcmp.eq.f32.partialorder %v999, 8.507059e+37
        %v1001 = vand.u32 %v790, 2147483648
        %v1002 = vor.u32 1.1754944e-38, %v1001
        %v1003 = vsel %vm1000, %v1002, %v998
        %v1004 = vmul.f32 1.0, %v1003
        %v1005 = vrcp.pop %v791
        %v1006 = vmul.f32 %v791, %v1005
        %v1007 = vsub.f32 1.0, %v1006
        %v1008 = vmul.f32 %v1005, %v1007
        %v1009 = vadd.f32 %v1005, %v1008
        %vm1010 = vweird.f32 %v791
        %vm1011 = vweird.f32 %v1005
        %vm1012 = vmor %vm1010, %vm1011
        %v1013 = vsel %vm1012, %v1005, %v1009
        %v1014 = vand.u32 2147483647, %v791
        %vm1015 = vcmp.eq.f32.partialorder %v1014, 8.507059e+37
        %v1016 = vand.u32 %v791, 2147483648
        %v1017 = vor.u32 1.1754944e-38, %v1016
        %v1018 = vsel %vm1015, %v1017, %v1013
        %v1019 = vmul.f32 1.0, %v1018
        %v1020 = vrcp.pop %v792
        %v1021 = vmul.f32 %v792, %v1020
        %v1022 = vsub.f32 1.0, %v1021
        %v1023 = vmul.f32 %v1020, %v1022
        %v1024 = vadd.f32 %v1020, %v1023
        %vm1025 = vweird.f32 %v792
        %vm1026 = vweird.f32 %v1020
        %vm1027 = vmor %vm1025, %vm1026
        %v1028 = vsel %vm1027, %v1020, %v1024
        %v1029 = vand.u32 2147483647, %v792
        %vm1030 = vcmp.eq.f32.partialorder %v1029, 8.507059e+37
        %v1031 = vand.u32 %v792, 2147483648
        %v1032 = vor.u32 1.1754944e-38, %v1031
        %v1033 = vsel %vm1030, %v1032, %v1028
        %v1034 = vmul.f32 1.0, %v1033
        %v1035 = vrcp.pop %v793
        %v1036 = vmul.f32 %v793, %v1035
        %v1037 = vsub.f32 1.0, %v1036
        %v1038 = vmul.f32 %v1035, %v1037
        %v1039 = vadd.f32 %v1035, %v1038
        %vm1040 = vweird.f32 %v793
        %vm1041 = vweird.f32 %v1035
        %vm1042 = vmor %vm1040, %vm1041
        %v1043 = vsel %vm1042, %v1035, %v1039
        %v1044 = vand.u32 2147483647, %v793
        %vm1045 = vcmp.eq.f32.partialorder %v1044, 8.507059e+37
        %v1046 = vand.u32 %v793, 2147483648
        %v1047 = vor.u32 1.1754944e-38, %v1046
        %v1048 = vsel %vm1045, %v1047, %v1043
        %v1049 = vmul.f32 1.0, %v1048
        %v1050 = vrcp.pop %v794
        %v1051 = vmul.f32 %v794, %v1050
        %v1052 = vsub.f32 1.0, %v1051
        %v1053 = vmul.f32 %v1050, %v1052
        %v1054 = vadd.f32 %v1050, %v1053
        %vm1055 = vweird.f32 %v794
        %vm1056 = vweird.f32 %v1050
        %vm1057 = vmor %vm1055, %vm1056
        %v1058 = vsel %vm1057, %v1050, %v1054
        %v1059 = vand.u32 2147483647, %v794
        %vm1060 = vcmp.eq.f32.partialorder %v1059, 8.507059e+37
        %v1061 = vand.u32 %v794, 2147483648
        %v1062 = vor.u32 1.1754944e-38, %v1061
        %v1063 = vsel %vm1060, %v1062, %v1058
        %v1064 = vmul.f32 1.0, %v1063
        %v1065 = vrcp.pop %v795
        %v1066 = vmul.f32 %v795, %v1065
        %v1067 = vsub.f32 1.0, %v1066
        %v1068 = vmul.f32 %v1065, %v1067
        %v1069 = vadd.f32 %v1065, %v1068
        %vm1070 = vweird.f32 %v795
        %vm1071 = vweird.f32 %v1065
        %vm1072 = vmor %vm1070, %vm1071
        %v1073 = vsel %vm1072, %v1065, %v1069
        %v1074 = vand.u32 2147483647, %v795
        %vm1075 = vcmp.eq.f32.partialorder %v1074, 8.507059e+37
        %v1076 = vand.u32 %v795, 2147483648
        %v1077 = vor.u32 1.1754944e-38, %v1076
        %v1078 = vsel %vm1075, %v1077, %v1073
        %v1079 = vmul.f32 1.0, %v1078
        %v1080 = vrcp.pop %v796
        %v1081 = vmul.f32 %v796, %v1080
        %v1082 = vsub.f32 1.0, %v1081
        %v1083 = vmul.f32 %v1080, %v1082
        %v1084 = vadd.f32 %v1080, %v1083
        %vm1085 = vweird.f32 %v796
        %vm1086 = vweird.f32 %v1080
        %vm1087 = vmor %vm1085, %vm1086
        %v1088 = vsel %vm1087, %v1080, %v1084
        %v1089 = vand.u32 2147483647, %v796
        %vm1090 = vcmp.eq.f32.partialorder %v1089, 8.507059e+37
        %v1091 = vand.u32 %v796, 2147483648
        %v1092 = vor.u32 1.1754944e-38, %v1091
        %v1093 = vsel %vm1090, %v1092, %v1088
        %v1094 = vmul.f32 1.0, %v1093
        %v1095 = vrcp.pop %v797
        %v1096 = vmul.f32 %v797, %v1095
        %v1097 = vsub.f32 1.0, %v1096
        %v1098 = vmul.f32 %v1095, %v1097
        %v1099 = vadd.f32 %v1095, %v1098
        %vm1100 = vweird.f32 %v797
        %vm1101 = vweird.f32 %v1095
        %vm1102 = vmor %vm1100, %vm1101
        %v1103 = vsel %vm1102, %v1095, %v1099
        %v1104 = vand.u32 2147483647, %v797
        %vm1105 = vcmp.eq.f32.partialorder %v1104, 8.507059e+37
        %v1106 = vand.u32 %v797, 2147483648
        %v1107 = vor.u32 1.1754944e-38, %v1106
        %v1108 = vsel %vm1105, %v1107, %v1103
        %v1109 = vmul.f32 1.0, %v1108
        %v1110 = vrcp.pop %v798
        %v1111 = vmul.f32 %v798, %v1110
        %v1112 = vsub.f32 1.0, %v1111
        %v1113 = vmul.f32 %v1110, %v1112
        %v1114 = vadd.f32 %v1110, %v1113
        %vm1115 = vweird.f32 %v798
        %vm1116 = vweird.f32 %v1110
        %vm1117 = vmor %vm1115, %vm1116
        %v1118 = vsel %vm1117, %v1110, %v1114
        %v1119 = vand.u32 2147483647, %v798
        %vm1120 = vcmp.eq.f32.partialorder %v1119, 8.507059e+37
        %v1121 = vand.u32 %v798, 2147483648
        %v1122 = vor.u32 1.1754944e-38, %v1121
        %v1123 = vsel %vm1120, %v1122, %v1118
        %v1124 = vmul.f32 1.0, %v1123
        %v1125 = vrcp.pop %v799
        %v1126 = vmul.f32 %v799, %v1125
        %v1127 = vsub.f32 1.0, %v1126
        %v1128 = vmul.f32 %v1125, %v1127
        %v1129 = vadd.f32 %v1125, %v1128
        %vm1130 = vweird.f32 %v799
        %vm1131 = vweird.f32 %v1125
        %vm1132 = vmor %vm1130, %vm1131
        %v1133 = vsel %vm1132, %v1125, %v1129
        %v1134 = vand.u32 2147483647, %v799
        %vm1135 = vcmp.eq.f32.partialorder %v1134, 8.507059e+37
        %v1136 = vand.u32 %v799, 2147483648
        %v1137 = vor.u32 1.1754944e-38, %v1136
        %v1138 = vsel %vm1135, %v1137, %v1133
        %v1139 = vmul.f32 1.0, %v1138
        %v1140 = vrcp.pop %v800
        %v1141 = vmul.f32 %v800, %v1140
        %v1142 = vsub.f32 1.0, %v1141
        %v1143 = vmul.f32 %v1140, %v1142
        %v1144 = vadd.f32 %v1140, %v1143
        %vm1145 = vweird.f32 %v800
        %vm1146 = vweird.f32 %v1140
        %vm1147 = vmor %vm1145, %vm1146
        %v1148 = vsel %vm1147, %v1140, %v1144
        %v1149 = vand.u32 2147483647, %v800
        %vm1150 = vcmp.eq.f32.partialorder %v1149, 8.507059e+37
        %v1151 = vand.u32 %v800, 2147483648
        %v1152 = vor.u32 1.1754944e-38, %v1151
        %v1153 = vsel %vm1150, %v1152, %v1148
        %v1154 = vmul.f32 1.0, %v1153
        %v1155 = vrcp.pop %v801
        %v1156 = vmul.f32 %v801, %v1155
        %v1157 = vsub.f32 1.0, %v1156
        %v1158 = vmul.f32 %v1155, %v1157
        %v1159 = vadd.f32 %v1155, %v1158
        %vm1160 = vweird.f32 %v801
        %vm1161 = vweird.f32 %v1155
        %vm1162 = vmor %vm1160, %vm1161
        %v1163 = vsel %vm1162, %v1155, %v1159
        %v1164 = vand.u32 2147483647, %v801
        %vm1165 = vcmp.eq.f32.partialorder %v1164, 8.507059e+37
        %v1166 = vand.u32 %v801, 2147483648
        %v1167 = vor.u32 1.1754944e-38, %v1166
        %v1168 = vsel %vm1165, %v1167, %v1163
        %v1169 = vmul.f32 1.0, %v1168
        %v1170 = vrcp.pop %v802
        %v1171 = vmul.f32 %v802, %v1170
        %v1172 = vsub.f32 1.0, %v1171
        %v1173 = vmul.f32 %v1170, %v1172
        %v1174 = vadd.f32 %v1170, %v1173
        %vm1175 = vweird.f32 %v802
        %vm1176 = vweird.f32 %v1170
        %vm1177 = vmor %vm1175, %vm1176
        %v1178 = vsel %vm1177, %v1170, %v1174
        %v1179 = vand.u32 2147483647, %v802
        %vm1180 = vcmp.eq.f32.partialorder %v1179, 8.507059e+37
        %v1181 = vand.u32 %v802, 2147483648
        %v1182 = vor.u32 1.1754944e-38, %v1181
        %v1183 = vsel %vm1180, %v1182, %v1178
        %v1184 = vmul.f32 1.0, %v1183
        %v1185 = vrcp.pop %v803
        %v1186 = vmul.f32 %v803, %v1185
        %v1187 = vsub.f32 1.0, %v1186
        %v1188 = vmul.f32 %v1185, %v1187
        %v1189 = vadd.f32 %v1185, %v1188
        %vm1190 = vweird.f32 %v803
        %vm1191 = vweird.f32 %v1185
        %vm1192 = vmor %vm1190, %vm1191
        %v1193 = vsel %vm1192, %v1185, %v1189
        %v1194 = vand.u32 2147483647, %v803
        %vm1195 = vcmp.eq.f32.partialorder %v1194, 8.507059e+37
        %v1196 = vand.u32 %v803, 2147483648
        %v1197 = vor.u32 1.1754944e-38, %v1196
        %v1198 = vsel %vm1195, %v1197, %v1193
        %v1199 = vmul.f32 1.0, %v1198
        %v1200 = vrcp.pop %v804
        %v1201 = vmul.f32 %v804, %v1200
        %v1202 = vsub.f32 1.0, %v1201
        %v1203 = vmul.f32 %v1200, %v1202
        %v1204 = vadd.f32 %v1200, %v1203
        %vm1205 = vweird.f32 %v804
        %vm1206 = vweird.f32 %v1200
        %vm1207 = vmor %vm1205, %vm1206
        %v1208 = vsel %vm1207, %v1200, %v1204
        %v1209 = vand.u32 2147483647, %v804
        %vm1210 = vcmp.eq.f32.partialorder %v1209, 8.507059e+37
        %v1211 = vand.u32 %v804, 2147483648
        %v1212 = vor.u32 1.1754944e-38, %v1211
        %v1213 = vsel %vm1210, %v1212, %v1208
        %v1214 = vmul.f32 1.0, %v1213
        %v1215 = vrcp.pop %v805
        %v1216 = vmul.f32 %v805, %v1215
        %v1217 = vsub.f32 1.0, %v1216
        %v1218 = vmul.f32 %v1215, %v1217
        %v1219 = vadd.f32 %v1215, %v1218
        %vm1220 = vweird.f32 %v805
        %vm1221 = vweird.f32 %v1215
        %vm1222 = vmor %vm1220, %vm1221
        %v1223 = vsel %vm1222, %v1215, %v1219
        %v1224 = vand.u32 2147483647, %v805
        %vm1225 = vcmp.eq.f32.partialorder %v1224, 8.507059e+37
        %v1226 = vand.u32 %v805, 2147483648
        %v1227 = vor.u32 1.1754944e-38, %v1226
        %v1228 = vsel %vm1225, %v1227, %v1223
        %v1229 = vmul.f32 1.0, %v1228
        %v1230 = vrcp.pop %v806
        %v1231 = vmul.f32 %v806, %v1230
        %v1232 = vsub.f32 1.0, %v1231
        %v1233 = vmul.f32 %v1230, %v1232
        %v1234 = vadd.f32 %v1230, %v1233
        %vm1235 = vweird.f32 %v806
        %vm1236 = vweird.f32 %v1230
        %vm1237 = vmor %vm1235, %vm1236
        %v1238 = vsel %vm1237, %v1230, %v1234
        %v1239 = vand.u32 2147483647, %v806
        %vm1240 = vcmp.eq.f32.partialorder %v1239, 8.507059e+37
        %v1241 = vand.u32 %v806, 2147483648
        %v1242 = vor.u32 1.1754944e-38, %v1241
        %v1243 = vsel %vm1240, %v1242, %v1238
        %v1244 = vmul.f32 1.0, %v1243
        %v1245 = vrcp.pop %v807
        %v1246 = vmul.f32 %v807, %v1245
        %v1247 = vsub.f32 1.0, %v1246
        %v1248 = vmul.f32 %v1245, %v1247
        %v1249 = vadd.f32 %v1245, %v1248
        %vm1250 = vweird.f32 %v807
        %vm1251 = vweird.f32 %v1245
        %vm1252 = vmor %vm1250, %vm1251
        %v1253 = vsel %vm1252, %v1245, %v1249
        %v1254 = vand.u32 2147483647, %v807
        %vm1255 = vcmp.eq.f32.partialorder %v1254, 8.507059e+37
        %v1256 = vand.u32 %v807, 2147483648
        %v1257 = vor.u32 1.1754944e-38, %v1256
        %v1258 = vsel %vm1255, %v1257, %v1253
        %v1259 = vmul.f32 1.0, %v1258
        %v1260 = vrcp.pop %v808
        %v1261 = vmul.f32 %v808, %v1260
        %v1262 = vsub.f32 1.0, %v1261
        %v1263 = vmul.f32 %v1260, %v1262
        %v1264 = vadd.f32 %v1260, %v1263
        %vm1265 = vweird.f32 %v808
        %vm1266 = vweird.f32 %v1260
        %vm1267 = vmor %vm1265, %vm1266
        %v1268 = vsel %vm1267, %v1260, %v1264
        %v1269 = vand.u32 2147483647, %v808
        %vm1270 = vcmp.eq.f32.partialorder %v1269, 8.507059e+37
        %v1271 = vand.u32 %v808, 2147483648
        %v1272 = vor.u32 1.1754944e-38, %v1271
        %v1273 = vsel %vm1270, %v1272, %v1268
        %v1274 = vmul.f32 1.0, %v1273
        %v1275 = vrcp.pop %v809
        %v1276 = vmul.f32 %v809, %v1275
        %v1277 = vsub.f32 1.0, %v1276
        %v1278 = vmul.f32 %v1275, %v1277
        %v1279 = vadd.f32 %v1275, %v1278
        %vm1280 = vweird.f32 %v809
        %vm1281 = vweird.f32 %v1275
        %vm1282 = vmor %vm1280, %vm1281
        %v1283 = vsel %vm1282, %v1275, %v1279
        %v1284 = vand.u32 2147483647, %v809
        %vm1285 = vcmp.eq.f32.partialorder %v1284, 8.507059e+37
        %v1286 = vand.u32 %v809, 2147483648
        %v1287 = vor.u32 1.1754944e-38, %v1286
        %v1288 = vsel %vm1285, %v1287, %v1283
        %v1289 = vmul.f32 1.0, %v1288
        %v1290 = vmul.f32 %v603, %v824
        %v1291 = vmul.f32 %v605, %v839
        %v1292 = vmul.f32 %v608, %v854
        %v1293 = vmul.f32 %v610, %v869
        %v1294 = vmul.f32 %v613, %v884
        %v1295 = vmul.f32 %v615, %v899
        %v1296 = vmul.f32 %v618, %v914
        %v1297 = vmul.f32 %v620, %v929
        %v1298 = vmul.f32 %v623, %v944
        %v1299 = vmul.f32 %v625, %v959
        %v1300 = vmul.f32 %v628, %v974
        %v1301 = vmul.f32 %v630, %v989
        %v1302 = vmul.f32 %v633, %v1004
        %v1303 = vmul.f32 %v635, %v1019
        %v1304 = vmul.f32 %v638, %v1034
        %v1305 = vmul.f32 %v640, %v1049
        %v1306 = vmul.f32 %v643, %v1064
        %v1307 = vmul.f32 %v645, %v1079
        %v1308 = vmul.f32 %v648, %v1094
        %v1309 = vmul.f32 %v650, %v1109
        %v1310 = vmul.f32 %v653, %v1124
        %v1311 = vmul.f32 %v655, %v1139
        %v1312 = vmul.f32 %v658, %v1154
        %v1313 = vmul.f32 %v660, %v1169
        %v1314 = vmul.f32 %v663, %v1184
        %v1315 = vmul.f32 %v665, %v1199
        %v1316 = vmul.f32 %v668, %v1214
        %v1317 = vmul.f32 %v670, %v1229
        %v1318 = vmul.f32 %v673, %v1244
        %v1319 = vmul.f32 %v675, %v1259
        %v1320 = vmul.f32 %v678, %v1274
        %v1321 = vmul.f32 %v680, %v1289
        %v1322 = vstv %s428
        %v1323 = vadd.s32 %v1322, 1
        %v1324 = vadd.s32 %v1322, 2
        %v1325 = vadd.s32 %v1322, 3
        %v1326 = vadd.s32 %v1322, 4
        %v1327 = vadd.s32 %v1322, 5
        %v1328 = vadd.s32 %v1322, 6
        %v1329 = vadd.s32 %v1322, 7
        %v1330 = vlaneseq
        %v1331 = vshrl.u32 %v1330, 7
        %v1332 = vadd.s32 %v1331, 8
        %v1333 = vadd.s32 %v1331, 16
        %v1334 = vadd.s32 %v1331, 24
        %vm1335 = vcmp.ge.s32.totalorder %v1322, 1
        %vm1336 = vcmp.ge.s32.totalorder %v1323, 1
        %vm1337 = vcmp.ge.s32.totalorder %v1324, 1
        %vm1338 = vcmp.ge.s32.totalorder %v1325, 1
        %vm1339 = vcmp.ge.s32.totalorder %v1326, 1
        %vm1340 = vcmp.ge.s32.totalorder %v1327, 1
        %vm1341 = vcmp.ge.s32.totalorder %v1328, 1
        %vm1342 = vcmp.ge.s32.totalorder %v1329, 1
        %vm1343 = vcmp.le.s32.totalorder %v1322, 16
        %vm1344 = vcmp.le.s32.totalorder %v1323, 16
        %vm1345 = vcmp.le.s32.totalorder %v1324, 16
        %vm1346 = vcmp.le.s32.totalorder %v1325, 16
        %vm1347 = vcmp.le.s32.totalorder %v1326, 16
        %vm1348 = vcmp.le.s32.totalorder %v1327, 16
        %vm1349 = vcmp.le.s32.totalorder %v1328, 16
        %vm1350 = vcmp.le.s32.totalorder %v1329, 16
        %vm1351 = vmand %vm1335, %vm1343
        %vm1352 = vmand %vm1336, %vm1344
        %vm1353 = vmand %vm1337, %vm1345
        %vm1354 = vmand %vm1338, %vm1346
        %vm1355 = vmand %vm1339, %vm1347
        %vm1356 = vmand %vm1340, %vm1348
        %vm1357 = vmand %vm1341, %vm1349
        %vm1358 = vmand %vm1342, %vm1350
        %vm1359 = vcmp.ge.s32.totalorder %v1331, 1
        %vm1360 = vcmp.ge.s32.totalorder %v1332, 1
        %vm1361 = vcmp.ge.s32.totalorder %v1333, 1
        %vm1362 = vcmp.ge.s32.totalorder %v1334, 1
        %vm1363 = vmand %vm1351, %vm1359
        %vm1364 = vmand %vm1351, %vm1360
        %vm1365 = vmand %vm1351, %vm1361
        %vm1366 = vmand %vm1351, %vm1362
        %vm1367 = vmand %vm1352, %vm1359
        %vm1368 = vmand %vm1352, %vm1360
        %vm1369 = vmand %vm1352, %vm1361
        %vm1370 = vmand %vm1352, %vm1362
        %vm1371 = vmand %vm1353, %vm1359
        %vm1372 = vmand %vm1353, %vm1360
        %vm1373 = vmand %vm1353, %vm1361
        %vm1374 = vmand %vm1353, %vm1362
        %vm1375 = vmand %vm1354, %vm1359
        %vm1376 = vmand %vm1354, %vm1360
        %vm1377 = vmand %vm1354, %vm1361
        %vm1378 = vmand %vm1354, %vm1362
        %vm1379 = vmand %vm1355, %vm1359
        %vm1380 = vmand %vm1355, %vm1360
        %vm1381 = vmand %vm1355, %vm1361
        %vm1382 = vmand %vm1355, %vm1362
        %vm1383 = vmand %vm1356, %vm1359
        %vm1384 = vmand %vm1356, %vm1360
        %vm1385 = vmand %vm1356, %vm1361
        %vm1386 = vmand %vm1356, %vm1362
        %vm1387 = vmand %vm1357, %vm1359
        %vm1388 = vmand %vm1357, %vm1360
        %vm1389 = vmand %vm1357, %vm1361
        %vm1390 = vmand %vm1357, %vm1362
        %vm1391 = vmand %vm1358, %vm1359
        %vm1392 = vmand %vm1358, %vm1360
        %vm1393 = vmand %vm1358, %vm1361
        %vm1394 = vmand %vm1358, %vm1362
        %vm1395 = vcmp.le.s32.totalorder %v1331, 16
        %vm1396 = vcmp.le.s32.totalorder %v1332, 16
        %vm1397 = vcmp.le.s32.totalorder %v1333, 16
        %vm1398 = vcmp.le.s32.totalorder %v1334, 16
        %vm1399 = vmand %vm1363, %vm1395
        %vm1400 = vmand %vm1364, %vm1396
        %vm1401 = vmand %vm1365, %vm1397
        %vm1402 = vmand %vm1366, %vm1398
        %vm1403 = vmand %vm1367, %vm1395
        %vm1404 = vmand %vm1368, %vm1396
        %vm1405 = vmand %vm1369, %vm1397
        %vm1406 = vmand %vm1370, %vm1398
        %vm1407 = vmand %vm1371, %vm1395
        %vm1408 = vmand %vm1372, %vm1396
        %vm1409 = vmand %vm1373, %vm1397
        %vm1410 = vmand %vm1374, %vm1398
        %vm1411 = vmand %vm1375, %vm1395
        %vm1412 = vmand %vm1376, %vm1396
        %vm1413 = vmand %vm1377, %vm1397
        %vm1414 = vmand %vm1378, %vm1398
        %vm1415 = vmand %vm1379, %vm1395
        %vm1416 = vmand %vm1380, %vm1396
        %vm1417 = vmand %vm1381, %vm1397
        %vm1418 = vmand %vm1382, %vm1398
        %vm1419 = vmand %vm1383, %vm1395
        %vm1420 = vmand %vm1384, %vm1396
        %vm1421 = vmand %vm1385, %vm1397
        %vm1422 = vmand %vm1386, %vm1398
        %vm1423 = vmand %vm1387, %vm1395
        %vm1424 = vmand %vm1388, %vm1396
        %vm1425 = vmand %vm1389, %vm1397
        %vm1426 = vmand %vm1390, %vm1398
        %vm1427 = vmand %vm1391, %vm1395
        %vm1428 = vmand %vm1392, %vm1396
        %vm1429 = vmand %vm1393, %vm1397
        %vm1430 = vmand %vm1394, %vm1398
        %v1431 = vsel %vm1399, %v1290, 0.0
        %v1432 = vsel %vm1400, %v1291, 0.0
        %v1433 = vsel %vm1401, %v1292, 0.0
        %v1434 = vsel %vm1402, %v1293, 0.0
        %v1435 = vsel %vm1403, %v1294, 0.0
        %v1436 = vsel %vm1404, %v1295, 0.0
        %v1437 = vsel %vm1405, %v1296, 0.0
        %v1438 = vsel %vm1406, %v1297, 0.0
        %v1439 = vsel %vm1407, %v1298, 0.0
        %v1440 = vsel %vm1408, %v1299, 0.0
        %v1441 = vsel %vm1409, %v1300, 0.0
        %v1442 = vsel %vm1410, %v1301, 0.0
        %v1443 = vsel %vm1411, %v1302, 0.0
        %v1444 = vsel %vm1412, %v1303, 0.0
        %v1445 = vsel %vm1413, %v1304, 0.0
        %v1446 = vsel %vm1414, %v1305, 0.0
        %v1447 = vsel %vm1415, %v1306, 0.0
        %v1448 = vsel %vm1416, %v1307, 0.0
        %v1449 = vsel %vm1417, %v1308, 0.0
        %v1450 = vsel %vm1418, %v1309, 0.0
        %v1451 = vsel %vm1419, %v1310, 0.0
        %v1452 = vsel %vm1420, %v1311, 0.0
        %v1453 = vsel %vm1421, %v1312, 0.0
        %v1454 = vsel %vm1422, %v1313, 0.0
        %v1455 = vsel %vm1423, %v1314, 0.0
        %v1456 = vsel %vm1424, %v1315, 0.0
        %v1457 = vsel %vm1425, %v1316, 0.0
        %v1458 = vsel %vm1426, %v1317, 0.0
        %v1459 = vsel %vm1427, %v1318, 0.0
        %v1460 = vsel %vm1428, %v1319, 0.0
        %v1461 = vsel %vm1429, %v1320, 0.0
        %v1462 = vsel %vm1430, %v1321, 0.0
        %v1463 = vpack.c.bf16 %v1431, %v1431
        %v1464 = vpack.c.bf16 %v1432, %v1432
        %v1465 = vpack.c.bf16 %v1433, %v1433
        %v1466 = vpack.c.bf16 %v1434, %v1434
        %v1467 = vpack.c.bf16 %v1435, %v1435
        %v1468 = vpack.c.bf16 %v1436, %v1436
        %v1469 = vpack.c.bf16 %v1437, %v1437
        %v1470 = vpack.c.bf16 %v1438, %v1438
        %v1471 = vpack.c.bf16 %v1439, %v1439
        %v1472 = vpack.c.bf16 %v1440, %v1440
        %v1473 = vpack.c.bf16 %v1441, %v1441
        %v1474 = vpack.c.bf16 %v1442, %v1442
        %v1475 = vpack.c.bf16 %v1443, %v1443
        %v1476 = vpack.c.bf16 %v1444, %v1444
        %v1477 = vpack.c.bf16 %v1445, %v1445
        %v1478 = vpack.c.bf16 %v1446, %v1446
        %v1479 = vpack.c.bf16 %v1447, %v1447
        %v1480 = vpack.c.bf16 %v1448, %v1448
        %v1481 = vpack.c.bf16 %v1449, %v1449
        %v1482 = vpack.c.bf16 %v1450, %v1450
        %v1483 = vpack.c.bf16 %v1451, %v1451
        %v1484 = vpack.c.bf16 %v1452, %v1452
        %v1485 = vpack.c.bf16 %v1453, %v1453
        %v1486 = vpack.c.bf16 %v1454, %v1454
        %v1487 = vpack.c.bf16 %v1455, %v1455
        %v1488 = vpack.c.bf16 %v1456, %v1456
        %v1489 = vpack.c.bf16 %v1457, %v1457
        %v1490 = vpack.c.bf16 %v1458, %v1458
        %v1491 = vpack.c.bf16 %v1459, %v1459
        %v1492 = vpack.c.bf16 %v1460, %v1460
        %v1493 = vpack.c.bf16 %v1461, %v1461
        %v1494 = vpack.c.bf16 %v1462, %v1462
        %1495 = vst [vmem:[#allocation2] sm:$0xf] %v1463
        %1496 = vst [vmem:[#allocation2 + $0x4] sm:$0xf] %v1464
        %1497 = vst [vmem:[#allocation2 + $0x8] sm:$0xf] %v1465
        %1498 = vst [vmem:[#allocation2 + $0xc] sm:$0xf] %v1466
        %1499 = vst [vmem:[#allocation2 + $0x10] sm:$0xf] %v1467
        %1500 = vst [vmem:[#allocation2 + $0x14] sm:$0xf] %v1468
        %1501 = vst [vmem:[#allocation2 + $0x18] sm:$0xf] %v1469
        %1502 = vst [vmem:[#allocation2 + $0x1c] sm:$0xf] %v1470
        %1503 = vst [vmem:[#allocation2 + $0x20] sm:$0xf] %v1471
        %1504 = vst [vmem:[#allocation2 + $0x24] sm:$0xf] %v1472
        %1505 = vst [vmem:[#allocation2 + $0x28] sm:$0xf] %v1473
        %1506 = vst [vmem:[#allocation2 + $0x2c] sm:$0xf] %v1474
        %1507 = vst [vmem:[#allocation2 + $0x30] sm:$0xf] %v1475
        %1508 = vst [vmem:[#allocation2 + $0x34] sm:$0xf] %v1476
        %1509 = vst [vmem:[#allocation2 + $0x38] sm:$0xf] %v1477
        %1510 = vst [vmem:[#allocation2 + $0x3c] sm:$0xf] %v1478
        %1511 = vst [vmem:[#allocation2 + $0x40] sm:$0xf] %v1479
        %1512 = vst [vmem:[#allocation2 + $0x44] sm:$0xf] %v1480
        %1513 = vst [vmem:[#allocation2 + $0x48] sm:$0xf] %v1481
        %1514 = vst [vmem:[#allocation2 + $0x4c] sm:$0xf] %v1482
        %1515 = vst [vmem:[#allocation2 + $0x50] sm:$0xf] %v1483
        %1516 = vst [vmem:[#allocation2 + $0x54] sm:$0xf] %v1484
        %1517 = vst [vmem:[#allocation2 + $0x58] sm:$0xf] %v1485
        %1518 = vst [vmem:[#allocation2 + $0x5c] sm:$0xf] %v1486
        %1519 = vst [vmem:[#allocation2 + $0x60] sm:$0xf] %v1487
        %1520 = vst [vmem:[#allocation2 + $0x64] sm:$0xf] %v1488
        %1521 = vst [vmem:[#allocation2 + $0x68] sm:$0xf] %v1489
        %1522 = vst [vmem:[#allocation2 + $0x6c] sm:$0xf] %v1490
        %1523 = vst [vmem:[#allocation2 + $0x70] sm:$0xf] %v1491
        %1524 = vst [vmem:[#allocation2 + $0x74] sm:$0xf] %v1492
        %1525 = vst [vmem:[#allocation2 + $0x78] sm:$0xf] %v1493
        %1526 = vst [vmem:[#allocation2 + $0x7c] sm:$0xf] %v1494
        %v1527 = vld [vmem:[%s341] sm:$0xf]
        %v1528 = vld [vmem:[%s341 + $0x4] sm:$0xf]
        %v1529 = vld [vmem:[%s341 + $0x8] sm:$0xf]
        %v1530 = vld [vmem:[%s341 + $0xc] sm:$0xf]
        %v1531 = vld [vmem:[%s341 + $0x10] sm:$0xf]
        %v1532 = vld [vmem:[%s341 + $0x14] sm:$0xf]
        %v1533 = vld [vmem:[%s341 + $0x18] sm:$0xf]
        %v1534 = vld [vmem:[%s341 + $0x1c] sm:$0xf]
        %s1535 = sadd.s32 %s32, 1
        %s1536 = smul.u32 %s1535, 8
        %v1537 = vld [vmem:[#allocation8] sm:$0xf]
        %v1538 = vld [vmem:[#allocation8 + $0x4] sm:$0xf]
        %v1539 = vld [vmem:[#allocation8 + $0x8] sm:$0xf]
        %v1540 = vld [vmem:[#allocation8 + $0xc] sm:$0xf]
        %v1541 = vld [vmem:[#allocation8 + $0x10] sm:$0xf]
        %v1542 = vld [vmem:[#allocation8 + $0x14] sm:$0xf]
        %v1543 = vld [vmem:[#allocation8 + $0x18] sm:$0xf]
        %v1544 = vld [vmem:[#allocation8 + $0x1c] sm:$0xf]
        %v1545 = vld [vmem:[#allocation8 + $0x20] sm:$0xf]
        %v1546 = vld [vmem:[#allocation8 + $0x24] sm:$0xf]
        %v1547 = vld [vmem:[#allocation8 + $0x28] sm:$0xf]
        %v1548 = vld [vmem:[#allocation8 + $0x2c] sm:$0xf]
        %v1549 = vld [vmem:[#allocation8 + $0x30] sm:$0xf]
        %v1550 = vld [vmem:[#allocation8 + $0x34] sm:$0xf]
        %v1551 = vld [vmem:[#allocation8 + $0x38] sm:$0xf]
        %v1552 = vld [vmem:[#allocation8 + $0x3c] sm:$0xf]
        %v1553 = vld [vmem:[%s3] sm:$0x1]
        %v1555 = vperm.slane %v1553, 0
        %v1565 = vunpack.c.l.b16 %v1527
        %v1566 = vunpack.c.l.b16 %v1528
        %v1567 = vunpack.c.l.b16 %v1529
        %v1568 = vunpack.c.l.b16 %v1530
        %v1569 = vunpack.c.l.b16 %v1531
        %v1570 = vunpack.c.l.b16 %v1532
        %v1571 = vunpack.c.l.b16 %v1533
        %v1572 = vunpack.c.l.b16 %v1534
        %v1573 = vpack.c.b16 %v1566, %v1565
        %v1574 = vpack.c.b16 %v1568, %v1567
        %v1575 = vpack.c.b16 %v1570, %v1569
        %v1576 = vpack.c.b16 %v1572, %v1571
        %v1597 = vunpack.c.l.b16 %v1537
        %v1598 = vunpack.c.l.b16 %v1538
        %v1599 = vunpack.c.l.b16 %v1539
        %v1600 = vunpack.c.l.b16 %v1540
        %v1601 = vunpack.c.l.b16 %v1541
        %v1602 = vunpack.c.l.b16 %v1542
        %v1603 = vunpack.c.l.b16 %v1543
        %v1604 = vunpack.c.l.b16 %v1544
        %v1605 = vunpack.c.l.b16 %v1545
        %v1606 = vunpack.c.l.b16 %v1546
        %v1607 = vunpack.c.l.b16 %v1547
        %v1608 = vunpack.c.l.b16 %v1548
        %v1609 = vunpack.c.l.b16 %v1549
        %v1610 = vunpack.c.l.b16 %v1550
        %v1611 = vunpack.c.l.b16 %v1551
        %v1612 = vunpack.c.l.b16 %v1552
        %v1613 = vpack.c.b16 %v1598, %v1597
        %v1614 = vpack.c.b16 %v1600, %v1599
        %v1615 = vpack.c.b16 %v1602, %v1601
        %v1616 = vpack.c.b16 %v1604, %v1603
        %v1617 = vpack.c.b16 %v1606, %v1605
        %v1618 = vpack.c.b16 %v1608, %v1607
        %v1619 = vpack.c.b16 %v1610, %v1609
        %v1620 = vpack.c.b16 %v1612, %v1611
        %1629 = vmatpush.bf16.msra.mxu0 %v1620
        %1630 = vmatpush.bf16.msra.mxu0 %v1619
        %1631 = vmatpush.bf16.msra.mxu0 %v1618
        %1632 = vmatpush.bf16.msra.mxu0 %v1617
        %1633 = vmatpush.bf16.msra.mxu0 %v1616
        %1634 = vmatpush.bf16.msra.mxu0 %v1615
        %1635 = vmatpush.bf16.msra.mxu0 %v1614
        %1636 = vmatpush.bf16.msra.mxu0 %v1613
        %1637 = vmatmul.bf16.gmra.mxu0 %v1573
        %v1638 = vpop.f32.mrf.mxu0
        %v1639 = vadd.f32 %v1555, %v1638
        %v1640 = vpop.f32.mrf.mxu0
        %v1641 = vadd.f32 %v1555, %v1640
        %1642 = vmatmul.bf16.gmra.mxu0 %v1574
        %v1643 = vpop.f32.mrf.mxu0
        %v1644 = vadd.f32 %v1555, %v1643
        %v1645 = vpop.f32.mrf.mxu0
        %v1646 = vadd.f32 %v1555, %v1645
        %1647 = vmatmul.bf16.gmra.mxu0 %v1575
        %v1648 = vpop.f32.mrf.mxu0
        %v1649 = vadd.f32 %v1555, %v1648
        %v1650 = vpop.f32.mrf.mxu0
        %v1651 = vadd.f32 %v1555, %v1650
        %1652 = vmatmul.bf16.gmra.mxu0 %v1576
        %v1653 = vpop.f32.mrf.mxu0
        %v1654 = vadd.f32 %v1555, %v1653
        %v1655 = vpop.f32.mrf.mxu0
        %v1656 = vadd.f32 %v1555, %v1655
        %1657 = vdwg.mxu0
        %v1658 = vxor.u32 %v1639, 2147483648
        %v1659 = vxor.u32 %v1641, 2147483648
        %v1660 = vxor.u32 %v1644, 2147483648
        %v1661 = vxor.u32 %v1646, 2147483648
        %v1662 = vxor.u32 %v1649, 2147483648
        %v1663 = vxor.u32 %v1651, 2147483648
        %v1664 = vxor.u32 %v1654, 2147483648
        %v1665 = vxor.u32 %v1656, 2147483648
        %v1666 = vmul.f32 %v1658, 1.442695
        %v1667 = vpow.pop %v1666
        %v1668 = vmul.f32 %v1659, 1.442695
        %v1669 = vpow.pop %v1668
        %v1670 = vmul.f32 %v1660, 1.442695
        %v1671 = vpow.pop %v1670
        %v1672 = vmul.f32 %v1661, 1.442695
        %v1673 = vpow.pop %v1672
        %v1674 = vmul.f32 %v1662, 1.442695
        %v1675 = vpow.pop %v1674
        %v1676 = vmul.f32 %v1663, 1.442695
        %v1677 = vpow.pop %v1676
        %v1678 = vmul.f32 %v1664, 1.442695
        %v1679 = vpow.pop %v1678
        %v1680 = vmul.f32 %v1665, 1.442695
        %v1681 = vpow.pop %v1680
        %v1682 = vadd.f32 %v1667, 1.0
        %v1683 = vadd.f32 %v1669, 1.0
        %v1684 = vadd.f32 %v1671, 1.0
        %v1685 = vadd.f32 %v1673, 1.0
        %v1686 = vadd.f32 %v1675, 1.0
        %v1687 = vadd.f32 %v1677, 1.0
        %v1688 = vadd.f32 %v1679, 1.0
        %v1689 = vadd.f32 %v1681, 1.0
        %v1690 = vrcp.pop %v1682
        %v1691 = vmul.f32 %v1682, %v1690
        %v1692 = vsub.f32 1.0, %v1691
        %v1693 = vmul.f32 %v1690, %v1692
        %v1694 = vadd.f32 %v1690, %v1693
        %vm1695 = vweird.f32 %v1682
        %vm1696 = vweird.f32 %v1690
        %vm1697 = vmor %vm1695, %vm1696
        %v1698 = vsel %vm1697, %v1690, %v1694
        %v1699 = vand.u32 2147483647, %v1682
        %vm1700 = vcmp.eq.f32.partialorder %v1699, 8.507059e+37
        %v1701 = vand.u32 %v1682, 2147483648
        %v1702 = vor.u32 1.1754944e-38, %v1701
        %v1703 = vsel %vm1700, %v1702, %v1698
        %v1704 = vmul.f32 1.0, %v1703
        %v1705 = vrcp.pop %v1683
        %v1706 = vmul.f32 %v1683, %v1705
        %v1707 = vsub.f32 1.0, %v1706
        %v1708 = vmul.f32 %v1705, %v1707
        %v1709 = vadd.f32 %v1705, %v1708
        %vm1710 = vweird.f32 %v1683
        %vm1711 = vweird.f32 %v1705
        %vm1712 = vmor %vm1710, %vm1711
        %v1713 = vsel %vm1712, %v1705, %v1709
        %v1714 = vand.u32 2147483647, %v1683
        %vm1715 = vcmp.eq.f32.partialorder %v1714, 8.507059e+37
        %v1716 = vand.u32 %v1683, 2147483648
        %v1717 = vor.u32 1.1754944e-38, %v1716
        %v1718 = vsel %vm1715, %v1717, %v1713
        %v1719 = vmul.f32 1.0, %v1718
        %v1720 = vrcp.pop %v1684
        %v1721 = vmul.f32 %v1684, %v1720
        %v1722 = vsub.f32 1.0, %v1721
        %v1723 = vmul.f32 %v1720, %v1722
        %v1724 = vadd.f32 %v1720, %v1723
        %vm1725 = vweird.f32 %v1684
        %vm1726 = vweird.f32 %v1720
        %vm1727 = vmor %vm1725, %vm1726
        %v1728 = vsel %vm1727, %v1720, %v1724
        %v1729 = vand.u32 2147483647, %v1684
        %vm1730 = vcmp.eq.f32.partialorder %v1729, 8.507059e+37
        %v1731 = vand.u32 %v1684, 2147483648
        %v1732 = vor.u32 1.1754944e-38, %v1731
        %v1733 = vsel %vm1730, %v1732, %v1728
        %v1734 = vmul.f32 1.0, %v1733
        %v1735 = vrcp.pop %v1685
        %v1736 = vmul.f32 %v1685, %v1735
        %v1737 = vsub.f32 1.0, %v1736
        %v1738 = vmul.f32 %v1735, %v1737
        %v1739 = vadd.f32 %v1735, %v1738
        %vm1740 = vweird.f32 %v1685
        %vm1741 = vweird.f32 %v1735
        %vm1742 = vmor %vm1740, %vm1741
        %v1743 = vsel %vm1742, %v1735, %v1739
        %v1744 = vand.u32 2147483647, %v1685
        %vm1745 = vcmp.eq.f32.partialorder %v1744, 8.507059e+37
        %v1746 = vand.u32 %v1685, 2147483648
        %v1747 = vor.u32 1.1754944e-38, %v1746
        %v1748 = vsel %vm1745, %v1747, %v1743
        %v1749 = vmul.f32 1.0, %v1748
        %v1750 = vrcp.pop %v1686
        %v1751 = vmul.f32 %v1686, %v1750
        %v1752 = vsub.f32 1.0, %v1751
        %v1753 = vmul.f32 %v1750, %v1752
        %v1754 = vadd.f32 %v1750, %v1753
        %vm1755 = vweird.f32 %v1686
        %vm1756 = vweird.f32 %v1750
        %vm1757 = vmor %vm1755, %vm1756
        %v1758 = vsel %vm1757, %v1750, %v1754
        %v1759 = vand.u32 2147483647, %v1686
        %vm1760 = vcmp.eq.f32.partialorder %v1759, 8.507059e+37
        %v1761 = vand.u32 %v1686, 2147483648
        %v1762 = vor.u32 1.1754944e-38, %v1761
        %v1763 = vsel %vm1760, %v1762, %v1758
        %v1764 = vmul.f32 1.0, %v1763
        %v1765 = vrcp.pop %v1687
        %v1766 = vmul.f32 %v1687, %v1765
        %v1767 = vsub.f32 1.0, %v1766
        %v1768 = vmul.f32 %v1765, %v1767
        %v1769 = vadd.f32 %v1765, %v1768
        %vm1770 = vweird.f32 %v1687
        %vm1771 = vweird.f32 %v1765
        %vm1772 = vmor %vm1770, %vm1771
        %v1773 = vsel %vm1772, %v1765, %v1769
        %v1774 = vand.u32 2147483647, %v1687
        %vm1775 = vcmp.eq.f32.partialorder %v1774, 8.507059e+37
        %v1776 = vand.u32 %v1687, 2147483648
        %v1777 = vor.u32 1.1754944e-38, %v1776
        %v1778 = vsel %vm1775, %v1777, %v1773
        %v1779 = vmul.f32 1.0, %v1778
        %v1780 = vrcp.pop %v1688
        %v1781 = vmul.f32 %v1688, %v1780
        %v1782 = vsub.f32 1.0, %v1781
        %v1783 = vmul.f32 %v1780, %v1782
        %v1784 = vadd.f32 %v1780, %v1783
        %vm1785 = vweird.f32 %v1688
        %vm1786 = vweird.f32 %v1780
        %vm1787 = vmor %vm1785, %vm1786
        %v1788 = vsel %vm1787, %v1780, %v1784
        %v1789 = vand.u32 2147483647, %v1688
        %vm1790 = vcmp.eq.f32.partialorder %v1789, 8.507059e+37
        %v1791 = vand.u32 %v1688, 2147483648
        %v1792 = vor.u32 1.1754944e-38, %v1791
        %v1793 = vsel %vm1790, %v1792, %v1788
        %v1794 = vmul.f32 1.0, %v1793
        %v1795 = vrcp.pop %v1689
        %v1796 = vmul.f32 %v1689, %v1795
        %v1797 = vsub.f32 1.0, %v1796
        %v1798 = vmul.f32 %v1795, %v1797
        %v1799 = vadd.f32 %v1795, %v1798
        %vm1800 = vweird.f32 %v1689
        %vm1801 = vweird.f32 %v1795
        %vm1802 = vmor %vm1800, %vm1801
        %v1803 = vsel %vm1802, %v1795, %v1799
        %v1804 = vand.u32 2147483647, %v1689
        %vm1805 = vcmp.eq.f32.partialorder %v1804, 8.507059e+37
        %v1806 = vand.u32 %v1689, 2147483648
        %v1807 = vor.u32 1.1754944e-38, %v1806
        %v1808 = vsel %vm1805, %v1807, %v1803
        %v1809 = vmul.f32 1.0, %v1808
        %v1810 = vmul.f32 %v1639, %v1704
        %v1811 = vmul.f32 %v1641, %v1719
        %v1812 = vmul.f32 %v1644, %v1734
        %v1813 = vmul.f32 %v1646, %v1749
        %v1814 = vmul.f32 %v1649, %v1764
        %v1815 = vmul.f32 %v1651, %v1779
        %v1816 = vmul.f32 %v1654, %v1794
        %v1817 = vmul.f32 %v1656, %v1809
        %v1818 = vstv %s1536
        %v1819 = vadd.s32 %v1818, 1
        %vm1820 = vcmp.ge.s32.totalorder %v1818, 1
        %vm1821 = vcmp.ge.s32.totalorder %v1819, 1
        %vm1822 = vcmp.le.s32.totalorder %v1818, 16
        %vm1823 = vcmp.le.s32.totalorder %v1819, 16
        %vm1824 = vmand %vm1820, %vm1822
        %vm1825 = vmand %vm1821, %vm1823
        %vm1826 = vmand %vm1824, %vm1359
        %vm1827 = vmand %vm1824, %vm1360
        %vm1828 = vmand %vm1824, %vm1361
        %vm1829 = vmand %vm1824, %vm1362
        %vm1830 = vmand %vm1825, %vm1359
        %vm1831 = vmand %vm1825, %vm1360
        %vm1832 = vmand %vm1825, %vm1361
        %vm1833 = vmand %vm1825, %vm1362
        %vm1834 = vmand %vm1826, %vm1395
        %vm1835 = vmand %vm1827, %vm1396
        %vm1836 = vmand %vm1828, %vm1397
        %vm1837 = vmand %vm1829, %vm1398
        %vm1838 = vmand %vm1830, %vm1395
        %vm1839 = vmand %vm1831, %vm1396
        %vm1840 = vmand %vm1832, %vm1397
        %vm1841 = vmand %vm1833, %vm1398
        %v1842 = vsel %vm1834, %v1810, 0.0
        %v1843 = vsel %vm1835, %v1811, 0.0
        %v1844 = vsel %vm1836, %v1812, 0.0
        %v1845 = vsel %vm1837, %v1813, 0.0
        %v1846 = vsel %vm1838, %v1814, 0.0
        %v1847 = vsel %vm1839, %v1815, 0.0
        %v1848 = vsel %vm1840, %v1816, 0.0
        %v1849 = vsel %vm1841, %v1817, 0.0
        %v1850 = vpack.c.bf16 %v1842, %v1842
        %v1851 = vpack.c.bf16 %v1843, %v1843
        %v1852 = vpack.c.bf16 %v1844, %v1844
        %v1853 = vpack.c.bf16 %v1845, %v1845
        %v1854 = vpack.c.bf16 %v1846, %v1846
        %v1855 = vpack.c.bf16 %v1847, %v1847
        %v1856 = vpack.c.bf16 %v1848, %v1848
        %v1857 = vpack.c.bf16 %v1849, %v1849
        %s1858 = scalar_lea.vmem [#allocation2], 128
        %1859 = vst [vmem:[%s1858] sm:$0xf] %v1850
        %1860 = vst [vmem:[%s1858 + $0x4] sm:$0xf] %v1851
        %1861 = vst [vmem:[%s1858 + $0x8] sm:$0xf] %v1852
        %1862 = vst [vmem:[%s1858 + $0xc] sm:$0xf] %v1853
        %1863 = vst [vmem:[%s1858 + $0x10] sm:$0xf] %v1854
        %1864 = vst [vmem:[%s1858 + $0x14] sm:$0xf] %v1855
        %1865 = vst [vmem:[%s1858 + $0x18] sm:$0xf] %v1856
        %1866 = vst [vmem:[%s1858 + $0x1c] sm:$0xf] %v1857
        %v1867 = vld [vmem:[#allocation2] sm:$0xf]
        %v1868 = vld [vmem:[#allocation2 + $0x4] sm:$0xf]
        %v1869 = vld [vmem:[#allocation2 + $0x10] sm:$0xf]
        %v1870 = vld [vmem:[#allocation2 + $0x14] sm:$0xf]
        %v1871 = vld [vmem:[#allocation2 + $0x20] sm:$0xf]
        %v1872 = vld [vmem:[#allocation2 + $0x24] sm:$0xf]
        %v1873 = vld [vmem:[#allocation2 + $0x30] sm:$0xf]
        %v1874 = vld [vmem:[#allocation2 + $0x34] sm:$0xf]
        %v1875 = vld [vmem:[#allocation2 + $0x40] sm:$0xf]
        %v1876 = vld [vmem:[#allocation2 + $0x44] sm:$0xf]
        %v1877 = vld [vmem:[#allocation2 + $0x50] sm:$0xf]
        %v1878 = vld [vmem:[#allocation2 + $0x54] sm:$0xf]
        %v1879 = vld [vmem:[#allocation2 + $0x60] sm:$0xf]
        %v1880 = vld [vmem:[#allocation2 + $0x64] sm:$0xf]
        %v1881 = vld [vmem:[#allocation2 + $0x70] sm:$0xf]
        %v1882 = vld [vmem:[#allocation2 + $0x74] sm:$0xf]
        %v1883 = vld [vmem:[#allocation9] sm:$0xf]
        %v1884 = vld [vmem:[#allocation9 + $0x4] sm:$0xf]
        %v1885 = vld [vmem:[#allocation9 + $0x8] sm:$0xf]
        %v1886 = vld [vmem:[#allocation9 + $0xc] sm:$0xf]
        %v1887 = vld [vmem:[#allocation9 + $0x10] sm:$0xf]
        %v1888 = vld [vmem:[#allocation9 + $0x14] sm:$0xf]
        %v1889 = vld [vmem:[#allocation9 + $0x18] sm:$0xf]
        %v1890 = vld [vmem:[#allocation9 + $0x1c] sm:$0xf]
        %v1891 = vld [vmem:[#allocation9 + $0x20] sm:$0xf]
        %v1892 = vld [vmem:[#allocation9 + $0x24] sm:$0xf]
        %v1893 = vld [vmem:[#allocation9 + $0x28] sm:$0xf]
        %v1894 = vld [vmem:[#allocation9 + $0x2c] sm:$0xf]
        %v1895 = vld [vmem:[#allocation9 + $0x30] sm:$0xf]
        %v1896 = vld [vmem:[#allocation9 + $0x34] sm:$0xf]
        %v1897 = vld [vmem:[#allocation9 + $0x38] sm:$0xf]
        %v1898 = vld [vmem:[#allocation9 + $0x3c] sm:$0xf]
        %v1899 = vld [vmem:[#allocation2 + $0x8] sm:$0x1]
        %v1900 = vld [vmem:[#allocation2 + $0x18] sm:$0x1]
        %v1901 = vld [vmem:[#allocation2 + $0x28] sm:$0x1]
        %v1902 = vld [vmem:[#allocation2 + $0x38] sm:$0x1]
        %v1903 = vld [vmem:[#allocation2 + $0x48] sm:$0x1]
        %v1904 = vld [vmem:[#allocation2 + $0x58] sm:$0x1]
        %v1905 = vld [vmem:[#allocation2 + $0x68] sm:$0x1]
        %v1906 = vld [vmem:[#allocation2 + $0x78] sm:$0x1]
        %vm1907 = vsmask.f32 3328
        %vm1908 = vsmask.f32 7440
        %vm1909 = vmor %vm1907, %vm1908
        %v1911 = vshrl.u32 %v1867, 16
        %v1913 = vrot.slane %v1911, 4
        %v1914 = vshll.u32 %v1867, 16
        %v1916 = vrot.slane %v1914, 5
        %v1917 = vor.u32 %v1913, %v1916
        %v1918 = vrot.slane %v1917, 4
        %v1920 = vshll.u32 %v1868, 16
        %v1922 = vrot.slane %v1920, 5
        %v1923 = vsel %vm1909, %v1918, %v1922
        %v1924 = vshrl.u32 %v1868, 16
        %v1926 = vrot.slane %v1924, 4
        %v1927 = vor.u32 %v1926, %v1922
        %v1928 = vrot.slane %v1927, 4
        %v1930 = vshll.u32 %v1899, 16
        %v1932 = vrot.slane %v1930, 5
        %v1933 = vsel %vm1909, %v1928, %v1932
        %v1935 = vshrl.u32 %v1869, 16
        %v1937 = vrot.slane %v1935, 4
        %v1938 = vshll.u32 %v1869, 16
        %v1940 = vrot.slane %v1938, 5
        %v1941 = vor.u32 %v1937, %v1940
        %v1942 = vrot.slane %v1941, 4
        %v1944 = vshll.u32 %v1870, 16
        %v1946 = vrot.slane %v1944, 5
        %v1947 = vsel %vm1909, %v1942, %v1946
        %v1948 = vshrl.u32 %v1870, 16
        %v1950 = vrot.slane %v1948, 4
        %v1951 = vor.u32 %v1950, %v1946
        %v1952 = vrot.slane %v1951, 4
        %v1954 = vshll.u32 %v1900, 16
        %v1956 = vrot.slane %v1954, 5
        %v1957 = vsel %vm1909, %v1952, %v1956
        %v1959 = vshrl.u32 %v1871, 16
        %v1961 = vrot.slane %v1959, 4
        %v1962 = vshll.u32 %v1871, 16
        %v1964 = vrot.slane %v1962, 5
        %v1965 = vor.u32 %v1961, %v1964
        %v1966 = vrot.slane %v1965, 4
        %v1968 = vshll.u32 %v1872, 16
        %v1970 = vrot.slane %v1968, 5
        %v1971 = vsel %vm1909, %v1966, %v1970
        %v1972 = vshrl.u32 %v1872, 16
        %v1974 = vrot.slane %v1972, 4
        %v1975 = vor.u32 %v1974, %v1970
        %v1976 = vrot.slane %v1975, 4
        %v1978 = vshll.u32 %v1901, 16
        %v1980 = vrot.slane %v1978, 5
        %v1981 = vsel %vm1909, %v1976, %v1980
        %v1983 = vshrl.u32 %v1873, 16
        %v1985 = vrot.slane %v1983, 4
        %v1986 = vshll.u32 %v1873, 16
        %v1988 = vrot.slane %v1986, 5
        %v1989 = vor.u32 %v1985, %v1988
        %v1990 = vrot.slane %v1989, 4
        %v1992 = vshll.u32 %v1874, 16
        %v1994 = vrot.slane %v1992, 5
        %v1995 = vsel %vm1909, %v1990, %v1994
        %v1996 = vshrl.u32 %v1874, 16
        %v1998 = vrot.slane %v1996, 4
        %v1999 = vor.u32 %v1998, %v1994
        %v2000 = vrot.slane %v1999, 4
        %v2002 = vshll.u32 %v1902, 16
        %v2004 = vrot.slane %v2002, 5
        %v2005 = vsel %vm1909, %v2000, %v2004
        %v2007 = vshrl.u32 %v1875, 16
        %v2009 = vrot.slane %v2007, 4
        %v2010 = vshll.u32 %v1875, 16
        %v2012 = vrot.slane %v2010, 5
        %v2013 = vor.u32 %v2009, %v2012
        %v2014 = vrot.slane %v2013, 4
        %v2016 = vshll.u32 %v1876, 16
        %v2018 = vrot.slane %v2016, 5
        %v2019 = vsel %vm1909, %v2014, %v2018
        %v2020 = vshrl.u32 %v1876, 16
        %v2022 = vrot.slane %v2020, 4
        %v2023 = vor.u32 %v2022, %v2018
        %v2024 = vrot.slane %v2023, 4
        %v2026 = vshll.u32 %v1903, 16
        %v2028 = vrot.slane %v2026, 5
        %v2029 = vsel %vm1909, %v2024, %v2028
        %v2031 = vshrl.u32 %v1877, 16
        %v2033 = vrot.slane %v2031, 4
        %v2034 = vshll.u32 %v1877, 16
        %v2036 = vrot.slane %v2034, 5
        %v2037 = vor.u32 %v2033, %v2036
        %v2038 = vrot.slane %v2037, 4
        %v2040 = vshll.u32 %v1878, 16
        %v2042 = vrot.slane %v2040, 5
        %v2043 = vsel %vm1909, %v2038, %v2042
        %v2044 = vshrl.u32 %v1878, 16
        %v2046 = vrot.slane %v2044, 4
        %v2047 = vor.u32 %v2046, %v2042
        %v2048 = vrot.slane %v2047, 4
        %v2050 = vshll.u32 %v1904, 16
        %v2052 = vrot.slane %v2050, 5
        %v2053 = vsel %vm1909, %v2048, %v2052
        %v2055 = vshrl.u32 %v1879, 16
        %v2057 = vrot.slane %v2055, 4
        %v2058 = vshll.u32 %v1879, 16
        %v2060 = vrot.slane %v2058, 5
        %v2061 = vor.u32 %v2057, %v2060
        %v2062 = vrot.slane %v2061, 4
        %v2064 = vshll.u32 %v1880, 16
        %v2066 = vrot.slane %v2064, 5
        %v2067 = vsel %vm1909, %v2062, %v2066
        %v2068 = vshrl.u32 %v1880, 16
        %v2070 = vrot.slane %v2068, 4
        %v2071 = vor.u32 %v2070, %v2066
        %v2072 = vrot.slane %v2071, 4
        %v2074 = vshll.u32 %v1905, 16
        %v2076 = vrot.slane %v2074, 5
        %v2077 = vsel %vm1909, %v2072, %v2076
        %v2079 = vshrl.u32 %v1881, 16
        %v2081 = vrot.slane %v2079, 4
        %v2082 = vshll.u32 %v1881, 16
        %v2084 = vrot.slane %v2082, 5
        %v2085 = vor.u32 %v2081, %v2084
        %v2086 = vrot.slane %v2085, 4
        %v2088 = vshll.u32 %v1882, 16
        %v2090 = vrot.slane %v2088, 5
        %v2091 = vsel %vm1909, %v2086, %v2090
        %v2092 = vshrl.u32 %v1882, 16
        %v2094 = vrot.slane %v2092, 4
        %v2095 = vor.u32 %v2094, %v2090
        %v2096 = vrot.slane %v2095, 4
        %v2098 = vshll.u32 %v1906, 16
        %v2100 = vrot.slane %v2098, 5
        %v2101 = vsel %vm1909, %v2096, %v2100
        %s2102 = scalar_lea.vmem [#allocation9], 64
        %v2103 = vld [vmem:[%s2102] sm:$0xf]
        %v2104 = vld [vmem:[%s2102 + $0x4] sm:$0xf]
        %v2105 = vld [vmem:[%s2102 + $0x8] sm:$0xf]
        %v2106 = vld [vmem:[%s2102 + $0xc] sm:$0xf]
        %v2107 = vld [vmem:[%s2102 + $0x10] sm:$0xf]
        %v2108 = vld [vmem:[%s2102 + $0x14] sm:$0xf]
        %v2109 = vld [vmem:[%s2102 + $0x18] sm:$0xf]
        %v2110 = vld [vmem:[%s2102 + $0x1c] sm:$0xf]
        %v2111 = vld [vmem:[%s2102 + $0x20] sm:$0xf]
        %v2112 = vld [vmem:[%s2102 + $0x24] sm:$0xf]
        %v2113 = vld [vmem:[%s2102 + $0x28] sm:$0xf]
        %v2114 = vld [vmem:[%s2102 + $0x2c] sm:$0xf]
        %v2115 = vld [vmem:[%s2102 + $0x30] sm:$0xf]
        %v2116 = vld [vmem:[%s2102 + $0x34] sm:$0xf]
        %v2117 = vld [vmem:[%s2102 + $0x38] sm:$0xf]
        %v2118 = vld [vmem:[%s2102 + $0x3c] sm:$0xf]
        %v2119 = vunpack.c.l.b16 %v1923
        %v2120 = vunpack.c.l.b16 %v1933
        %v2121 = vunpack.c.l.b16 %v1947
        %v2122 = vunpack.c.l.b16 %v1957
        %v2123 = vunpack.c.l.b16 %v1971
        %v2124 = vunpack.c.l.b16 %v1981
        %v2125 = vunpack.c.l.b16 %v1995
        %v2126 = vunpack.c.l.b16 %v2005
        %v2127 = vunpack.c.l.b16 %v2019
        %v2128 = vunpack.c.l.b16 %v2029
        %v2129 = vunpack.c.l.b16 %v2043
        %v2130 = vunpack.c.l.b16 %v2053
        %v2131 = vunpack.c.l.b16 %v2067
        %v2132 = vunpack.c.l.b16 %v2077
        %v2133 = vunpack.c.l.b16 %v2091
        %v2134 = vunpack.c.l.b16 %v2101
        %v2135 = vpack.c.b16 %v2120, %v2119
        %v2136 = vpack.c.b16 %v2122, %v2121
        %v2137 = vpack.c.b16 %v2124, %v2123
        %v2138 = vpack.c.b16 %v2126, %v2125
        %v2139 = vpack.c.b16 %v2128, %v2127
        %v2140 = vpack.c.b16 %v2130, %v2129
        %v2141 = vpack.c.b16 %v2132, %v2131
        %v2142 = vpack.c.b16 %v2134, %v2133
        %v2167 = vunpack.c.l.b16 %v2103
        %v2168 = vunpack.c.l.b16 %v2104
        %v2169 = vunpack.c.l.b16 %v2105
        %v2170 = vunpack.c.l.b16 %v2106
        %v2171 = vunpack.c.l.b16 %v2107
        %v2172 = vunpack.c.l.b16 %v2108
        %v2173 = vunpack.c.l.b16 %v2109
        %v2174 = vunpack.c.l.b16 %v2110
        %v2175 = vunpack.c.l.b16 %v2111
        %v2176 = vunpack.c.l.b16 %v2112
        %v2177 = vunpack.c.l.b16 %v2113
        %v2178 = vunpack.c.l.b16 %v2114
        %v2179 = vunpack.c.l.b16 %v2115
        %v2180 = vunpack.c.l.b16 %v2116
        %v2181 = vunpack.c.l.b16 %v2117
        %v2182 = vunpack.c.l.b16 %v2118
        %v2183 = vpack.c.b16 %v2168, %v2167
        %v2184 = vpack.c.b16 %v2170, %v2169
        %v2185 = vpack.c.b16 %v2172, %v2171
        %v2186 = vpack.c.b16 %v2174, %v2173
        %v2187 = vpack.c.b16 %v2176, %v2175
        %v2188 = vpack.c.b16 %v2178, %v2177
        %v2189 = vpack.c.b16 %v2180, %v2179
        %v2190 = vpack.c.b16 %v2182, %v2181
        %2199 = vmatpush.bf16.msra.mxu0 %v2190
        %2200 = vmatpush.bf16.msra.mxu0 %v2189
        %2201 = vmatpush.bf16.msra.mxu0 %v2188
        %2202 = vmatpush.bf16.msra.mxu0 %v2187
        %2203 = vmatpush.bf16.msra.mxu0 %v2186
        %2204 = vmatpush.bf16.msra.mxu0 %v2185
        %2205 = vmatpush.bf16.msra.mxu0 %v2184
        %2206 = vmatpush.bf16.msra.mxu0 %v2183
        %2207 = vmatmul.bf16.gmra.mxu0 %v2135
        %v2208 = vpop.f32.mrf.mxu0
        %v2209 = vadd.f32 0.0, %v2208
        %v2210 = vpop.f32.mrf.mxu0
        %v2211 = vadd.f32 0.0, %v2210
        %2212 = vmatmul.bf16.gmra.mxu0 %v2136
        %v2213 = vpop.f32.mrf.mxu0
        %v2214 = vadd.f32 0.0, %v2213
        %v2215 = vpop.f32.mrf.mxu0
        %v2216 = vadd.f32 0.0, %v2215
        %2217 = vmatmul.bf16.gmra.mxu0 %v2137
        %v2218 = vpop.f32.mrf.mxu0
        %v2219 = vadd.f32 0.0, %v2218
        %v2220 = vpop.f32.mrf.mxu0
        %v2221 = vadd.f32 0.0, %v2220
        %2222 = vmatmul.bf16.gmra.mxu0 %v2138
        %v2223 = vpop.f32.mrf.mxu0
        %v2224 = vadd.f32 0.0, %v2223
        %v2225 = vpop.f32.mrf.mxu0
        %v2226 = vadd.f32 0.0, %v2225
        %2227 = vmatmul.bf16.gmra.mxu0 %v2139
        %v2228 = vpop.f32.mrf.mxu0
        %v2229 = vadd.f32 0.0, %v2228
        %v2230 = vpop.f32.mrf.mxu0
        %v2231 = vadd.f32 0.0, %v2230
        %2232 = vmatmul.bf16.gmra.mxu0 %v2140
        %v2233 = vpop.f32.mrf.mxu0
        %v2234 = vadd.f32 0.0, %v2233
        %v2235 = vpop.f32.mrf.mxu0
        %v2236 = vadd.f32 0.0, %v2235
        %2237 = vmatmul.bf16.gmra.mxu0 %v2141
        %v2238 = vpop.f32.mrf.mxu0
        %v2239 = vadd.f32 0.0, %v2238
        %v2240 = vpop.f32.mrf.mxu0
        %v2241 = vadd.f32 0.0, %v2240
        %2242 = vmatmul.bf16.gmra.mxu0 %v2142
        %v2243 = vpop.f32.mrf.mxu0
        %v2244 = vadd.f32 0.0, %v2243
        %v2245 = vpop.f32.mrf.mxu0
        %v2246 = vadd.f32 0.0, %v2245
        %2247 = vdwg.mxu0
        %v2264 = vunpack.c.l.b16 %v1867
        %v2265 = vunpack.c.l.b16 %v1868
        %v2266 = vunpack.c.l.b16 %v1869
        %v2267 = vunpack.c.l.b16 %v1870
        %v2268 = vunpack.c.l.b16 %v1871
        %v2269 = vunpack.c.l.b16 %v1872
        %v2270 = vunpack.c.l.b16 %v1873
        %v2271 = vunpack.c.l.b16 %v1874
        %v2272 = vunpack.c.l.b16 %v1875
        %v2273 = vunpack.c.l.b16 %v1876
        %v2274 = vunpack.c.l.b16 %v1877
        %v2275 = vunpack.c.l.b16 %v1878
        %v2276 = vunpack.c.l.b16 %v1879
        %v2277 = vunpack.c.l.b16 %v1880
        %v2278 = vunpack.c.l.b16 %v1881
        %v2279 = vunpack.c.l.b16 %v1882
        %v2280 = vpack.c.b16 %v2265, %v2264
        %v2281 = vpack.c.b16 %v2267, %v2266
        %v2282 = vpack.c.b16 %v2269, %v2268
        %v2283 = vpack.c.b16 %v2271, %v2270
        %v2284 = vpack.c.b16 %v2273, %v2272
        %v2285 = vpack.c.b16 %v2275, %v2274
        %v2286 = vpack.c.b16 %v2277, %v2276
        %v2287 = vpack.c.b16 %v2279, %v2278
        %v2312 = vunpack.c.l.b16 %v1883
        %v2313 = vunpack.c.l.b16 %v1884
        %v2314 = vunpack.c.l.b16 %v1885
        %v2315 = vunpack.c.l.b16 %v1886
        %v2316 = vunpack.c.l.b16 %v1887
        %v2317 = vunpack.c.l.b16 %v1888
        %v2318 = vunpack.c.l.b16 %v1889
        %v2319 = vunpack.c.l.b16 %v1890
        %v2320 = vunpack.c.l.b16 %v1891
        %v2321 = vunpack.c.l.b16 %v1892
        %v2322 = vunpack.c.l.b16 %v1893
        %v2323 = vunpack.c.l.b16 %v1894
        %v2324 = vunpack.c.l.b16 %v1895
        %v2325 = vunpack.c.l.b16 %v1896
        %v2326 = vunpack.c.l.b16 %v1897
        %v2327 = vunpack.c.l.b16 %v1898
        %v2328 = vpack.c.b16 %v2313, %v2312
        %v2329 = vpack.c.b16 %v2315, %v2314
        %v2330 = vpack.c.b16 %v2317, %v2316
        %v2331 = vpack.c.b16 %v2319, %v2318
        %v2332 = vpack.c.b16 %v2321, %v2320
        %v2333 = vpack.c.b16 %v2323, %v2322
        %v2334 = vpack.c.b16 %v2325, %v2324
        %v2335 = vpack.c.b16 %v2327, %v2326
        %2344 = vmatpush.bf16.msra.mxu0 %v2335
        %2345 = vmatpush.bf16.msra.mxu0 %v2334
        %2346 = vmatpush.bf16.msra.mxu0 %v2333
        %2347 = vmatpush.bf16.msra.mxu0 %v2332
        %2348 = vmatpush.bf16.msra.mxu0 %v2331
        %2349 = vmatpush.bf16.msra.mxu0 %v2330
        %2350 = vmatpush.bf16.msra.mxu0 %v2329
        %2351 = vmatpush.bf16.msra.mxu0 %v2328
        %2352 = vmatmul.bf16.gmra.mxu0 %v2280
        %v2353 = vpop.f32.mrf.mxu0
        %v2354 = vadd.f32 %v2209, %v2353
        %v2355 = vpop.f32.mrf.mxu0
        %v2356 = vadd.f32 %v2211, %v2355
        %2357 = vmatmul.bf16.gmra.mxu0 %v2281
        %v2358 = vpop.f32.mrf.mxu0
        %v2359 = vadd.f32 %v2214, %v2358
        %v2360 = vpop.f32.mrf.mxu0
        %v2361 = vadd.f32 %v2216, %v2360
        %2362 = vmatmul.bf16.gmra.mxu0 %v2282
        %v2363 = vpop.f32.mrf.mxu0
        %v2364 = vadd.f32 %v2219, %v2363
        %v2365 = vpop.f32.mrf.mxu0
        %v2366 = vadd.f32 %v2221, %v2365
        %2367 = vmatmul.bf16.gmra.mxu0 %v2283
        %v2368 = vpop.f32.mrf.mxu0
        %v2369 = vadd.f32 %v2224, %v2368
        %v2370 = vpop.f32.mrf.mxu0
        %v2371 = vadd.f32 %v2226, %v2370
        %2372 = vmatmul.bf16.gmra.mxu0 %v2284
        %v2373 = vpop.f32.mrf.mxu0
        %v2374 = vadd.f32 %v2229, %v2373
        %v2375 = vpop.f32.mrf.mxu0
        %v2376 = vadd.f32 %v2231, %v2375
        %2377 = vmatmul.bf16.gmra.mxu0 %v2285
        %v2378 = vpop.f32.mrf.mxu0
        %v2379 = vadd.f32 %v2234, %v2378
        %v2380 = vpop.f32.mrf.mxu0
        %v2381 = vadd.f32 %v2236, %v2380
        %2382 = vmatmul.bf16.gmra.mxu0 %v2286
        %v2383 = vpop.f32.mrf.mxu0
        %v2384 = vadd.f32 %v2239, %v2383
        %v2385 = vpop.f32.mrf.mxu0
        %v2386 = vadd.f32 %v2241, %v2385
        %2387 = vmatmul.bf16.gmra.mxu0 %v2287
        %v2388 = vpop.f32.mrf.mxu0
        %v2389 = vadd.f32 %v2244, %v2388
        %v2390 = vpop.f32.mrf.mxu0
        %v2391 = vadd.f32 %v2246, %v2390
        %2392 = vdwg.mxu0
        %v2393 = vld [vmem:[#allocation2] sm:$0xe]
        %v2394 = vld [vmem:[#allocation2 + $0x10] sm:$0xe]
        %v2395 = vld [vmem:[#allocation2 + $0x20] sm:$0xe]
        %v2396 = vld [vmem:[#allocation2 + $0x30] sm:$0xe]
        %v2397 = vld [vmem:[#allocation2 + $0x40] sm:$0xe]
        %v2398 = vld [vmem:[#allocation2 + $0x50] sm:$0xe]
        %v2399 = vld [vmem:[#allocation2 + $0x60] sm:$0xe]
        %v2400 = vld [vmem:[#allocation2 + $0x70] sm:$0xe]
        %vm2417 = vcmask 1042432
        %vm2418 = vcmask 1046532
        %vm2419 = vmor %vm2417, %vm2418
        %v2420 = vrot.slane %v2393, 5
        %v2421 = vrot.slane %v2420, 4
        %v2422 = vrot.slane %v1868, 5
        %v2423 = vsel %vm2419, %v2421, %v2422
        %v2424 = vrot.slane %v2422, 4
        %v2425 = vrot.slane %v1899, 5
        %v2426 = vsel %vm2419, %v2424, %v2425
        %v2427 = vrot.slane %v2394, 5
        %v2428 = vrot.slane %v2427, 4
        %v2429 = vrot.slane %v1870, 5
        %v2430 = vsel %vm2419, %v2428, %v2429
        %v2431 = vrot.slane %v2429, 4
        %v2432 = vrot.slane %v1900, 5
        %v2433 = vsel %vm2419, %v2431, %v2432
        %v2434 = vrot.slane %v2395, 5
        %v2435 = vrot.slane %v2434, 4
        %v2436 = vrot.slane %v1872, 5
        %v2437 = vsel %vm2419, %v2435, %v2436
        %v2438 = vrot.slane %v2436, 4
        %v2439 = vrot.slane %v1901, 5
        %v2440 = vsel %vm2419, %v2438, %v2439
        %v2441 = vrot.slane %v2396, 5
        %v2442 = vrot.slane %v2441, 4
        %v2443 = vrot.slane %v1874, 5
        %v2444 = vsel %vm2419, %v2442, %v2443
        %v2445 = vrot.slane %v2443, 4
        %v2446 = vrot.slane %v1902, 5
        %v2447 = vsel %vm2419, %v2445, %v2446
        %v2448 = vrot.slane %v2397, 5
        %v2449 = vrot.slane %v2448, 4
        %v2450 = vrot.slane %v1876, 5
        %v2451 = vsel %vm2419, %v2449, %v2450
        %v2452 = vrot.slane %v2450, 4
        %v2453 = vrot.slane %v1903, 5
        %v2454 = vsel %vm2419, %v2452, %v2453
        %v2455 = vrot.slane %v2398, 5
        %v2456 = vrot.slane %v2455, 4
        %v2457 = vrot.slane %v1878, 5
        %v2458 = vsel %vm2419, %v2456, %v2457
        %v2459 = vrot.slane %v2457, 4
        %v2460 = vrot.slane %v1904, 5
        %v2461 = vsel %vm2419, %v2459, %v2460
        %v2462 = vrot.slane %v2399, 5
        %v2463 = vrot.slane %v2462, 4
        %v2464 = vrot.slane %v1880, 5
        %v2465 = vsel %vm2419, %v2463, %v2464
        %v2466 = vrot.slane %v2464, 4
        %v2467 = vrot.slane %v1905, 5
        %v2468 = vsel %vm2419, %v2466, %v2467
        %v2469 = vrot.slane %v2400, 5
        %v2470 = vrot.slane %v2469, 4
        %v2471 = vrot.slane %v1882, 5
        %v2472 = vsel %vm2419, %v2470, %v2471
        %v2473 = vrot.slane %v2471, 4
        %v2474 = vrot.slane %v1906, 5
        %v2475 = vsel %vm2419, %v2473, %v2474
        %s2476 = scalar_lea.vmem [#allocation9], 128
        %v2477 = vld [vmem:[%s2476] sm:$0xf]
        %v2478 = vld [vmem:[%s2476 + $0x4] sm:$0xf]
        %v2479 = vld [vmem:[%s2476 + $0x8] sm:$0xf]
        %v2480 = vld [vmem:[%s2476 + $0xc] sm:$0xf]
        %v2481 = vld [vmem:[%s2476 + $0x10] sm:$0xf]
        %v2482 = vld [vmem:[%s2476 + $0x14] sm:$0xf]
        %v2483 = vld [vmem:[%s2476 + $0x18] sm:$0xf]
        %v2484 = vld [vmem:[%s2476 + $0x1c] sm:$0xf]
        %v2485 = vld [vmem:[%s2476 + $0x20] sm:$0xf]
        %v2486 = vld [vmem:[%s2476 + $0x24] sm:$0xf]
        %v2487 = vld [vmem:[%s2476 + $0x28] sm:$0xf]
        %v2488 = vld [vmem:[%s2476 + $0x2c] sm:$0xf]
        %v2489 = vld [vmem:[%s2476 + $0x30] sm:$0xf]
        %v2490 = vld [vmem:[%s2476 + $0x34] sm:$0xf]
        %v2491 = vld [vmem:[%s2476 + $0x38] sm:$0xf]
        %v2492 = vld [vmem:[%s2476 + $0x3c] sm:$0xf]
        %v2493 = vunpack.c.l.b16 %v2423
        %v2494 = vunpack.c.l.b16 %v2426
        %v2495 = vunpack.c.l.b16 %v2430
        %v2496 = vunpack.c.l.b16 %v2433
        %v2497 = vunpack.c.l.b16 %v2437
        %v2498 = vunpack.c.l.b16 %v2440
        %v2499 = vunpack.c.l.b16 %v2444
        %v2500 = vunpack.c.l.b16 %v2447
        %v2501 = vunpack.c.l.b16 %v2451
        %v2502 = vunpack.c.l.b16 %v2454
        %v2503 = vunpack.c.l.b16 %v2458
        %v2504 = vunpack.c.l.b16 %v2461
        %v2505 = vunpack.c.l.b16 %v2465
        %v2506 = vunpack.c.l.b16 %v2468
        %v2507 = vunpack.c.l.b16 %v2472
        %v2508 = vunpack.c.l.b16 %v2475
        %v2509 = vpack.c.b16 %v2494, %v2493
        %v2510 = vpack.c.b16 %v2496, %v2495
        %v2511 = vpack.c.b16 %v2498, %v2497
        %v2512 = vpack.c.b16 %v2500, %v2499
        %v2513 = vpack.c.b16 %v2502, %v2501
        %v2514 = vpack.c.b16 %v2504, %v2503
        %v2515 = vpack.c.b16 %v2506, %v2505
        %v2516 = vpack.c.b16 %v2508, %v2507
        %v2541 = vunpack.c.l.b16 %v2477
        %v2542 = vunpack.c.l.b16 %v2478
        %v2543 = vunpack.c.l.b16 %v2479
        %v2544 = vunpack.c.l.b16 %v2480
        %v2545 = vunpack.c.l.b16 %v2481
        %v2546 = vunpack.c.l.b16 %v2482
        %v2547 = vunpack.c.l.b16 %v2483
        %v2548 = vunpack.c.l.b16 %v2484
        %v2549 = vunpack.c.l.b16 %v2485
        %v2550 = vunpack.c.l.b16 %v2486
        %v2551 = vunpack.c.l.b16 %v2487
        %v2552 = vunpack.c.l.b16 %v2488
        %v2553 = vunpack.c.l.b16 %v2489
        %v2554 = vunpack.c.l.b16 %v2490
        %v2555 = vunpack.c.l.b16 %v2491
        %v2556 = vunpack.c.l.b16 %v2492
        %v2557 = vpack.c.b16 %v2542, %v2541
        %v2558 = vpack.c.b16 %v2544, %v2543
        %v2559 = vpack.c.b16 %v2546, %v2545
        %v2560 = vpack.c.b16 %v2548, %v2547
        %v2561 = vpack.c.b16 %v2550, %v2549
        %v2562 = vpack.c.b16 %v2552, %v2551
        %v2563 = vpack.c.b16 %v2554, %v2553
        %v2564 = vpack.c.b16 %v2556, %v2555
        %2573 = vmatpush.bf16.msra.mxu0 %v2564
        %2574 = vmatpush.bf16.msra.mxu0 %v2563
        %2575 = vmatpush.bf16.msra.mxu0 %v2562
        %2576 = vmatpush.bf16.msra.mxu0 %v2561
        %2577 = vmatpush.bf16.msra.mxu0 %v2560
        %2578 = vmatpush.bf16.msra.mxu0 %v2559
        %2579 = vmatpush.bf16.msra.mxu0 %v2558
        %2580 = vmatpush.bf16.msra.mxu0 %v2557
        %2581 = vmatmul.bf16.gmra.mxu0 %v2509
        %v2582 = vpop.f32.mrf.mxu0
        %v2583 = vadd.f32 0.0, %v2582
        %v2584 = vpop.f32.mrf.mxu0
        %v2585 = vadd.f32 0.0, %v2584
        %2586 = vmatmul.bf16.gmra.mxu0 %v2510
        %v2587 = vpop.f32.mrf.mxu0
        %v2588 = vadd.f32 0.0, %v2587
        %v2589 = vpop.f32.mrf.mxu0
        %v2590 = vadd.f32 0.0, %v2589
        %2591 = vmatmul.bf16.gmra.mxu0 %v2511
        %v2592 = vpop.f32.mrf.mxu0
        %v2593 = vadd.f32 0.0, %v2592
        %v2594 = vpop.f32.mrf.mxu0
        %v2595 = vadd.f32 0.0, %v2594
        %2596 = vmatmul.bf16.gmra.mxu0 %v2512
        %v2597 = vpop.f32.mrf.mxu0
        %v2598 = vadd.f32 0.0, %v2597
        %v2599 = vpop.f32.mrf.mxu0
        %v2600 = vadd.f32 0.0, %v2599
        %2601 = vmatmul.bf16.gmra.mxu0 %v2513
        %v2602 = vpop.f32.mrf.mxu0
        %v2603 = vadd.f32 0.0, %v2602
        %v2604 = vpop.f32.mrf.mxu0
        %v2605 = vadd.f32 0.0, %v2604
        %2606 = vmatmul.bf16.gmra.mxu0 %v2514
        %v2607 = vpop.f32.mrf.mxu0
        %v2608 = vadd.f32 0.0, %v2607
        %v2609 = vpop.f32.mrf.mxu0
        %v2610 = vadd.f32 0.0, %v2609
        %2611 = vmatmul.bf16.gmra.mxu0 %v2515
        %v2612 = vpop.f32.mrf.mxu0
        %v2613 = vadd.f32 0.0, %v2612
        %v2614 = vpop.f32.mrf.mxu0
        %v2615 = vadd.f32 0.0, %v2614
        %2616 = vmatmul.bf16.gmra.mxu0 %v2516
        %v2617 = vpop.f32.mrf.mxu0
        %v2618 = vadd.f32 0.0, %v2617
        %v2619 = vpop.f32.mrf.mxu0
        %v2620 = vadd.f32 0.0, %v2619
        %2621 = vdwg.mxu0
        %v2622 = vadd.f32 %v2354, %v2583
        %v2623 = vadd.f32 %v2356, %v2585
        %v2624 = vadd.f32 %v2359, %v2588
        %v2625 = vadd.f32 %v2361, %v2590
        %v2626 = vadd.f32 %v2364, %v2593
        %v2627 = vadd.f32 %v2366, %v2595
        %v2628 = vadd.f32 %v2369, %v2598
        %v2629 = vadd.f32 %v2371, %v2600
        %v2630 = vadd.f32 %v2374, %v2603
        %v2631 = vadd.f32 %v2376, %v2605
        %v2632 = vadd.f32 %v2379, %v2608
        %v2633 = vadd.f32 %v2381, %v2610
        %v2634 = vadd.f32 %v2384, %v2613
        %v2635 = vadd.f32 %v2386, %v2615
        %v2636 = vadd.f32 %v2389, %v2618
        %v2637 = vadd.f32 %v2391, %v2620
        %s2638 = scalar_lea.vmem [#allocation2], 16
        %v2639 = vld [vmem:[%s2638] sm:$0xf]
        %v2640 = vld [vmem:[%s2638 + $0x4] sm:$0xf]
        %v2641 = vld [vmem:[%s2638 + $0x10] sm:$0xf]
        %v2642 = vld [vmem:[%s2638 + $0x14] sm:$0xf]
        %v2643 = vld [vmem:[%s2638 + $0x20] sm:$0xf]
        %v2644 = vld [vmem:[%s2638 + $0x24] sm:$0xf]
        %v2645 = vld [vmem:[%s2638 + $0x30] sm:$0xf]
        %v2646 = vld [vmem:[%s2638 + $0x34] sm:$0xf]
        %v2647 = vld [vmem:[%s2638 + $0x40] sm:$0xf]
        %v2648 = vld [vmem:[%s2638 + $0x44] sm:$0xf]
        %v2649 = vld [vmem:[%s2638 + $0x50] sm:$0xf]
        %v2650 = vld [vmem:[%s2638 + $0x54] sm:$0xf]
        %v2651 = vld [vmem:[%s2638 + $0x60] sm:$0xf]
        %v2652 = vld [vmem:[%s2638 + $0x64] sm:$0xf]
        %v2653 = vld [vmem:[%s2638 + $0x70] sm:$0xf]
        %v2654 = vld [vmem:[%s2638 + $0x74] sm:$0xf]
        %s2655 = scalar_lea.vmem [#allocation9], 192
        %v2656 = vld [vmem:[%s2655] sm:$0xf]
        %v2657 = vld [vmem:[%s2655 + $0x4] sm:$0xf]
        %v2658 = vld [vmem:[%s2655 + $0x8] sm:$0xf]
        %v2659 = vld [vmem:[%s2655 + $0xc] sm:$0xf]
        %v2660 = vld [vmem:[%s2655 + $0x10] sm:$0xf]
        %v2661 = vld [vmem:[%s2655 + $0x14] sm:$0xf]
        %v2662 = vld [vmem:[%s2655 + $0x18] sm:$0xf]
        %v2663 = vld [vmem:[%s2655 + $0x1c] sm:$0xf]
        %v2664 = vld [vmem:[%s2655 + $0x20] sm:$0xf]
        %v2665 = vld [vmem:[%s2655 + $0x24] sm:$0xf]
        %v2666 = vld [vmem:[%s2655 + $0x28] sm:$0xf]
        %v2667 = vld [vmem:[%s2655 + $0x2c] sm:$0xf]
        %v2668 = vld [vmem:[%s2655 + $0x30] sm:$0xf]
        %v2669 = vld [vmem:[%s2655 + $0x34] sm:$0xf]
        %v2670 = vld [vmem:[%s2655 + $0x38] sm:$0xf]
        %v2671 = vld [vmem:[%s2655 + $0x3c] sm:$0xf]
        %v2688 = vunpack.c.l.b16 %v2639
        %v2689 = vunpack.c.l.b16 %v2640
        %v2690 = vunpack.c.l.b16 %v2641
        %v2691 = vunpack.c.l.b16 %v2642
        %v2692 = vunpack.c.l.b16 %v2643
        %v2693 = vunpack.c.l.b16 %v2644
        %v2694 = vunpack.c.l.b16 %v2645
        %v2695 = vunpack.c.l.b16 %v2646
        %v2696 = vunpack.c.l.b16 %v2647
        %v2697 = vunpack.c.l.b16 %v2648
        %v2698 = vunpack.c.l.b16 %v2649
        %v2699 = vunpack.c.l.b16 %v2650
        %v2700 = vunpack.c.l.b16 %v2651
        %v2701 = vunpack.c.l.b16 %v2652
        %v2702 = vunpack.c.l.b16 %v2653
        %v2703 = vunpack.c.l.b16 %v2654
        %v2704 = vpack.c.b16 %v2689, %v2688
        %v2705 = vpack.c.b16 %v2691, %v2690
        %v2706 = vpack.c.b16 %v2693, %v2692
        %v2707 = vpack.c.b16 %v2695, %v2694
        %v2708 = vpack.c.b16 %v2697, %v2696
        %v2709 = vpack.c.b16 %v2699, %v2698
        %v2710 = vpack.c.b16 %v2701, %v2700
        %v2711 = vpack.c.b16 %v2703, %v2702
        %v2736 = vunpack.c.l.b16 %v2656
        %v2737 = vunpack.c.l.b16 %v2657
        %v2738 = vunpack.c.l.b16 %v2658
        %v2739 = vunpack.c.l.b16 %v2659
        %v2740 = vunpack.c.l.b16 %v2660
        %v2741 = vunpack.c.l.b16 %v2661
        %v2742 = vunpack.c.l.b16 %v2662
        %v2743 = vunpack.c.l.b16 %v2663
        %v2744 = vunpack.c.l.b16 %v2664
        %v2745 = vunpack.c.l.b16 %v2665
        %v2746 = vunpack.c.l.b16 %v2666
        %v2747 = vunpack.c.l.b16 %v2667
        %v2748 = vunpack.c.l.b16 %v2668
        %v2749 = vunpack.c.l.b16 %v2669
        %v2750 = vunpack.c.l.b16 %v2670
        %v2751 = vunpack.c.l.b16 %v2671
        %v2752 = vpack.c.b16 %v2737, %v2736
        %v2753 = vpack.c.b16 %v2739, %v2738
        %v2754 = vpack.c.b16 %v2741, %v2740
        %v2755 = vpack.c.b16 %v2743, %v2742
        %v2756 = vpack.c.b16 %v2745, %v2744
        %v2757 = vpack.c.b16 %v2747, %v2746
        %v2758 = vpack.c.b16 %v2749, %v2748
        %v2759 = vpack.c.b16 %v2751, %v2750
        %2768 = vmatpush.bf16.msra.mxu0 %v2759
        %2769 = vmatpush.bf16.msra.mxu0 %v2758
        %2770 = vmatpush.bf16.msra.mxu0 %v2757
        %2771 = vmatpush.bf16.msra.mxu0 %v2756
        %2772 = vmatpush.bf16.msra.mxu0 %v2755
        %2773 = vmatpush.bf16.msra.mxu0 %v2754
        %2774 = vmatpush.bf16.msra.mxu0 %v2753
        %2775 = vmatpush.bf16.msra.mxu0 %v2752
        %2776 = vmatmul.bf16.gmra.mxu0 %v2704
        %v2777 = vpop.f32.mrf.mxu0
        %v2778 = vadd.f32 0.0, %v2777
        %v2779 = vpop.f32.mrf.mxu0
        %v2780 = vadd.f32 0.0, %v2779
        %2781 = vmatmul.bf16.gmra.mxu0 %v2705
        %v2782 = vpop.f32.mrf.mxu0
        %v2783 = vadd.f32 0.0, %v2782
        %v2784 = vpop.f32.mrf.mxu0
        %v2785 = vadd.f32 0.0, %v2784
        %2786 = vmatmul.bf16.gmra.mxu0 %v2706
        %v2787 = vpop.f32.mrf.mxu0
        %v2788 = vadd.f32 0.0, %v2787
        %v2789 = vpop.f32.mrf.mxu0
        %v2790 = vadd.f32 0.0, %v2789
        %2791 = vmatmul.bf16.gmra.mxu0 %v2707
        %v2792 = vpop.f32.mrf.mxu0
        %v2793 = vadd.f32 0.0, %v2792
        %v2794 = vpop.f32.mrf.mxu0
        %v2795 = vadd.f32 0.0, %v2794
        %2796 = vmatmul.bf16.gmra.mxu0 %v2708
        %v2797 = vpop.f32.mrf.mxu0
        %v2798 = vadd.f32 0.0, %v2797
        %v2799 = vpop.f32.mrf.mxu0
        %v2800 = vadd.f32 0.0, %v2799
        %2801 = vmatmul.bf16.gmra.mxu0 %v2709
        %v2802 = vpop.f32.mrf.mxu0
        %v2803 = vadd.f32 0.0, %v2802
        %v2804 = vpop.f32.mrf.mxu0
        %v2805 = vadd.f32 0.0, %v2804
        %2806 = vmatmul.bf16.gmra.mxu0 %v2710
        %v2807 = vpop.f32.mrf.mxu0
        %v2808 = vadd.f32 0.0, %v2807
        %v2809 = vpop.f32.mrf.mxu0
        %v2810 = vadd.f32 0.0, %v2809
        %2811 = vmatmul.bf16.gmra.mxu0 %v2711
        %v2812 = vpop.f32.mrf.mxu0
        %v2813 = vadd.f32 0.0, %v2812
        %v2814 = vpop.f32.mrf.mxu0
        %v2815 = vadd.f32 0.0, %v2814
        %2816 = vdwg.mxu0
        %v2817 = vadd.f32 %v2622, %v2778
        %v2818 = vadd.f32 %v2623, %v2780
        %v2819 = vadd.f32 %v2624, %v2783
        %v2820 = vadd.f32 %v2625, %v2785
        %v2821 = vadd.f32 %v2626, %v2788
        %v2822 = vadd.f32 %v2627, %v2790
        %v2823 = vadd.f32 %v2628, %v2793
        %v2824 = vadd.f32 %v2629, %v2795
        %v2825 = vadd.f32 %v2630, %v2798
        %v2826 = vadd.f32 %v2631, %v2800
        %v2827 = vadd.f32 %v2632, %v2803
        %v2828 = vadd.f32 %v2633, %v2805
        %v2829 = vadd.f32 %v2634, %v2808
        %v2830 = vadd.f32 %v2635, %v2810
        %v2831 = vadd.f32 %v2636, %v2813
        %v2832 = vadd.f32 %v2637, %v2815
        %v2833 = vld [vmem:[%s2638] sm:$0xf]
        %v2834 = vld [vmem:[%s2638 + $0x4] sm:$0xf]
        %v2835 = vld [vmem:[%s2638 + $0x8] sm:$0x1]
        %v2836 = vld [vmem:[%s2638 + $0x10] sm:$0xf]
        %v2837 = vld [vmem:[%s2638 + $0x14] sm:$0xf]
        %v2838 = vld [vmem:[%s2638 + $0x18] sm:$0x1]
        %v2839 = vld [vmem:[%s2638 + $0x20] sm:$0xf]
        %v2840 = vld [vmem:[%s2638 + $0x24] sm:$0xf]
        %v2841 = vld [vmem:[%s2638 + $0x28] sm:$0x1]
        %v2842 = vld [vmem:[%s2638 + $0x30] sm:$0xf]
        %v2843 = vld [vmem:[%s2638 + $0x34] sm:$0xf]
        %v2844 = vld [vmem:[%s2638 + $0x38] sm:$0x1]
        %v2845 = vld [vmem:[%s2638 + $0x40] sm:$0xf]
        %v2846 = vld [vmem:[%s2638 + $0x44] sm:$0xf]
        %v2847 = vld [vmem:[%s2638 + $0x48] sm:$0x1]
        %v2848 = vld [vmem:[%s2638 + $0x50] sm:$0xf]
        %v2849 = vld [vmem:[%s2638 + $0x54] sm:$0xf]
        %v2850 = vld [vmem:[%s2638 + $0x58] sm:$0x1]
        %v2851 = vld [vmem:[%s2638 + $0x60] sm:$0xf]
        %v2852 = vld [vmem:[%s2638 + $0x64] sm:$0xf]
        %v2853 = vld [vmem:[%s2638 + $0x68] sm:$0x1]
        %v2854 = vld [vmem:[%s2638 + $0x70] sm:$0xf]
        %v2855 = vld [vmem:[%s2638 + $0x74] sm:$0xf]
        %v2856 = vld [vmem:[%s2638 + $0x78] sm:$0x1]
        %v2858 = vshrl.u32 %v2833, 16
        %v2860 = vrot.slane %v2858, 4
        %v2861 = vshll.u32 %v2833, 16
        %v2863 = vrot.slane %v2861, 5
        %v2864 = vor.u32 %v2860, %v2863
        %v2865 = vrot.slane %v2864, 4
        %v2867 = vshll.u32 %v2834, 16
        %v2869 = vrot.slane %v2867, 5
        %v2870 = vsel %vm1909, %v2865, %v2869
        %v2871 = vshrl.u32 %v2834, 16
        %v2873 = vrot.slane %v2871, 4
        %v2874 = vor.u32 %v2873, %v2869
        %v2875 = vrot.slane %v2874, 4
        %v2877 = vshll.u32 %v2835, 16
        %v2879 = vrot.slane %v2877, 5
        %v2880 = vsel %vm1909, %v2875, %v2879
        %v2882 = vshrl.u32 %v2836, 16
        %v2884 = vrot.slane %v2882, 4
        %v2885 = vshll.u32 %v2836, 16
        %v2887 = vrot.slane %v2885, 5
        %v2888 = vor.u32 %v2884, %v2887
        %v2889 = vrot.slane %v2888, 4
        %v2891 = vshll.u32 %v2837, 16
        %v2893 = vrot.slane %v2891, 5
        %v2894 = vsel %vm1909, %v2889, %v2893
        %v2895 = vshrl.u32 %v2837, 16
        %v2897 = vrot.slane %v2895, 4
        %v2898 = vor.u32 %v2897, %v2893
        %v2899 = vrot.slane %v2898, 4
        %v2901 = vshll.u32 %v2838, 16
        %v2903 = vrot.slane %v2901, 5
        %v2904 = vsel %vm1909, %v2899, %v2903
        %v2906 = vshrl.u32 %v2839, 16
        %v2908 = vrot.slane %v2906, 4
        %v2909 = vshll.u32 %v2839, 16
        %v2911 = vrot.slane %v2909, 5
        %v2912 = vor.u32 %v2908, %v2911
        %v2913 = vrot.slane %v2912, 4
        %v2915 = vshll.u32 %v2840, 16
        %v2917 = vrot.slane %v2915, 5
        %v2918 = vsel %vm1909, %v2913, %v2917
        %v2919 = vshrl.u32 %v2840, 16
        %v2921 = vrot.slane %v2919, 4
        %v2922 = vor.u32 %v2921, %v2917
        %v2923 = vrot.slane %v2922, 4
        %v2925 = vshll.u32 %v2841, 16
        %v2927 = vrot.slane %v2925, 5
        %v2928 = vsel %vm1909, %v2923, %v2927
        %v2930 = vshrl.u32 %v2842, 16
        %v2932 = vrot.slane %v2930, 4
        %v2933 = vshll.u32 %v2842, 16
        %v2935 = vrot.slane %v2933, 5
        %v2936 = vor.u32 %v2932, %v2935
        %v2937 = vrot.slane %v2936, 4
        %v2939 = vshll.u32 %v2843, 16
        %v2941 = vrot.slane %v2939, 5
        %v2942 = vsel %vm1909, %v2937, %v2941
        %v2943 = vshrl.u32 %v2843, 16
        %v2945 = vrot.slane %v2943, 4
        %v2946 = vor.u32 %v2945, %v2941
        %v2947 = vrot.slane %v2946, 4
        %v2949 = vshll.u32 %v2844, 16
        %v2951 = vrot.slane %v2949, 5
        %v2952 = vsel %vm1909, %v2947, %v2951
        %v2954 = vshrl.u32 %v2845, 16
        %v2956 = vrot.slane %v2954, 4
        %v2957 = vshll.u32 %v2845, 16
        %v2959 = vrot.slane %v2957, 5
        %v2960 = vor.u32 %v2956, %v2959
        %v2961 = vrot.slane %v2960, 4
        %v2963 = vshll.u32 %v2846, 16
        %v2965 = vrot.slane %v2963, 5
        %v2966 = vsel %vm1909, %v2961, %v2965
        %v2967 = vshrl.u32 %v2846, 16
        %v2969 = vrot.slane %v2967, 4
        %v2970 = vor.u32 %v2969, %v2965
        %v2971 = vrot.slane %v2970, 4
        %v2973 = vshll.u32 %v2847, 16
        %v2975 = vrot.slane %v2973, 5
        %v2976 = vsel %vm1909, %v2971, %v2975
        %v2978 = vshrl.u32 %v2848, 16
        %v2980 = vrot.slane %v2978, 4
        %v2981 = vshll.u32 %v2848, 16
        %v2983 = vrot.slane %v2981, 5
        %v2984 = vor.u32 %v2980, %v2983
        %v2985 = vrot.slane %v2984, 4
        %v2987 = vshll.u32 %v2849, 16
        %v2989 = vrot.slane %v2987, 5
        %v2990 = vsel %vm1909, %v2985, %v2989
        %v2991 = vshrl.u32 %v2849, 16
        %v2993 = vrot.slane %v2991, 4
        %v2994 = vor.u32 %v2993, %v2989
        %v2995 = vrot.slane %v2994, 4
        %v2997 = vshll.u32 %v2850, 16
        %v2999 = vrot.slane %v2997, 5
        %v3000 = vsel %vm1909, %v2995, %v2999
        %v3002 = vshrl.u32 %v2851, 16
        %v3004 = vrot.slane %v3002, 4
        %v3005 = vshll.u32 %v2851, 16
        %v3007 = vrot.slane %v3005, 5
        %v3008 = vor.u32 %v3004, %v3007
        %v3009 = vrot.slane %v3008, 4
        %v3011 = vshll.u32 %v2852, 16
        %v3013 = vrot.slane %v3011, 5
        %v3014 = vsel %vm1909, %v3009, %v3013
        %v3015 = vshrl.u32 %v2852, 16
        %v3017 = vrot.slane %v3015, 4
        %v3018 = vor.u32 %v3017, %v3013
        %v3019 = vrot.slane %v3018, 4
        %v3021 = vshll.u32 %v2853, 16
        %v3023 = vrot.slane %v3021, 5
        %v3024 = vsel %vm1909, %v3019, %v3023
        %v3026 = vshrl.u32 %v2854, 16
        %v3028 = vrot.slane %v3026, 4
        %v3029 = vshll.u32 %v2854, 16
        %v3031 = vrot.slane %v3029, 5
        %v3032 = vor.u32 %v3028, %v3031
        %v3033 = vrot.slane %v3032, 4
        %v3035 = vshll.u32 %v2855, 16
        %v3037 = vrot.slane %v3035, 5
        %v3038 = vsel %vm1909, %v3033, %v3037
        %v3039 = vshrl.u32 %v2855, 16
        %v3041 = vrot.slane %v3039, 4
        %v3042 = vor.u32 %v3041, %v3037
        %v3043 = vrot.slane %v3042, 4
        %v3045 = vshll.u32 %v2856, 16
        %v3047 = vrot.slane %v3045, 5
        %v3048 = vsel %vm1909, %v3043, %v3047
        %s3049 = scalar_lea.vmem [#allocation9], 256
        %v3050 = vld [vmem:[%s3049] sm:$0xf]
        %v3051 = vld [vmem:[%s3049 + $0x4] sm:$0xf]
        %v3052 = vld [vmem:[%s3049 + $0x8] sm:$0xf]
        %v3053 = vld [vmem:[%s3049 + $0xc] sm:$0xf]
        %v3054 = vld [vmem:[%s3049 + $0x10] sm:$0xf]
        %v3055 = vld [vmem:[%s3049 + $0x14] sm:$0xf]
        %v3056 = vld [vmem:[%s3049 + $0x18] sm:$0xf]
        %v3057 = vld [vmem:[%s3049 + $0x1c] sm:$0xf]
        %v3058 = vld [vmem:[%s3049 + $0x20] sm:$0xf]
        %v3059 = vld [vmem:[%s3049 + $0x24] sm:$0xf]
        %v3060 = vld [vmem:[%s3049 + $0x28] sm:$0xf]
        %v3061 = vld [vmem:[%s3049 + $0x2c] sm:$0xf]
        %v3062 = vld [vmem:[%s3049 + $0x30] sm:$0xf]
        %v3063 = vld [vmem:[%s3049 + $0x34] sm:$0xf]
        %v3064 = vld [vmem:[%s3049 + $0x38] sm:$0xf]
        %v3065 = vld [vmem:[%s3049 + $0x3c] sm:$0xf]
        %v3066 = vunpack.c.l.b16 %v2870
        %v3067 = vunpack.c.l.b16 %v2880
        %v3068 = vunpack.c.l.b16 %v2894
        %v3069 = vunpack.c.l.b16 %v2904
        %v3070 = vunpack.c.l.b16 %v2918
        %v3071 = vunpack.c.l.b16 %v2928
        %v3072 = vunpack.c.l.b16 %v2942
        %v3073 = vunpack.c.l.b16 %v2952
        %v3074 = vunpack.c.l.b16 %v2966
        %v3075 = vunpack.c.l.b16 %v2976
        %v3076 = vunpack.c.l.b16 %v2990
        %v3077 = vunpack.c.l.b16 %v3000
        %v3078 = vunpack.c.l.b16 %v3014
        %v3079 = vunpack.c.l.b16 %v3024
        %v3080 = vunpack.c.l.b16 %v3038
        %v3081 = vunpack.c.l.b16 %v3048
        %v3082 = vpack.c.b16 %v3067, %v3066
        %v3083 = vpack.c.b16 %v3069, %v3068
        %v3084 = vpack.c.b16 %v3071, %v3070
        %v3085 = vpack.c.b16 %v3073, %v3072
        %v3086 = vpack.c.b16 %v3075, %v3074
        %v3087 = vpack.c.b16 %v3077, %v3076
        %v3088 = vpack.c.b16 %v3079, %v3078
        %v3089 = vpack.c.b16 %v3081, %v3080
        %v3114 = vunpack.c.l.b16 %v3050
        %v3115 = vunpack.c.l.b16 %v3051
        %v3116 = vunpack.c.l.b16 %v3052
        %v3117 = vunpack.c.l.b16 %v3053
        %v3118 = vunpack.c.l.b16 %v3054
        %v3119 = vunpack.c.l.b16 %v3055
        %v3120 = vunpack.c.l.b16 %v3056
        %v3121 = vunpack.c.l.b16 %v3057
        %v3122 = vunpack.c.l.b16 %v3058
        %v3123 = vunpack.c.l.b16 %v3059
        %v3124 = vunpack.c.l.b16 %v3060
        %v3125 = vunpack.c.l.b16 %v3061
        %v3126 = vunpack.c.l.b16 %v3062
        %v3127 = vunpack.c.l.b16 %v3063
        %v3128 = vunpack.c.l.b16 %v3064
        %v3129 = vunpack.c.l.b16 %v3065
        %v3130 = vpack.c.b16 %v3115, %v3114
        %v3131 = vpack.c.b16 %v3117, %v3116
        %v3132 = vpack.c.b16 %v3119, %v3118
        %v3133 = vpack.c.b16 %v3121, %v3120
        %v3134 = vpack.c.b16 %v3123, %v3122
        %v3135 = vpack.c.b16 %v3125, %v3124
        %v3136 = vpack.c.b16 %v3127, %v3126
        %v3137 = vpack.c.b16 %v3129, %v3128
        %3146 = vmatpush.bf16.msra.mxu0 %v3137
        %3147 = vmatpush.bf16.msra.mxu0 %v3136
        %3148 = vmatpush.bf16.msra.mxu0 %v3135
        %3149 = vmatpush.bf16.msra.mxu0 %v3134
        %3150 = vmatpush.bf16.msra.mxu0 %v3133
        %3151 = vmatpush.bf16.msra.mxu0 %v3132
        %3152 = vmatpush.bf16.msra.mxu0 %v3131
        %3153 = vmatpush.bf16.msra.mxu0 %v3130
        %3154 = vmatmul.bf16.gmra.mxu0 %v3082
        %v3155 = vpop.f32.mrf.mxu0
        %v3156 = vadd.f32 0.0, %v3155
        %v3157 = vpop.f32.mrf.mxu0
        %v3158 = vadd.f32 0.0, %v3157
        %3159 = vmatmul.bf16.gmra.mxu0 %v3083
        %v3160 = vpop.f32.mrf.mxu0
        %v3161 = vadd.f32 0.0, %v3160
        %v3162 = vpop.f32.mrf.mxu0
        %v3163 = vadd.f32 0.0, %v3162
        %3164 = vmatmul.bf16.gmra.mxu0 %v3084
        %v3165 = vpop.f32.mrf.mxu0
        %v3166 = vadd.f32 0.0, %v3165
        %v3167 = vpop.f32.mrf.mxu0
        %v3168 = vadd.f32 0.0, %v3167
        %3169 = vmatmul.bf16.gmra.mxu0 %v3085
        %v3170 = vpop.f32.mrf.mxu0
        %v3171 = vadd.f32 0.0, %v3170
        %v3172 = vpop.f32.mrf.mxu0
        %v3173 = vadd.f32 0.0, %v3172
        %3174 = vmatmul.bf16.gmra.mxu0 %v3086
        %v3175 = vpop.f32.mrf.mxu0
        %v3176 = vadd.f32 0.0, %v3175
        %v3177 = vpop.f32.mrf.mxu0
        %v3178 = vadd.f32 0.0, %v3177
        %3179 = vmatmul.bf16.gmra.mxu0 %v3087
        %v3180 = vpop.f32.mrf.mxu0
        %v3181 = vadd.f32 0.0, %v3180
        %v3182 = vpop.f32.mrf.mxu0
        %v3183 = vadd.f32 0.0, %v3182
        %3184 = vmatmul.bf16.gmra.mxu0 %v3088
        %v3185 = vpop.f32.mrf.mxu0
        %v3186 = vadd.f32 0.0, %v3185
        %v3187 = vpop.f32.mrf.mxu0
        %v3188 = vadd.f32 0.0, %v3187
        %3189 = vmatmul.bf16.gmra.mxu0 %v3089
        %v3190 = vpop.f32.mrf.mxu0
        %v3191 = vadd.f32 0.0, %v3190
        %v3192 = vpop.f32.mrf.mxu0
        %v3193 = vadd.f32 0.0, %v3192
        %3194 = vdwg.mxu0
        %v3195 = vadd.f32 %v2817, %v3156
        %v3196 = vadd.f32 %v2818, %v3158
        %v3197 = vadd.f32 %v2819, %v3161
        %v3198 = vadd.f32 %v2820, %v3163
        %v3199 = vadd.f32 %v2821, %v3166
        %v3200 = vadd.f32 %v2822, %v3168
        %v3201 = vadd.f32 %v2823, %v3171
        %v3202 = vadd.f32 %v2824, %v3173
        %v3203 = vadd.f32 %v2825, %v3176
        %v3204 = vadd.f32 %v2826, %v3178
        %v3205 = vadd.f32 %v2827, %v3181
        %v3206 = vadd.f32 %v2828, %v3183
        %v3207 = vadd.f32 %v2829, %v3186
        %v3208 = vadd.f32 %v2830, %v3188
        %v3209 = vadd.f32 %v2831, %v3191
        %v3210 = vadd.f32 %v2832, %v3193
        %v3211 = vld [vmem:[%s2638] sm:$0xe]
        %v3212 = vld [vmem:[%s2638 + $0x10] sm:$0xe]
        %v3213 = vld [vmem:[%s2638 + $0x20] sm:$0xe]
        %v3214 = vld [vmem:[%s2638 + $0x30] sm:$0xe]
        %v3215 = vld [vmem:[%s2638 + $0x40] sm:$0xe]
        %v3216 = vld [vmem:[%s2638 + $0x50] sm:$0xe]
        %v3217 = vld [vmem:[%s2638 + $0x60] sm:$0xe]
        %v3218 = vld [vmem:[%s2638 + $0x70] sm:$0xe]
        %v3243 = vrot.slane %v3211, 5
        %v3244 = vrot.slane %v3243, 4
        %v3245 = vrot.slane %v2834, 5
        %v3246 = vsel %vm2419, %v3244, %v3245
        %v3247 = vrot.slane %v3245, 4
        %v3248 = vrot.slane %v2835, 5
        %v3249 = vsel %vm2419, %v3247, %v3248
        %v3250 = vrot.slane %v3212, 5
        %v3251 = vrot.slane %v3250, 4
        %v3252 = vrot.slane %v2837, 5
        %v3253 = vsel %vm2419, %v3251, %v3252
        %v3254 = vrot.slane %v3252, 4
        %v3255 = vrot.slane %v2838, 5
        %v3256 = vsel %vm2419, %v3254, %v3255
        %v3257 = vrot.slane %v3213, 5
        %v3258 = vrot.slane %v3257, 4
        %v3259 = vrot.slane %v2840, 5
        %v3260 = vsel %vm2419, %v3258, %v3259
        %v3261 = vrot.slane %v3259, 4
        %v3262 = vrot.slane %v2841, 5
        %v3263 = vsel %vm2419, %v3261, %v3262
        %v3264 = vrot.slane %v3214, 5
        %v3265 = vrot.slane %v3264, 4
        %v3266 = vrot.slane %v2843, 5
        %v3267 = vsel %vm2419, %v3265, %v3266
        %v3268 = vrot.slane %v3266, 4
        %v3269 = vrot.slane %v2844, 5
        %v3270 = vsel %vm2419, %v3268, %v3269
        %v3271 = vrot.slane %v3215, 5
        %v3272 = vrot.slane %v3271, 4
        %v3273 = vrot.slane %v2846, 5
        %v3274 = vsel %vm2419, %v3272, %v3273
        %v3275 = vrot.slane %v3273, 4
        %v3276 = vrot.slane %v2847, 5
        %v3277 = vsel %vm2419, %v3275, %v3276
        %v3278 = vrot.slane %v3216, 5
        %v3279 = vrot.slane %v3278, 4
        %v3280 = vrot.slane %v2849, 5
        %v3281 = vsel %vm2419, %v3279, %v3280
        %v3282 = vrot.slane %v3280, 4
        %v3283 = vrot.slane %v2850, 5
        %v3284 = vsel %vm2419, %v3282, %v3283
        %v3285 = vrot.slane %v3217, 5
        %v3286 = vrot.slane %v3285, 4
        %v3287 = vrot.slane %v2852, 5
        %v3288 = vsel %vm2419, %v3286, %v3287
        %v3289 = vrot.slane %v3287, 4
        %v3290 = vrot.slane %v2853, 5
        %v3291 = vsel %vm2419, %v3289, %v3290
        %v3292 = vrot.slane %v3218, 5
        %v3293 = vrot.slane %v3292, 4
        %v3294 = vrot.slane %v2855, 5
        %v3295 = vsel %vm2419, %v3293, %v3294
        %v3296 = vrot.slane %v3294, 4
        %v3297 = vrot.slane %v2856, 5
        %v3298 = vsel %vm2419, %v3296, %v3297
        %s3299 = scalar_lea.vmem [#allocation9], 320
        %v3300 = vld [vmem:[%s3299] sm:$0xf]
        %v3301 = vld [vmem:[%s3299 + $0x4] sm:$0xf]
        %v3302 = vld [vmem:[%s3299 + $0x8] sm:$0xf]
        %v3303 = vld [vmem:[%s3299 + $0xc] sm:$0xf]
        %v3304 = vld [vmem:[%s3299 + $0x10] sm:$0xf]
        %v3305 = vld [vmem:[%s3299 + $0x14] sm:$0xf]
        %v3306 = vld [vmem:[%s3299 + $0x18] sm:$0xf]
        %v3307 = vld [vmem:[%s3299 + $0x1c] sm:$0xf]
        %v3308 = vld [vmem:[%s3299 + $0x20] sm:$0xf]
        %v3309 = vld [vmem:[%s3299 + $0x24] sm:$0xf]
        %v3310 = vld [vmem:[%s3299 + $0x28] sm:$0xf]
        %v3311 = vld [vmem:[%s3299 + $0x2c] sm:$0xf]
        %v3312 = vld [vmem:[%s3299 + $0x30] sm:$0xf]
        %v3313 = vld [vmem:[%s3299 + $0x34] sm:$0xf]
        %v3314 = vld [vmem:[%s3299 + $0x38] sm:$0xf]
        %v3315 = vld [vmem:[%s3299 + $0x3c] sm:$0xf]
        %v3316 = vunpack.c.l.b16 %v3246
        %v3317 = vunpack.c.l.b16 %v3249
        %v3318 = vunpack.c.l.b16 %v3253
        %v3319 = vunpack.c.l.b16 %v3256
        %v3320 = vunpack.c.l.b16 %v3260
        %v3321 = vunpack.c.l.b16 %v3263
        %v3322 = vunpack.c.l.b16 %v3267
        %v3323 = vunpack.c.l.b16 %v3270
        %v3324 = vunpack.c.l.b16 %v3274
        %v3325 = vunpack.c.l.b16 %v3277
        %v3326 = vunpack.c.l.b16 %v3281
        %v3327 = vunpack.c.l.b16 %v3284
        %v3328 = vunpack.c.l.b16 %v3288
        %v3329 = vunpack.c.l.b16 %v3291
        %v3330 = vunpack.c.l.b16 %v3295
        %v3331 = vunpack.c.l.b16 %v3298
        %v3332 = vpack.c.b16 %v3317, %v3316
        %v3333 = vpack.c.b16 %v3319, %v3318
        %v3334 = vpack.c.b16 %v3321, %v3320
        %v3335 = vpack.c.b16 %v3323, %v3322
        %v3336 = vpack.c.b16 %v3325, %v3324
        %v3337 = vpack.c.b16 %v3327, %v3326
        %v3338 = vpack.c.b16 %v3329, %v3328
        %v3339 = vpack.c.b16 %v3331, %v3330
        %v3364 = vunpack.c.l.b16 %v3300
        %v3365 = vunpack.c.l.b16 %v3301
        %v3366 = vunpack.c.l.b16 %v3302
        %v3367 = vunpack.c.l.b16 %v3303
        %v3368 = vunpack.c.l.b16 %v3304
        %v3369 = vunpack.c.l.b16 %v3305
        %v3370 = vunpack.c.l.b16 %v3306
        %v3371 = vunpack.c.l.b16 %v3307
        %v3372 = vunpack.c.l.b16 %v3308
        %v3373 = vunpack.c.l.b16 %v3309
        %v3374 = vunpack.c.l.b16 %v3310
        %v3375 = vunpack.c.l.b16 %v3311
        %v3376 = vunpack.c.l.b16 %v3312
        %v3377 = vunpack.c.l.b16 %v3313
        %v3378 = vunpack.c.l.b16 %v3314
        %v3379 = vunpack.c.l.b16 %v3315
        %v3380 = vpack.c.b16 %v3365, %v3364
        %v3381 = vpack.c.b16 %v3367, %v3366
        %v3382 = vpack.c.b16 %v3369, %v3368
        %v3383 = vpack.c.b16 %v3371, %v3370
        %v3384 = vpack.c.b16 %v3373, %v3372
        %v3385 = vpack.c.b16 %v3375, %v3374
        %v3386 = vpack.c.b16 %v3377, %v3376
        %v3387 = vpack.c.b16 %v3379, %v3378
        %3396 = vmatpush.bf16.msra.mxu0 %v3387
        %3397 = vmatpush.bf16.msra.mxu0 %v3386
        %3398 = vmatpush.bf16.msra.mxu0 %v3385
        %3399 = vmatpush.bf16.msra.mxu0 %v3384
        %3400 = vmatpush.bf16.msra.mxu0 %v3383
        %3401 = vmatpush.bf16.msra.mxu0 %v3382
        %3402 = vmatpush.bf16.msra.mxu0 %v3381
        %3403 = vmatpush.bf16.msra.mxu0 %v3380
        %3404 = vmatmul.bf16.gmra.mxu0 %v3332
        %v3405 = vpop.f32.mrf.mxu0
        %v3406 = vadd.f32 0.0, %v3405
        %v3407 = vpop.f32.mrf.mxu0
        %v3408 = vadd.f32 0.0, %v3407
        %3409 = vmatmul.bf16.gmra.mxu0 %v3333
        %v3410 = vpop.f32.mrf.mxu0
        %v3411 = vadd.f32 0.0, %v3410
        %v3412 = vpop.f32.mrf.mxu0
        %v3413 = vadd.f32 0.0, %v3412
        %3414 = vmatmul.bf16.gmra.mxu0 %v3334
        %v3415 = vpop.f32.mrf.mxu0
        %v3416 = vadd.f32 0.0, %v3415
        %v3417 = vpop.f32.mrf.mxu0
        %v3418 = vadd.f32 0.0, %v3417
        %3419 = vmatmul.bf16.gmra.mxu0 %v3335
        %v3420 = vpop.f32.mrf.mxu0
        %v3421 = vadd.f32 0.0, %v3420
        %v3422 = vpop.f32.mrf.mxu0
        %v3423 = vadd.f32 0.0, %v3422
        %3424 = vmatmul.bf16.gmra.mxu0 %v3336
        %v3425 = vpop.f32.mrf.mxu0
        %v3426 = vadd.f32 0.0, %v3425
        %v3427 = vpop.f32.mrf.mxu0
        %v3428 = vadd.f32 0.0, %v3427
        %3429 = vmatmul.bf16.gmra.mxu0 %v3337
        %v3430 = vpop.f32.mrf.mxu0
        %v3431 = vadd.f32 0.0, %v3430
        %v3432 = vpop.f32.mrf.mxu0
        %v3433 = vadd.f32 0.0, %v3432
        %3434 = vmatmul.bf16.gmra.mxu0 %v3338
        %v3435 = vpop.f32.mrf.mxu0
        %v3436 = vadd.f32 0.0, %v3435
        %v3437 = vpop.f32.mrf.mxu0
        %v3438 = vadd.f32 0.0, %v3437
        %3439 = vmatmul.bf16.gmra.mxu0 %v3339
        %v3440 = vpop.f32.mrf.mxu0
        %v3441 = vadd.f32 0.0, %v3440
        %v3442 = vpop.f32.mrf.mxu0
        %v3443 = vadd.f32 0.0, %v3442
        %3444 = vdwg.mxu0
        %v3445 = vadd.f32 %v3195, %v3406
        %v3446 = vadd.f32 %v3196, %v3408
        %v3447 = vadd.f32 %v3197, %v3411
        %v3448 = vadd.f32 %v3198, %v3413
        %v3449 = vadd.f32 %v3199, %v3416
        %v3450 = vadd.f32 %v3200, %v3418
        %v3451 = vadd.f32 %v3201, %v3421
        %v3452 = vadd.f32 %v3202, %v3423
        %v3453 = vadd.f32 %v3203, %v3426
        %v3454 = vadd.f32 %v3204, %v3428
        %v3455 = vadd.f32 %v3205, %v3431
        %v3456 = vadd.f32 %v3206, %v3433
        %v3457 = vadd.f32 %v3207, %v3436
        %v3458 = vadd.f32 %v3208, %v3438
        %v3459 = vadd.f32 %v3209, %v3441
        %v3460 = vadd.f32 %v3210, %v3443
        %s3461 = scalar_lea.vmem [#allocation2], 32
        %v3462 = vld [vmem:[%s3461] sm:$0xf]
        %v3463 = vld [vmem:[%s3461 + $0x4] sm:$0xf]
        %v3464 = vld [vmem:[%s3461 + $0x10] sm:$0xf]
        %v3465 = vld [vmem:[%s3461 + $0x14] sm:$0xf]
        %v3466 = vld [vmem:[%s3461 + $0x20] sm:$0xf]
        %v3467 = vld [vmem:[%s3461 + $0x24] sm:$0xf]
        %v3468 = vld [vmem:[%s3461 + $0x30] sm:$0xf]
        %v3469 = vld [vmem:[%s3461 + $0x34] sm:$0xf]
        %v3470 = vld [vmem:[%s3461 + $0x40] sm:$0xf]
        %v3471 = vld [vmem:[%s3461 + $0x44] sm:$0xf]
        %v3472 = vld [vmem:[%s3461 + $0x50] sm:$0xf]
        %v3473 = vld [vmem:[%s3461 + $0x54] sm:$0xf]
        %v3474 = vld [vmem:[%s3461 + $0x60] sm:$0xf]
        %v3475 = vld [vmem:[%s3461 + $0x64] sm:$0xf]
        %v3476 = vld [vmem:[%s3461 + $0x70] sm:$0xf]
        %v3477 = vld [vmem:[%s3461 + $0x74] sm:$0xf]
        %s3478 = scalar_lea.vmem [#allocation9], 384
        %v3479 = vld [vmem:[%s3478] sm:$0xf]
        %v3480 = vld [vmem:[%s3478 + $0x4] sm:$0xf]
        %v3481 = vld [vmem:[%s3478 + $0x8] sm:$0xf]
        %v3482 = vld [vmem:[%s3478 + $0xc] sm:$0xf]
        %v3483 = vld [vmem:[%s3478 + $0x10] sm:$0xf]
        %v3484 = vld [vmem:[%s3478 + $0x14] sm:$0xf]
        %v3485 = vld [vmem:[%s3478 + $0x18] sm:$0xf]
        %v3486 = vld [vmem:[%s3478 + $0x1c] sm:$0xf]
        %v3487 = vld [vmem:[%s3478 + $0x20] sm:$0xf]
        %v3488 = vld [vmem:[%s3478 + $0x24] sm:$0xf]
        %v3489 = vld [vmem:[%s3478 + $0x28] sm:$0xf]
        %v3490 = vld [vmem:[%s3478 + $0x2c] sm:$0xf]
        %v3491 = vld [vmem:[%s3478 + $0x30] sm:$0xf]
        %v3492 = vld [vmem:[%s3478 + $0x34] sm:$0xf]
        %v3493 = vld [vmem:[%s3478 + $0x38] sm:$0xf]
        %v3494 = vld [vmem:[%s3478 + $0x3c] sm:$0xf]
        %v3511 = vunpack.c.l.b16 %v3462
        %v3512 = vunpack.c.l.b16 %v3463
        %v3513 = vunpack.c.l.b16 %v3464
        %v3514 = vunpack.c.l.b16 %v3465
        %v3515 = vunpack.c.l.b16 %v3466
        %v3516 = vunpack.c.l.b16 %v3467
        %v3517 = vunpack.c.l.b16 %v3468
        %v3518 = vunpack.c.l.b16 %v3469
        %v3519 = vunpack.c.l.b16 %v3470
        %v3520 = vunpack.c.l.b16 %v3471
        %v3521 = vunpack.c.l.b16 %v3472
        %v3522 = vunpack.c.l.b16 %v3473
        %v3523 = vunpack.c.l.b16 %v3474
        %v3524 = vunpack.c.l.b16 %v3475
        %v3525 = vunpack.c.l.b16 %v3476
        %v3526 = vunpack.c.l.b16 %v3477
        %v3527 = vpack.c.b16 %v3512, %v3511
        %v3528 = vpack.c.b16 %v3514, %v3513
        %v3529 = vpack.c.b16 %v3516, %v3515
        %v3530 = vpack.c.b16 %v3518, %v3517
        %v3531 = vpack.c.b16 %v3520, %v3519
        %v3532 = vpack.c.b16 %v3522, %v3521
        %v3533 = vpack.c.b16 %v3524, %v3523
        %v3534 = vpack.c.b16 %v3526, %v3525
        %v3559 = vunpack.c.l.b16 %v3479
        %v3560 = vunpack.c.l.b16 %v3480
        %v3561 = vunpack.c.l.b16 %v3481
        %v3562 = vunpack.c.l.b16 %v3482
        %v3563 = vunpack.c.l.b16 %v3483
        %v3564 = vunpack.c.l.b16 %v3484
        %v3565 = vunpack.c.l.b16 %v3485
        %v3566 = vunpack.c.l.b16 %v3486
        %v3567 = vunpack.c.l.b16 %v3487
        %v3568 = vunpack.c.l.b16 %v3488
        %v3569 = vunpack.c.l.b16 %v3489
        %v3570 = vunpack.c.l.b16 %v3490
        %v3571 = vunpack.c.l.b16 %v3491
        %v3572 = vunpack.c.l.b16 %v3492
        %v3573 = vunpack.c.l.b16 %v3493
        %v3574 = vunpack.c.l.b16 %v3494
        %v3575 = vpack.c.b16 %v3560, %v3559
        %v3576 = vpack.c.b16 %v3562, %v3561
        %v3577 = vpack.c.b16 %v3564, %v3563
        %v3578 = vpack.c.b16 %v3566, %v3565
        %v3579 = vpack.c.b16 %v3568, %v3567
        %v3580 = vpack.c.b16 %v3570, %v3569
        %v3581 = vpack.c.b16 %v3572, %v3571
        %v3582 = vpack.c.b16 %v3574, %v3573
        %3591 = vmatpush.bf16.msra.mxu0 %v3582
        %3592 = vmatpush.bf16.msra.mxu0 %v3581
        %3593 = vmatpush.bf16.msra.mxu0 %v3580
        %3594 = vmatpush.bf16.msra.mxu0 %v3579
        %3595 = vmatpush.bf16.msra.mxu0 %v3578
        %3596 = vmatpush.bf16.msra.mxu0 %v3577
        %3597 = vmatpush.bf16.msra.mxu0 %v3576
        %3598 = vmatpush.bf16.msra.mxu0 %v3575
        %3599 = vmatmul.bf16.gmra.mxu0 %v3527
        %v3600 = vpop.f32.mrf.mxu0
        %v3601 = vadd.f32 0.0, %v3600
        %v3602 = vpop.f32.mrf.mxu0
        %v3603 = vadd.f32 0.0, %v3602
        %3604 = vmatmul.bf16.gmra.mxu0 %v3528
        %v3605 = vpop.f32.mrf.mxu0
        %v3606 = vadd.f32 0.0, %v3605
        %v3607 = vpop.f32.mrf.mxu0
        %v3608 = vadd.f32 0.0, %v3607
        %3609 = vmatmul.bf16.gmra.mxu0 %v3529
        %v3610 = vpop.f32.mrf.mxu0
        %v3611 = vadd.f32 0.0, %v3610
        %v3612 = vpop.f32.mrf.mxu0
        %v3613 = vadd.f32 0.0, %v3612
        %3614 = vmatmul.bf16.gmra.mxu0 %v3530
        %v3615 = vpop.f32.mrf.mxu0
        %v3616 = vadd.f32 0.0, %v3615
        %v3617 = vpop.f32.mrf.mxu0
        %v3618 = vadd.f32 0.0, %v3617
        %3619 = vmatmul.bf16.gmra.mxu0 %v3531
        %v3620 = vpop.f32.mrf.mxu0
        %v3621 = vadd.f32 0.0, %v3620
        %v3622 = vpop.f32.mrf.mxu0
        %v3623 = vadd.f32 0.0, %v3622
        %3624 = vmatmul.bf16.gmra.mxu0 %v3532
        %v3625 = vpop.f32.mrf.mxu0
        %v3626 = vadd.f32 0.0, %v3625
        %v3627 = vpop.f32.mrf.mxu0
        %v3628 = vadd.f32 0.0, %v3627
        %3629 = vmatmul.bf16.gmra.mxu0 %v3533
        %v3630 = vpop.f32.mrf.mxu0
        %v3631 = vadd.f32 0.0, %v3630
        %v3632 = vpop.f32.mrf.mxu0
        %v3633 = vadd.f32 0.0, %v3632
        %3634 = vmatmul.bf16.gmra.mxu0 %v3534
        %v3635 = vpop.f32.mrf.mxu0
        %v3636 = vadd.f32 0.0, %v3635
        %v3637 = vpop.f32.mrf.mxu0
        %v3638 = vadd.f32 0.0, %v3637
        %3639 = vdwg.mxu0
        %v3640 = vadd.f32 %v3445, %v3601
        %v3641 = vadd.f32 %v3446, %v3603
        %v3642 = vadd.f32 %v3447, %v3606
        %v3643 = vadd.f32 %v3448, %v3608
        %v3644 = vadd.f32 %v3449, %v3611
        %v3645 = vadd.f32 %v3450, %v3613
        %v3646 = vadd.f32 %v3451, %v3616
        %v3647 = vadd.f32 %v3452, %v3618
        %v3648 = vadd.f32 %v3453, %v3621
        %v3649 = vadd.f32 %v3454, %v3623
        %v3650 = vadd.f32 %v3455, %v3626
        %v3651 = vadd.f32 %v3456, %v3628
        %v3652 = vadd.f32 %v3457, %v3631
        %v3653 = vadd.f32 %v3458, %v3633
        %v3654 = vadd.f32 %v3459, %v3636
        %v3655 = vadd.f32 %v3460, %v3638
        %v3656 = vld [vmem:[%s3461] sm:$0xf]
        %v3657 = vld [vmem:[%s3461 + $0x4] sm:$0xf]
        %v3658 = vld [vmem:[%s3461 + $0x8] sm:$0x1]
        %v3659 = vld [vmem:[%s3461 + $0x10] sm:$0xf]
        %v3660 = vld [vmem:[%s3461 + $0x14] sm:$0xf]
        %v3661 = vld [vmem:[%s3461 + $0x18] sm:$0x1]
        %v3662 = vld [vmem:[%s3461 + $0x20] sm:$0xf]
        %v3663 = vld [vmem:[%s3461 + $0x24] sm:$0xf]
        %v3664 = vld [vmem:[%s3461 + $0x28] sm:$0x1]
        %v3665 = vld [vmem:[%s3461 + $0x30] sm:$0xf]
        %v3666 = vld [vmem:[%s3461 + $0x34] sm:$0xf]
        %v3667 = vld [vmem:[%s3461 + $0x38] sm:$0x1]
        %v3668 = vld [vmem:[%s3461 + $0x40] sm:$0xf]
        %v3669 = vld [vmem:[%s3461 + $0x44] sm:$0xf]
        %v3670 = vld [vmem:[%s3461 + $0x48] sm:$0x1]
        %v3671 = vld [vmem:[%s3461 + $0x50] sm:$0xf]
        %v3672 = vld [vmem:[%s3461 + $0x54] sm:$0xf]
        %v3673 = vld [vmem:[%s3461 + $0x58] sm:$0x1]
        %v3674 = vld [vmem:[%s3461 + $0x60] sm:$0xf]
        %v3675 = vld [vmem:[%s3461 + $0x64] sm:$0xf]
        %v3676 = vld [vmem:[%s3461 + $0x68] sm:$0x1]
        %v3677 = vld [vmem:[%s3461 + $0x70] sm:$0xf]
        %v3678 = vld [vmem:[%s3461 + $0x74] sm:$0xf]
        %v3679 = vld [vmem:[%s3461 + $0x78] sm:$0x1]
        %v3681 = vshrl.u32 %v3656, 16
        %v3683 = vrot.slane %v3681, 4
        %v3684 = vshll.u32 %v3656, 16
        %v3686 = vrot.slane %v3684, 5
        %v3687 = vor.u32 %v3683, %v3686
        %v3688 = vrot.slane %v3687, 4
        %v3690 = vshll.u32 %v3657, 16
        %v3692 = vrot.slane %v3690, 5
        %v3693 = vsel %vm1909, %v3688, %v3692
        %v3694 = vshrl.u32 %v3657, 16
        %v3696 = vrot.slane %v3694, 4
        %v3697 = vor.u32 %v3696, %v3692
        %v3698 = vrot.slane %v3697, 4
        %v3700 = vshll.u32 %v3658, 16
        %v3702 = vrot.slane %v3700, 5
        %v3703 = vsel %vm1909, %v3698, %v3702
        %v3705 = vshrl.u32 %v3659, 16
        %v3707 = vrot.slane %v3705, 4
        %v3708 = vshll.u32 %v3659, 16
        %v3710 = vrot.slane %v3708, 5
        %v3711 = vor.u32 %v3707, %v3710
        %v3712 = vrot.slane %v3711, 4
        %v3714 = vshll.u32 %v3660, 16
        %v3716 = vrot.slane %v3714, 5
        %v3717 = vsel %vm1909, %v3712, %v3716
        %v3718 = vshrl.u32 %v3660, 16
        %v3720 = vrot.slane %v3718, 4
        %v3721 = vor.u32 %v3720, %v3716
        %v3722 = vrot.slane %v3721, 4
        %v3724 = vshll.u32 %v3661, 16
        %v3726 = vrot.slane %v3724, 5
        %v3727 = vsel %vm1909, %v3722, %v3726
        %v3729 = vshrl.u32 %v3662, 16
        %v3731 = vrot.slane %v3729, 4
        %v3732 = vshll.u32 %v3662, 16
        %v3734 = vrot.slane %v3732, 5
        %v3735 = vor.u32 %v3731, %v3734
        %v3736 = vrot.slane %v3735, 4
        %v3738 = vshll.u32 %v3663, 16
        %v3740 = vrot.slane %v3738, 5
        %v3741 = vsel %vm1909, %v3736, %v3740
        %v3742 = vshrl.u32 %v3663, 16
        %v3744 = vrot.slane %v3742, 4
        %v3745 = vor.u32 %v3744, %v3740
        %v3746 = vrot.slane %v3745, 4
        %v3748 = vshll.u32 %v3664, 16
        %v3750 = vrot.slane %v3748, 5
        %v3751 = vsel %vm1909, %v3746, %v3750
        %v3753 = vshrl.u32 %v3665, 16
        %v3755 = vrot.slane %v3753, 4
        %v3756 = vshll.u32 %v3665, 16
        %v3758 = vrot.slane %v3756, 5
        %v3759 = vor.u32 %v3755, %v3758
        %v3760 = vrot.slane %v3759, 4
        %v3762 = vshll.u32 %v3666, 16
        %v3764 = vrot.slane %v3762, 5
        %v3765 = vsel %vm1909, %v3760, %v3764
        %v3766 = vshrl.u32 %v3666, 16
        %v3768 = vrot.slane %v3766, 4
        %v3769 = vor.u32 %v3768, %v3764
        %v3770 = vrot.slane %v3769, 4
        %v3772 = vshll.u32 %v3667, 16
        %v3774 = vrot.slane %v3772, 5
        %v3775 = vsel %vm1909, %v3770, %v3774
        %v3777 = vshrl.u32 %v3668, 16
        %v3779 = vrot.slane %v3777, 4
        %v3780 = vshll.u32 %v3668, 16
        %v3782 = vrot.slane %v3780, 5
        %v3783 = vor.u32 %v3779, %v3782
        %v3784 = vrot.slane %v3783, 4
        %v3786 = vshll.u32 %v3669, 16
        %v3788 = vrot.slane %v3786, 5
        %v3789 = vsel %vm1909, %v3784, %v3788
        %v3790 = vshrl.u32 %v3669, 16
        %v3792 = vrot.slane %v3790, 4
        %v3793 = vor.u32 %v3792, %v3788
        %v3794 = vrot.slane %v3793, 4
        %v3796 = vshll.u32 %v3670, 16
        %v3798 = vrot.slane %v3796, 5
        %v3799 = vsel %vm1909, %v3794, %v3798
        %v3801 = vshrl.u32 %v3671, 16
        %v3803 = vrot.slane %v3801, 4
        %v3804 = vshll.u32 %v3671, 16
        %v3806 = vrot.slane %v3804, 5
        %v3807 = vor.u32 %v3803, %v3806
        %v3808 = vrot.slane %v3807, 4
        %v3810 = vshll.u32 %v3672, 16
        %v3812 = vrot.slane %v3810, 5
        %v3813 = vsel %vm1909, %v3808, %v3812
        %v3814 = vshrl.u32 %v3672, 16
        %v3816 = vrot.slane %v3814, 4
        %v3817 = vor.u32 %v3816, %v3812
        %v3818 = vrot.slane %v3817, 4
        %v3820 = vshll.u32 %v3673, 16
        %v3822 = vrot.slane %v3820, 5
        %v3823 = vsel %vm1909, %v3818, %v3822
        %v3825 = vshrl.u32 %v3674, 16
        %v3827 = vrot.slane %v3825, 4
        %v3828 = vshll.u32 %v3674, 16
        %v3830 = vrot.slane %v3828, 5
        %v3831 = vor.u32 %v3827, %v3830
        %v3832 = vrot.slane %v3831, 4
        %v3834 = vshll.u32 %v3675, 16
        %v3836 = vrot.slane %v3834, 5
        %v3837 = vsel %vm1909, %v3832, %v3836
        %v3838 = vshrl.u32 %v3675, 16
        %v3840 = vrot.slane %v3838, 4
        %v3841 = vor.u32 %v3840, %v3836
        %v3842 = vrot.slane %v3841, 4
        %v3844 = vshll.u32 %v3676, 16
        %v3846 = vrot.slane %v3844, 5
        %v3847 = vsel %vm1909, %v3842, %v3846
        %v3849 = vshrl.u32 %v3677, 16
        %v3851 = vrot.slane %v3849, 4
        %v3852 = vshll.u32 %v3677, 16
        %v3854 = vrot.slane %v3852, 5
        %v3855 = vor.u32 %v3851, %v3854
        %v3856 = vrot.slane %v3855, 4
        %v3858 = vshll.u32 %v3678, 16
        %v3860 = vrot.slane %v3858, 5
        %v3861 = vsel %vm1909, %v3856, %v3860
        %v3862 = vshrl.u32 %v3678, 16
        %v3864 = vrot.slane %v3862, 4
        %v3865 = vor.u32 %v3864, %v3860
        %v3866 = vrot.slane %v3865, 4
        %v3868 = vshll.u32 %v3679, 16
        %v3870 = vrot.slane %v3868, 5
        %v3871 = vsel %vm1909, %v3866, %v3870
        %s3872 = scalar_lea.vmem [#allocation9], 448
        %v3873 = vld [vmem:[%s3872] sm:$0xf]
        %v3874 = vld [vmem:[%s3872 + $0x4] sm:$0xf]
        %v3875 = vld [vmem:[%s3872 + $0x8] sm:$0xf]
        %v3876 = vld [vmem:[%s3872 + $0xc] sm:$0xf]
        %v3877 = vld [vmem:[%s3872 + $0x10] sm:$0xf]
        %v3878 = vld [vmem:[%s3872 + $0x14] sm:$0xf]
        %v3879 = vld [vmem:[%s3872 + $0x18] sm:$0xf]
        %v3880 = vld [vmem:[%s3872 + $0x1c] sm:$0xf]
        %v3881 = vld [vmem:[%s3872 + $0x20] sm:$0xf]
        %v3882 = vld [vmem:[%s3872 + $0x24] sm:$0xf]
        %v3883 = vld [vmem:[%s3872 + $0x28] sm:$0xf]
        %v3884 = vld [vmem:[%s3872 + $0x2c] sm:$0xf]
        %v3885 = vld [vmem:[%s3872 + $0x30] sm:$0xf]
        %v3886 = vld [vmem:[%s3872 + $0x34] sm:$0xf]
        %v3887 = vld [vmem:[%s3872 + $0x38] sm:$0xf]
        %v3888 = vld [vmem:[%s3872 + $0x3c] sm:$0xf]
        %v3889 = vunpack.c.l.b16 %v3693
        %v3890 = vunpack.c.l.b16 %v3703
        %v3891 = vunpack.c.l.b16 %v3717
        %v3892 = vunpack.c.l.b16 %v3727
        %v3893 = vunpack.c.l.b16 %v3741
        %v3894 = vunpack.c.l.b16 %v3751
        %v3895 = vunpack.c.l.b16 %v3765
        %v3896 = vunpack.c.l.b16 %v3775
        %v3897 = vunpack.c.l.b16 %v3789
        %v3898 = vunpack.c.l.b16 %v3799
        %v3899 = vunpack.c.l.b16 %v3813
        %v3900 = vunpack.c.l.b16 %v3823
        %v3901 = vunpack.c.l.b16 %v3837
        %v3902 = vunpack.c.l.b16 %v3847
        %v3903 = vunpack.c.l.b16 %v3861
        %v3904 = vunpack.c.l.b16 %v3871
        %v3905 = vpack.c.b16 %v3890, %v3889
        %v3906 = vpack.c.b16 %v3892, %v3891
        %v3907 = vpack.c.b16 %v3894, %v3893
        %v3908 = vpack.c.b16 %v3896, %v3895
        %v3909 = vpack.c.b16 %v3898, %v3897
        %v3910 = vpack.c.b16 %v3900, %v3899
        %v3911 = vpack.c.b16 %v3902, %v3901
        %v3912 = vpack.c.b16 %v3904, %v3903
        %v3937 = vunpack.c.l.b16 %v3873
        %v3938 = vunpack.c.l.b16 %v3874
        %v3939 = vunpack.c.l.b16 %v3875
        %v3940 = vunpack.c.l.b16 %v3876
        %v3941 = vunpack.c.l.b16 %v3877
        %v3942 = vunpack.c.l.b16 %v3878
        %v3943 = vunpack.c.l.b16 %v3879
        %v3944 = vunpack.c.l.b16 %v3880
        %v3945 = vunpack.c.l.b16 %v3881
        %v3946 = vunpack.c.l.b16 %v3882
        %v3947 = vunpack.c.l.b16 %v3883
        %v3948 = vunpack.c.l.b16 %v3884
        %v3949 = vunpack.c.l.b16 %v3885
        %v3950 = vunpack.c.l.b16 %v3886
        %v3951 = vunpack.c.l.b16 %v3887
        %v3952 = vunpack.c.l.b16 %v3888
        %v3953 = vpack.c.b16 %v3938, %v3937
        %v3954 = vpack.c.b16 %v3940, %v3939
        %v3955 = vpack.c.b16 %v3942, %v3941
        %v3956 = vpack.c.b16 %v3944, %v3943
        %v3957 = vpack.c.b16 %v3946, %v3945
        %v3958 = vpack.c.b16 %v3948, %v3947
        %v3959 = vpack.c.b16 %v3950, %v3949
        %v3960 = vpack.c.b16 %v3952, %v3951
        %3969 = vmatpush.bf16.msra.mxu0 %v3960
        %3970 = vmatpush.bf16.msra.mxu0 %v3959
        %3971 = vmatpush.bf16.msra.mxu0 %v3958
        %3972 = vmatpush.bf16.msra.mxu0 %v3957
        %3973 = vmatpush.bf16.msra.mxu0 %v3956
        %3974 = vmatpush.bf16.msra.mxu0 %v3955
        %3975 = vmatpush.bf16.msra.mxu0 %v3954
        %3976 = vmatpush.bf16.msra.mxu0 %v3953
        %3977 = vmatmul.bf16.gmra.mxu0 %v3905
        %v3978 = vpop.f32.mrf.mxu0
        %v3979 = vadd.f32 0.0, %v3978
        %v3980 = vpop.f32.mrf.mxu0
        %v3981 = vadd.f32 0.0, %v3980
        %3982 = vmatmul.bf16.gmra.mxu0 %v3906
        %v3983 = vpop.f32.mrf.mxu0
        %v3984 = vadd.f32 0.0, %v3983
        %v3985 = vpop.f32.mrf.mxu0
        %v3986 = vadd.f32 0.0, %v3985
        %3987 = vmatmul.bf16.gmra.mxu0 %v3907
        %v3988 = vpop.f32.mrf.mxu0
        %v3989 = vadd.f32 0.0, %v3988
        %v3990 = vpop.f32.mrf.mxu0
        %v3991 = vadd.f32 0.0, %v3990
        %3992 = vmatmul.bf16.gmra.mxu0 %v3908
        %v3993 = vpop.f32.mrf.mxu0
        %v3994 = vadd.f32 0.0, %v3993
        %v3995 = vpop.f32.mrf.mxu0
        %v3996 = vadd.f32 0.0, %v3995
        %3997 = vmatmul.bf16.gmra.mxu0 %v3909
        %v3998 = vpop.f32.mrf.mxu0
        %v3999 = vadd.f32 0.0, %v3998
        %v4000 = vpop.f32.mrf.mxu0
        %v4001 = vadd.f32 0.0, %v4000
        %4002 = vmatmul.bf16.gmra.mxu0 %v3910
        %v4003 = vpop.f32.mrf.mxu0
        %v4004 = vadd.f32 0.0, %v4003
        %v4005 = vpop.f32.mrf.mxu0
        %v4006 = vadd.f32 0.0, %v4005
        %4007 = vmatmul.bf16.gmra.mxu0 %v3911
        %v4008 = vpop.f32.mrf.mxu0
        %v4009 = vadd.f32 0.0, %v4008
        %v4010 = vpop.f32.mrf.mxu0
        %v4011 = vadd.f32 0.0, %v4010
        %4012 = vmatmul.bf16.gmra.mxu0 %v3912
        %v4013 = vpop.f32.mrf.mxu0
        %v4014 = vadd.f32 0.0, %v4013
        %v4015 = vpop.f32.mrf.mxu0
        %v4016 = vadd.f32 0.0, %v4015
        %4017 = vdwg.mxu0
        %v4018 = vadd.f32 %v3640, %v3979
        %v4019 = vadd.f32 %v3641, %v3981
        %v4020 = vadd.f32 %v3642, %v3984
        %v4021 = vadd.f32 %v3643, %v3986
        %v4022 = vadd.f32 %v3644, %v3989
        %v4023 = vadd.f32 %v3645, %v3991
        %v4024 = vadd.f32 %v3646, %v3994
        %v4025 = vadd.f32 %v3647, %v3996
        %v4026 = vadd.f32 %v3648, %v3999
        %v4027 = vadd.f32 %v3649, %v4001
        %v4028 = vadd.f32 %v3650, %v4004
        %v4029 = vadd.f32 %v3651, %v4006
        %v4030 = vadd.f32 %v3652, %v4009
        %v4031 = vadd.f32 %v3653, %v4011
        %v4032 = vadd.f32 %v3654, %v4014
        %v4033 = vadd.f32 %v3655, %v4016
        %v4034 = vld [vmem:[%s3461] sm:$0xe]
        %v4035 = vld [vmem:[%s3461 + $0x10] sm:$0xe]
        %v4036 = vld [vmem:[%s3461 + $0x20] sm:$0xe]
        %v4037 = vld [vmem:[%s3461 + $0x30] sm:$0xe]
        %v4038 = vld [vmem:[%s3461 + $0x40] sm:$0xe]
        %v4039 = vld [vmem:[%s3461 + $0x50] sm:$0xe]
        %v4040 = vld [vmem:[%s3461 + $0x60] sm:$0xe]
        %v4041 = vld [vmem:[%s3461 + $0x70] sm:$0xe]
        %v4066 = vrot.slane %v4034, 5
        %v4067 = vrot.slane %v4066, 4
        %v4068 = vrot.slane %v3657, 5
        %v4069 = vsel %vm2419, %v4067, %v4068
        %v4070 = vrot.slane %v4068, 4
        %v4071 = vrot.slane %v3658, 5
        %v4072 = vsel %vm2419, %v4070, %v4071
        %v4073 = vrot.slane %v4035, 5
        %v4074 = vrot.slane %v4073, 4
        %v4075 = vrot.slane %v3660, 5
        %v4076 = vsel %vm2419, %v4074, %v4075
        %v4077 = vrot.slane %v4075, 4
        %v4078 = vrot.slane %v3661, 5
        %v4079 = vsel %vm2419, %v4077, %v4078
        %v4080 = vrot.slane %v4036, 5
        %v4081 = vrot.slane %v4080, 4
        %v4082 = vrot.slane %v3663, 5
        %v4083 = vsel %vm2419, %v4081, %v4082
        %v4084 = vrot.slane %v4082, 4
        %v4085 = vrot.slane %v3664, 5
        %v4086 = vsel %vm2419, %v4084, %v4085
        %v4087 = vrot.slane %v4037, 5
        %v4088 = vrot.slane %v4087, 4
        %v4089 = vrot.slane %v3666, 5
        %v4090 = vsel %vm2419, %v4088, %v4089
        %v4091 = vrot.slane %v4089, 4
        %v4092 = vrot.slane %v3667, 5
        %v4093 = vsel %vm2419, %v4091, %v4092
        %v4094 = vrot.slane %v4038, 5
        %v4095 = vrot.slane %v4094, 4
        %v4096 = vrot.slane %v3669, 5
        %v4097 = vsel %vm2419, %v4095, %v4096
        %v4098 = vrot.slane %v4096, 4
        %v4099 = vrot.slane %v3670, 5
        %v4100 = vsel %vm2419, %v4098, %v4099
        %v4101 = vrot.slane %v4039, 5
        %v4102 = vrot.slane %v4101, 4
        %v4103 = vrot.slane %v3672, 5
        %v4104 = vsel %vm2419, %v4102, %v4103
        %v4105 = vrot.slane %v4103, 4
        %v4106 = vrot.slane %v3673, 5
        %v4107 = vsel %vm2419, %v4105, %v4106
        %v4108 = vrot.slane %v4040, 5
        %v4109 = vrot.slane %v4108, 4
        %v4110 = vrot.slane %v3675, 5
        %v4111 = vsel %vm2419, %v4109, %v4110
        %v4112 = vrot.slane %v4110, 4
        %v4113 = vrot.slane %v3676, 5
        %v4114 = vsel %vm2419, %v4112, %v4113
        %v4115 = vrot.slane %v4041, 5
        %v4116 = vrot.slane %v4115, 4
        %v4117 = vrot.slane %v3678, 5
        %v4118 = vsel %vm2419, %v4116, %v4117
        %v4119 = vrot.slane %v4117, 4
        %v4120 = vrot.slane %v3679, 5
        %v4121 = vsel %vm2419, %v4119, %v4120
        %s4122 = scalar_lea.vmem [#allocation9], 512
        %v4123 = vld [vmem:[%s4122] sm:$0xf]
        %v4124 = vld [vmem:[%s4122 + $0x4] sm:$0xf]
        %v4125 = vld [vmem:[%s4122 + $0x8] sm:$0xf]
        %v4126 = vld [vmem:[%s4122 + $0xc] sm:$0xf]
        %v4127 = vld [vmem:[%s4122 + $0x10] sm:$0xf]
        %v4128 = vld [vmem:[%s4122 + $0x14] sm:$0xf]
        %v4129 = vld [vmem:[%s4122 + $0x18] sm:$0xf]
        %v4130 = vld [vmem:[%s4122 + $0x1c] sm:$0xf]
        %v4131 = vld [vmem:[%s4122 + $0x20] sm:$0xf]
        %v4132 = vld [vmem:[%s4122 + $0x24] sm:$0xf]
        %v4133 = vld [vmem:[%s4122 + $0x28] sm:$0xf]
        %v4134 = vld [vmem:[%s4122 + $0x2c] sm:$0xf]
        %v4135 = vld [vmem:[%s4122 + $0x30] sm:$0xf]
        %v4136 = vld [vmem:[%s4122 + $0x34] sm:$0xf]
        %v4137 = vld [vmem:[%s4122 + $0x38] sm:$0xf]
        %v4138 = vld [vmem:[%s4122 + $0x3c] sm:$0xf]
        %v4139 = vunpack.c.l.b16 %v4069
        %v4140 = vunpack.c.l.b16 %v4072
        %v4141 = vunpack.c.l.b16 %v4076
        %v4142 = vunpack.c.l.b16 %v4079
        %v4143 = vunpack.c.l.b16 %v4083
        %v4144 = vunpack.c.l.b16 %v4086
        %v4145 = vunpack.c.l.b16 %v4090
        %v4146 = vunpack.c.l.b16 %v4093
        %v4147 = vunpack.c.l.b16 %v4097
        %v4148 = vunpack.c.l.b16 %v4100
        %v4149 = vunpack.c.l.b16 %v4104
        %v4150 = vunpack.c.l.b16 %v4107
        %v4151 = vunpack.c.l.b16 %v4111
        %v4152 = vunpack.c.l.b16 %v4114
        %v4153 = vunpack.c.l.b16 %v4118
        %v4154 = vunpack.c.l.b16 %v4121
        %v4155 = vpack.c.b16 %v4140, %v4139
        %v4156 = vpack.c.b16 %v4142, %v4141
        %v4157 = vpack.c.b16 %v4144, %v4143
        %v4158 = vpack.c.b16 %v4146, %v4145
        %v4159 = vpack.c.b16 %v4148, %v4147
        %v4160 = vpack.c.b16 %v4150, %v4149
        %v4161 = vpack.c.b16 %v4152, %v4151
        %v4162 = vpack.c.b16 %v4154, %v4153
        %v4187 = vunpack.c.l.b16 %v4123
        %v4188 = vunpack.c.l.b16 %v4124
        %v4189 = vunpack.c.l.b16 %v4125
        %v4190 = vunpack.c.l.b16 %v4126
        %v4191 = vunpack.c.l.b16 %v4127
        %v4192 = vunpack.c.l.b16 %v4128
        %v4193 = vunpack.c.l.b16 %v4129
        %v4194 = vunpack.c.l.b16 %v4130
        %v4195 = vunpack.c.l.b16 %v4131
        %v4196 = vunpack.c.l.b16 %v4132
        %v4197 = vunpack.c.l.b16 %v4133
        %v4198 = vunpack.c.l.b16 %v4134
        %v4199 = vunpack.c.l.b16 %v4135
        %v4200 = vunpack.c.l.b16 %v4136
        %v4201 = vunpack.c.l.b16 %v4137
        %v4202 = vunpack.c.l.b16 %v4138
        %v4203 = vpack.c.b16 %v4188, %v4187
        %v4204 = vpack.c.b16 %v4190, %v4189
        %v4205 = vpack.c.b16 %v4192, %v4191
        %v4206 = vpack.c.b16 %v4194, %v4193
        %v4207 = vpack.c.b16 %v4196, %v4195
        %v4208 = vpack.c.b16 %v4198, %v4197
        %v4209 = vpack.c.b16 %v4200, %v4199
        %v4210 = vpack.c.b16 %v4202, %v4201
        %4219 = vmatpush.bf16.msra.mxu0 %v4210
        %4220 = vmatpush.bf16.msra.mxu0 %v4209
        %4221 = vmatpush.bf16.msra.mxu0 %v4208
        %4222 = vmatpush.bf16.msra.mxu0 %v4207
        %4223 = vmatpush.bf16.msra.mxu0 %v4206
        %4224 = vmatpush.bf16.msra.mxu0 %v4205
        %4225 = vmatpush.bf16.msra.mxu0 %v4204
        %4226 = vmatpush.bf16.msra.mxu0 %v4203
        %4227 = vmatmul.bf16.gmra.mxu0 %v4155
        %v4228 = vpop.f32.mrf.mxu0
        %v4229 = vadd.f32 0.0, %v4228
        %v4230 = vpop.f32.mrf.mxu0
        %v4231 = vadd.f32 0.0, %v4230
        %4232 = vmatmul.bf16.gmra.mxu0 %v4156
        %v4233 = vpop.f32.mrf.mxu0
        %v4234 = vadd.f32 0.0, %v4233
        %v4235 = vpop.f32.mrf.mxu0
        %v4236 = vadd.f32 0.0, %v4235
        %4237 = vmatmul.bf16.gmra.mxu0 %v4157
        %v4238 = vpop.f32.mrf.mxu0
        %v4239 = vadd.f32 0.0, %v4238
        %v4240 = vpop.f32.mrf.mxu0
        %v4241 = vadd.f32 0.0, %v4240
        %4242 = vmatmul.bf16.gmra.mxu0 %v4158
        %v4243 = vpop.f32.mrf.mxu0
        %v4244 = vadd.f32 0.0, %v4243
        %v4245 = vpop.f32.mrf.mxu0
        %v4246 = vadd.f32 0.0, %v4245
        %4247 = vmatmul.bf16.gmra.mxu0 %v4159
        %v4248 = vpop.f32.mrf.mxu0
        %v4249 = vadd.f32 0.0, %v4248
        %v4250 = vpop.f32.mrf.mxu0
        %v4251 = vadd.f32 0.0, %v4250
        %4252 = vmatmul.bf16.gmra.mxu0 %v4160
        %v4253 = vpop.f32.mrf.mxu0
        %v4254 = vadd.f32 0.0, %v4253
        %v4255 = vpop.f32.mrf.mxu0
        %v4256 = vadd.f32 0.0, %v4255
        %4257 = vmatmul.bf16.gmra.mxu0 %v4161
        %v4258 = vpop.f32.mrf.mxu0
        %v4259 = vadd.f32 0.0, %v4258
        %v4260 = vpop.f32.mrf.mxu0
        %v4261 = vadd.f32 0.0, %v4260
        %4262 = vmatmul.bf16.gmra.mxu0 %v4162
        %v4263 = vpop.f32.mrf.mxu0
        %v4264 = vadd.f32 0.0, %v4263
        %v4265 = vpop.f32.mrf.mxu0
        %v4266 = vadd.f32 0.0, %v4265
        %4267 = vdwg.mxu0
        %v4268 = vadd.f32 %v4018, %v4229
        %v4269 = vadd.f32 %v4019, %v4231
        %v4270 = vadd.f32 %v4020, %v4234
        %v4271 = vadd.f32 %v4021, %v4236
        %v4272 = vadd.f32 %v4022, %v4239
        %v4273 = vadd.f32 %v4023, %v4241
        %v4274 = vadd.f32 %v4024, %v4244
        %v4275 = vadd.f32 %v4025, %v4246
        %v4276 = vadd.f32 %v4026, %v4249
        %v4277 = vadd.f32 %v4027, %v4251
        %v4278 = vadd.f32 %v4028, %v4254
        %v4279 = vadd.f32 %v4029, %v4256
        %v4280 = vadd.f32 %v4030, %v4259
        %v4281 = vadd.f32 %v4031, %v4261
        %v4282 = vadd.f32 %v4032, %v4264
        %v4283 = vadd.f32 %v4033, %v4266
        %v4284 = vld [vmem:[%s5] sm:$0x1]
        %v4286 = vperm.slane %v4284, 0
        %v4288 = vadd.f32 %v4268, %v4286
        %v4289 = vadd.f32 %v4269, %v4286
        %v4290 = vadd.f32 %v4270, %v4286
        %v4291 = vadd.f32 %v4271, %v4286
        %v4292 = vadd.f32 %v4272, %v4286
        %v4293 = vadd.f32 %v4273, %v4286
        %v4294 = vadd.f32 %v4274, %v4286
        %v4295 = vadd.f32 %v4275, %v4286
        %v4296 = vadd.f32 %v4276, %v4286
        %v4297 = vadd.f32 %v4277, %v4286
        %v4298 = vadd.f32 %v4278, %v4286
        %v4299 = vadd.f32 %v4279, %v4286
        %v4300 = vadd.f32 %v4280, %v4286
        %v4301 = vadd.f32 %v4281, %v4286
        %v4302 = vadd.f32 %v4282, %v4286
        %v4303 = vadd.f32 %v4283, %v4286
        %v4304 = vxor.u32 %v4288, 2147483648
        %v4305 = vxor.u32 %v4289, 2147483648
        %v4306 = vxor.u32 %v4290, 2147483648
        %v4307 = vxor.u32 %v4291, 2147483648
        %v4308 = vxor.u32 %v4292, 2147483648
        %v4309 = vxor.u32 %v4293, 2147483648
        %v4310 = vxor.u32 %v4294, 2147483648
        %v4311 = vxor.u32 %v4295, 2147483648
        %v4312 = vxor.u32 %v4296, 2147483648
        %v4313 = vxor.u32 %v4297, 2147483648
        %v4314 = vxor.u32 %v4298, 2147483648
        %v4315 = vxor.u32 %v4299, 2147483648
        %v4316 = vxor.u32 %v4300, 2147483648
        %v4317 = vxor.u32 %v4301, 2147483648
        %v4318 = vxor.u32 %v4302, 2147483648
        %v4319 = vxor.u32 %v4303, 2147483648
        %v4320 = vmul.f32 %v4304, 1.442695
        %v4321 = vpow.pop %v4320
        %v4322 = vmul.f32 %v4305, 1.442695
        %v4323 = vpow.pop %v4322
        %v4324 = vmul.f32 %v4306, 1.442695
        %v4325 = vpow.pop %v4324
        %v4326 = vmul.f32 %v4307, 1.442695
        %v4327 = vpow.pop %v4326
        %v4328 = vmul.f32 %v4308, 1.442695
        %v4329 = vpow.pop %v4328
        %v4330 = vmul.f32 %v4309, 1.442695
        %v4331 = vpow.pop %v4330
        %v4332 = vmul.f32 %v4310, 1.442695
        %v4333 = vpow.pop %v4332
        %v4334 = vmul.f32 %v4311, 1.442695
        %v4335 = vpow.pop %v4334
        %v4336 = vmul.f32 %v4312, 1.442695
        %v4337 = vpow.pop %v4336
        %v4338 = vmul.f32 %v4313, 1.442695
        %v4339 = vpow.pop %v4338
        %v4340 = vmul.f32 %v4314, 1.442695
        %v4341 = vpow.pop %v4340
        %v4342 = vmul.f32 %v4315, 1.442695
        %v4343 = vpow.pop %v4342
        %v4344 = vmul.f32 %v4316, 1.442695
        %v4345 = vpow.pop %v4344
        %v4346 = vmul.f32 %v4317, 1.442695
        %v4347 = vpow.pop %v4346
        %v4348 = vmul.f32 %v4318, 1.442695
        %v4349 = vpow.pop %v4348
        %v4350 = vmul.f32 %v4319, 1.442695
        %v4351 = vpow.pop %v4350
        %v4352 = vadd.f32 %v4321, 1.0
        %v4353 = vadd.f32 %v4323, 1.0
        %v4354 = vadd.f32 %v4325, 1.0
        %v4355 = vadd.f32 %v4327, 1.0
        %v4356 = vadd.f32 %v4329, 1.0
        %v4357 = vadd.f32 %v4331, 1.0
        %v4358 = vadd.f32 %v4333, 1.0
        %v4359 = vadd.f32 %v4335, 1.0
        %v4360 = vadd.f32 %v4337, 1.0
        %v4361 = vadd.f32 %v4339, 1.0
        %v4362 = vadd.f32 %v4341, 1.0
        %v4363 = vadd.f32 %v4343, 1.0
        %v4364 = vadd.f32 %v4345, 1.0
        %v4365 = vadd.f32 %v4347, 1.0
        %v4366 = vadd.f32 %v4349, 1.0
        %v4367 = vadd.f32 %v4351, 1.0
        %v4368 = vrcp.pop %v4352
        %v4369 = vmul.f32 %v4352, %v4368
        %v4370 = vsub.f32 1.0, %v4369
        %v4371 = vmul.f32 %v4368, %v4370
        %v4372 = vadd.f32 %v4368, %v4371
        %vm4373 = vweird.f32 %v4352
        %vm4374 = vweird.f32 %v4368
        %vm4375 = vmor %vm4373, %vm4374
        %v4376 = vsel %vm4375, %v4368, %v4372
        %v4377 = vand.u32 2147483647, %v4352
        %vm4378 = vcmp.eq.f32.partialorder %v4377, 8.507059e+37
        %v4379 = vand.u32 %v4352, 2147483648
        %v4380 = vor.u32 1.1754944e-38, %v4379
        %v4381 = vsel %vm4378, %v4380, %v4376
        %v4382 = vmul.f32 1.0, %v4381
        %v4383 = vrcp.pop %v4353
        %v4384 = vmul.f32 %v4353, %v4383
        %v4385 = vsub.f32 1.0, %v4384
        %v4386 = vmul.f32 %v4383, %v4385
        %v4387 = vadd.f32 %v4383, %v4386
        %vm4388 = vweird.f32 %v4353
        %vm4389 = vweird.f32 %v4383
        %vm4390 = vmor %vm4388, %vm4389
        %v4391 = vsel %vm4390, %v4383, %v4387
        %v4392 = vand.u32 2147483647, %v4353
        %vm4393 = vcmp.eq.f32.partialorder %v4392, 8.507059e+37
        %v4394 = vand.u32 %v4353, 2147483648
        %v4395 = vor.u32 1.1754944e-38, %v4394
        %v4396 = vsel %vm4393, %v4395, %v4391
        %v4397 = vmul.f32 1.0, %v4396
        %v4398 = vrcp.pop %v4354
        %v4399 = vmul.f32 %v4354, %v4398
        %v4400 = vsub.f32 1.0, %v4399
        %v4401 = vmul.f32 %v4398, %v4400
        %v4402 = vadd.f32 %v4398, %v4401
        %vm4403 = vweird.f32 %v4354
        %vm4404 = vweird.f32 %v4398
        %vm4405 = vmor %vm4403, %vm4404
        %v4406 = vsel %vm4405, %v4398, %v4402
        %v4407 = vand.u32 2147483647, %v4354
        %vm4408 = vcmp.eq.f32.partialorder %v4407, 8.507059e+37
        %v4409 = vand.u32 %v4354, 2147483648
        %v4410 = vor.u32 1.1754944e-38, %v4409
        %v4411 = vsel %vm4408, %v4410, %v4406
        %v4412 = vmul.f32 1.0, %v4411
        %v4413 = vrcp.pop %v4355
        %v4414 = vmul.f32 %v4355, %v4413
        %v4415 = vsub.f32 1.0, %v4414
        %v4416 = vmul.f32 %v4413, %v4415
        %v4417 = vadd.f32 %v4413, %v4416
        %vm4418 = vweird.f32 %v4355
        %vm4419 = vweird.f32 %v4413
        %vm4420 = vmor %vm4418, %vm4419
        %v4421 = vsel %vm4420, %v4413, %v4417
        %v4422 = vand.u32 2147483647, %v4355
        %vm4423 = vcmp.eq.f32.partialorder %v4422, 8.507059e+37
        %v4424 = vand.u32 %v4355, 2147483648
        %v4425 = vor.u32 1.1754944e-38, %v4424
        %v4426 = vsel %vm4423, %v4425, %v4421
        %v4427 = vmul.f32 1.0, %v4426
        %v4428 = vrcp.pop %v4356
        %v4429 = vmul.f32 %v4356, %v4428
        %v4430 = vsub.f32 1.0, %v4429
        %v4431 = vmul.f32 %v4428, %v4430
        %v4432 = vadd.f32 %v4428, %v4431
        %vm4433 = vweird.f32 %v4356
        %vm4434 = vweird.f32 %v4428
        %vm4435 = vmor %vm4433, %vm4434
        %v4436 = vsel %vm4435, %v4428, %v4432
        %v4437 = vand.u32 2147483647, %v4356
        %vm4438 = vcmp.eq.f32.partialorder %v4437, 8.507059e+37
        %v4439 = vand.u32 %v4356, 2147483648
        %v4440 = vor.u32 1.1754944e-38, %v4439
        %v4441 = vsel %vm4438, %v4440, %v4436
        %v4442 = vmul.f32 1.0, %v4441
        %v4443 = vrcp.pop %v4357
        %v4444 = vmul.f32 %v4357, %v4443
        %v4445 = vsub.f32 1.0, %v4444
        %v4446 = vmul.f32 %v4443, %v4445
        %v4447 = vadd.f32 %v4443, %v4446
        %vm4448 = vweird.f32 %v4357
        %vm4449 = vweird.f32 %v4443
        %vm4450 = vmor %vm4448, %vm4449
        %v4451 = vsel %vm4450, %v4443, %v4447
        %v4452 = vand.u32 2147483647, %v4357
        %vm4453 = vcmp.eq.f32.partialorder %v4452, 8.507059e+37
        %v4454 = vand.u32 %v4357, 2147483648
        %v4455 = vor.u32 1.1754944e-38, %v4454
        %v4456 = vsel %vm4453, %v4455, %v4451
        %v4457 = vmul.f32 1.0, %v4456
        %v4458 = vrcp.pop %v4358
        %v4459 = vmul.f32 %v4358, %v4458
        %v4460 = vsub.f32 1.0, %v4459
        %v4461 = vmul.f32 %v4458, %v4460
        %v4462 = vadd.f32 %v4458, %v4461
        %vm4463 = vweird.f32 %v4358
        %vm4464 = vweird.f32 %v4458
        %vm4465 = vmor %vm4463, %vm4464
        %v4466 = vsel %vm4465, %v4458, %v4462
        %v4467 = vand.u32 2147483647, %v4358
        %vm4468 = vcmp.eq.f32.partialorder %v4467, 8.507059e+37
        %v4469 = vand.u32 %v4358, 2147483648
        %v4470 = vor.u32 1.1754944e-38, %v4469
        %v4471 = vsel %vm4468, %v4470, %v4466
        %v4472 = vmul.f32 1.0, %v4471
        %v4473 = vrcp.pop %v4359
        %v4474 = vmul.f32 %v4359, %v4473
        %v4475 = vsub.f32 1.0, %v4474
        %v4476 = vmul.f32 %v4473, %v4475
        %v4477 = vadd.f32 %v4473, %v4476
        %vm4478 = vweird.f32 %v4359
        %vm4479 = vweird.f32 %v4473
        %vm4480 = vmor %vm4478, %vm4479
        %v4481 = vsel %vm4480, %v4473, %v4477
        %v4482 = vand.u32 2147483647, %v4359
        %vm4483 = vcmp.eq.f32.partialorder %v4482, 8.507059e+37
        %v4484 = vand.u32 %v4359, 2147483648
        %v4485 = vor.u32 1.1754944e-38, %v4484
        %v4486 = vsel %vm4483, %v4485, %v4481
        %v4487 = vmul.f32 1.0, %v4486
        %v4488 = vrcp.pop %v4360
        %v4489 = vmul.f32 %v4360, %v4488
        %v4490 = vsub.f32 1.0, %v4489
        %v4491 = vmul.f32 %v4488, %v4490
        %v4492 = vadd.f32 %v4488, %v4491
        %vm4493 = vweird.f32 %v4360
        %vm4494 = vweird.f32 %v4488
        %vm4495 = vmor %vm4493, %vm4494
        %v4496 = vsel %vm4495, %v4488, %v4492
        %v4497 = vand.u32 2147483647, %v4360
        %vm4498 = vcmp.eq.f32.partialorder %v4497, 8.507059e+37
        %v4499 = vand.u32 %v4360, 2147483648
        %v4500 = vor.u32 1.1754944e-38, %v4499
        %v4501 = vsel %vm4498, %v4500, %v4496
        %v4502 = vmul.f32 1.0, %v4501
        %v4503 = vrcp.pop %v4361
        %v4504 = vmul.f32 %v4361, %v4503
        %v4505 = vsub.f32 1.0, %v4504
        %v4506 = vmul.f32 %v4503, %v4505
        %v4507 = vadd.f32 %v4503, %v4506
        %vm4508 = vweird.f32 %v4361
        %vm4509 = vweird.f32 %v4503
        %vm4510 = vmor %vm4508, %vm4509
        %v4511 = vsel %vm4510, %v4503, %v4507
        %v4512 = vand.u32 2147483647, %v4361
        %vm4513 = vcmp.eq.f32.partialorder %v4512, 8.507059e+37
        %v4514 = vand.u32 %v4361, 2147483648
        %v4515 = vor.u32 1.1754944e-38, %v4514
        %v4516 = vsel %vm4513, %v4515, %v4511
        %v4517 = vmul.f32 1.0, %v4516
        %v4518 = vrcp.pop %v4362
        %v4519 = vmul.f32 %v4362, %v4518
        %v4520 = vsub.f32 1.0, %v4519
        %v4521 = vmul.f32 %v4518, %v4520
        %v4522 = vadd.f32 %v4518, %v4521
        %vm4523 = vweird.f32 %v4362
        %vm4524 = vweird.f32 %v4518
        %vm4525 = vmor %vm4523, %vm4524
        %v4526 = vsel %vm4525, %v4518, %v4522
        %v4527 = vand.u32 2147483647, %v4362
        %vm4528 = vcmp.eq.f32.partialorder %v4527, 8.507059e+37
        %v4529 = vand.u32 %v4362, 2147483648
        %v4530 = vor.u32 1.1754944e-38, %v4529
        %v4531 = vsel %vm4528, %v4530, %v4526
        %v4532 = vmul.f32 1.0, %v4531
        %v4533 = vrcp.pop %v4363
        %v4534 = vmul.f32 %v4363, %v4533
        %v4535 = vsub.f32 1.0, %v4534
        %v4536 = vmul.f32 %v4533, %v4535
        %v4537 = vadd.f32 %v4533, %v4536
        %vm4538 = vweird.f32 %v4363
        %vm4539 = vweird.f32 %v4533
        %vm4540 = vmor %vm4538, %vm4539
        %v4541 = vsel %vm4540, %v4533, %v4537
        %v4542 = vand.u32 2147483647, %v4363
        %vm4543 = vcmp.eq.f32.partialorder %v4542, 8.507059e+37
        %v4544 = vand.u32 %v4363, 2147483648
        %v4545 = vor.u32 1.1754944e-38, %v4544
        %v4546 = vsel %vm4543, %v4545, %v4541
        %v4547 = vmul.f32 1.0, %v4546
        %v4548 = vrcp.pop %v4364
        %v4549 = vmul.f32 %v4364, %v4548
        %v4550 = vsub.f32 1.0, %v4549
        %v4551 = vmul.f32 %v4548, %v4550
        %v4552 = vadd.f32 %v4548, %v4551
        %vm4553 = vweird.f32 %v4364
        %vm4554 = vweird.f32 %v4548
        %vm4555 = vmor %vm4553, %vm4554
        %v4556 = vsel %vm4555, %v4548, %v4552
        %v4557 = vand.u32 2147483647, %v4364
        %vm4558 = vcmp.eq.f32.partialorder %v4557, 8.507059e+37
        %v4559 = vand.u32 %v4364, 2147483648
        %v4560 = vor.u32 1.1754944e-38, %v4559
        %v4561 = vsel %vm4558, %v4560, %v4556
        %v4562 = vmul.f32 1.0, %v4561
        %v4563 = vrcp.pop %v4365
        %v4564 = vmul.f32 %v4365, %v4563
        %v4565 = vsub.f32 1.0, %v4564
        %v4566 = vmul.f32 %v4563, %v4565
        %v4567 = vadd.f32 %v4563, %v4566
        %vm4568 = vweird.f32 %v4365
        %vm4569 = vweird.f32 %v4563
        %vm4570 = vmor %vm4568, %vm4569
        %v4571 = vsel %vm4570, %v4563, %v4567
        %v4572 = vand.u32 2147483647, %v4365
        %vm4573 = vcmp.eq.f32.partialorder %v4572, 8.507059e+37
        %v4574 = vand.u32 %v4365, 2147483648
        %v4575 = vor.u32 1.1754944e-38, %v4574
        %v4576 = vsel %vm4573, %v4575, %v4571
        %v4577 = vmul.f32 1.0, %v4576
        %v4578 = vrcp.pop %v4366
        %v4579 = vmul.f32 %v4366, %v4578
        %v4580 = vsub.f32 1.0, %v4579
        %v4581 = vmul.f32 %v4578, %v4580
        %v4582 = vadd.f32 %v4578, %v4581
        %vm4583 = vweird.f32 %v4366
        %vm4584 = vweird.f32 %v4578
        %vm4585 = vmor %vm4583, %vm4584
        %v4586 = vsel %vm4585, %v4578, %v4582
        %v4587 = vand.u32 2147483647, %v4366
        %vm4588 = vcmp.eq.f32.partialorder %v4587, 8.507059e+37
        %v4589 = vand.u32 %v4366, 2147483648
        %v4590 = vor.u32 1.1754944e-38, %v4589
        %v4591 = vsel %vm4588, %v4590, %v4586
        %v4592 = vmul.f32 1.0, %v4591
        %v4593 = vrcp.pop %v4367
        %v4594 = vmul.f32 %v4367, %v4593
        %v4595 = vsub.f32 1.0, %v4594
        %v4596 = vmul.f32 %v4593, %v4595
        %v4597 = vadd.f32 %v4593, %v4596
        %vm4598 = vweird.f32 %v4367
        %vm4599 = vweird.f32 %v4593
        %vm4600 = vmor %vm4598, %vm4599
        %v4601 = vsel %vm4600, %v4593, %v4597
        %v4602 = vand.u32 2147483647, %v4367
        %vm4603 = vcmp.eq.f32.partialorder %v4602, 8.507059e+37
        %v4604 = vand.u32 %v4367, 2147483648
        %v4605 = vor.u32 1.1754944e-38, %v4604
        %v4606 = vsel %vm4603, %v4605, %v4601
        %v4607 = vmul.f32 1.0, %v4606
        %v4608 = vmul.f32 %v4288, %v4382
        %v4609 = vmul.f32 %v4289, %v4397
        %v4610 = vmul.f32 %v4290, %v4412
        %v4611 = vmul.f32 %v4291, %v4427
        %v4612 = vmul.f32 %v4292, %v4442
        %v4613 = vmul.f32 %v4293, %v4457
        %v4614 = vmul.f32 %v4294, %v4472
        %v4615 = vmul.f32 %v4295, %v4487
        %v4616 = vmul.f32 %v4296, %v4502
        %v4617 = vmul.f32 %v4297, %v4517
        %v4618 = vmul.f32 %v4298, %v4532
        %v4619 = vmul.f32 %v4299, %v4547
        %v4620 = vmul.f32 %v4300, %v4562
        %v4621 = vmul.f32 %v4301, %v4577
        %v4622 = vmul.f32 %v4302, %v4592
        %v4623 = vmul.f32 %v4303, %v4607
        %s4624 = scalar_lea.vmem %s331, 16 [#allocation3]
        %v4625 = vld [vmem:[%s4624] sm:$0xf]
        %v4626 = vld [vmem:[%s4624 + $0x4] sm:$0xf]
        %v4627 = vld [vmem:[%s4624 + $0x8] sm:$0x1]
        %v4628 = vld [vmem:[%s4624 + $0x10] sm:$0xf]
        %v4629 = vld [vmem:[%s4624 + $0x14] sm:$0xf]
        %v4630 = vld [vmem:[%s4624 + $0x18] sm:$0x1]
        %v4631 = vld [vmem:[%s4624 + $0x20] sm:$0xf]
        %v4632 = vld [vmem:[%s4624 + $0x24] sm:$0xf]
        %v4633 = vld [vmem:[%s4624 + $0x28] sm:$0x1]
        %v4634 = vld [vmem:[%s4624 + $0x30] sm:$0xf]
        %v4635 = vld [vmem:[%s4624 + $0x34] sm:$0xf]
        %v4636 = vld [vmem:[%s4624 + $0x38] sm:$0x1]
        %v4637 = vld [vmem:[%s4624 + $0x40] sm:$0xf]
        %v4638 = vld [vmem:[%s4624 + $0x44] sm:$0xf]
        %v4639 = vld [vmem:[%s4624 + $0x48] sm:$0x1]
        %v4640 = vld [vmem:[%s4624 + $0x50] sm:$0xf]
        %v4641 = vld [vmem:[%s4624 + $0x54] sm:$0xf]
        %v4642 = vld [vmem:[%s4624 + $0x58] sm:$0x1]
        %v4643 = vld [vmem:[%s4624 + $0x60] sm:$0xf]
        %v4644 = vld [vmem:[%s4624 + $0x64] sm:$0xf]
        %v4645 = vld [vmem:[%s4624 + $0x68] sm:$0x1]
        %v4646 = vld [vmem:[%s341] sm:$0xf]
        %v4647 = vld [vmem:[%s341 + $0x4] sm:$0xf]
        %v4648 = vld [vmem:[%s341 + $0x8] sm:$0x1]
        %v4650 = vshrl.u32 %v4625, 16
        %v4652 = vrot.slane %v4650, 4
        %v4653 = vshll.u32 %v4625, 16
        %v4655 = vrot.slane %v4653, 5
        %v4656 = vor.u32 %v4652, %v4655
        %v4657 = vrot.slane %v4656, 4
        %v4659 = vshll.u32 %v4626, 16
        %v4661 = vrot.slane %v4659, 5
        %v4662 = vsel %vm1909, %v4657, %v4661
        %v4663 = vshrl.u32 %v4626, 16
        %v4665 = vrot.slane %v4663, 4
        %v4666 = vor.u32 %v4665, %v4661
        %v4667 = vrot.slane %v4666, 4
        %v4669 = vshll.u32 %v4627, 16
        %v4671 = vrot.slane %v4669, 5
        %v4672 = vsel %vm1909, %v4667, %v4671
        %v4674 = vshrl.u32 %v4628, 16
        %v4676 = vrot.slane %v4674, 4
        %v4677 = vshll.u32 %v4628, 16
        %v4679 = vrot.slane %v4677, 5
        %v4680 = vor.u32 %v4676, %v4679
        %v4681 = vrot.slane %v4680, 4
        %v4683 = vshll.u32 %v4629, 16
        %v4685 = vrot.slane %v4683, 5
        %v4686 = vsel %vm1909, %v4681, %v4685
        %v4687 = vshrl.u32 %v4629, 16
        %v4689 = vrot.slane %v4687, 4
        %v4690 = vor.u32 %v4689, %v4685
        %v4691 = vrot.slane %v4690, 4
        %v4693 = vshll.u32 %v4630, 16
        %v4695 = vrot.slane %v4693, 5
        %v4696 = vsel %vm1909, %v4691, %v4695
        %v4698 = vshrl.u32 %v4631, 16
        %v4700 = vrot.slane %v4698, 4
        %v4701 = vshll.u32 %v4631, 16
        %v4703 = vrot.slane %v4701, 5
        %v4704 = vor.u32 %v4700, %v4703
        %v4705 = vrot.slane %v4704, 4
        %v4707 = vshll.u32 %v4632, 16
        %v4709 = vrot.slane %v4707, 5
        %v4710 = vsel %vm1909, %v4705, %v4709
        %v4711 = vshrl.u32 %v4632, 16
        %v4713 = vrot.slane %v4711, 4
        %v4714 = vor.u32 %v4713, %v4709
        %v4715 = vrot.slane %v4714, 4
        %v4717 = vshll.u32 %v4633, 16
        %v4719 = vrot.slane %v4717, 5
        %v4720 = vsel %vm1909, %v4715, %v4719
        %v4722 = vshrl.u32 %v4634, 16
        %v4724 = vrot.slane %v4722, 4
        %v4725 = vshll.u32 %v4634, 16
        %v4727 = vrot.slane %v4725, 5
        %v4728 = vor.u32 %v4724, %v4727
        %v4729 = vrot.slane %v4728, 4
        %v4731 = vshll.u32 %v4635, 16
        %v4733 = vrot.slane %v4731, 5
        %v4734 = vsel %vm1909, %v4729, %v4733
        %v4735 = vshrl.u32 %v4635, 16
        %v4737 = vrot.slane %v4735, 4
        %v4738 = vor.u32 %v4737, %v4733
        %v4739 = vrot.slane %v4738, 4
        %v4741 = vshll.u32 %v4636, 16
        %v4743 = vrot.slane %v4741, 5
        %v4744 = vsel %vm1909, %v4739, %v4743
        %v4746 = vshrl.u32 %v4637, 16
        %v4748 = vrot.slane %v4746, 4
        %v4749 = vshll.u32 %v4637, 16
        %v4751 = vrot.slane %v4749, 5
        %v4752 = vor.u32 %v4748, %v4751
        %v4753 = vrot.slane %v4752, 4
        %v4755 = vshll.u32 %v4638, 16
        %v4757 = vrot.slane %v4755, 5
        %v4758 = vsel %vm1909, %v4753, %v4757
        %v4759 = vshrl.u32 %v4638, 16
        %v4761 = vrot.slane %v4759, 4
        %v4762 = vor.u32 %v4761, %v4757
        %v4763 = vrot.slane %v4762, 4
        %v4765 = vshll.u32 %v4639, 16
        %v4767 = vrot.slane %v4765, 5
        %v4768 = vsel %vm1909, %v4763, %v4767
        %v4770 = vshrl.u32 %v4640, 16
        %v4772 = vrot.slane %v4770, 4
        %v4773 = vshll.u32 %v4640, 16
        %v4775 = vrot.slane %v4773, 5
        %v4776 = vor.u32 %v4772, %v4775
        %v4777 = vrot.slane %v4776, 4
        %v4779 = vshll.u32 %v4641, 16
        %v4781 = vrot.slane %v4779, 5
        %v4782 = vsel %vm1909, %v4777, %v4781
        %v4783 = vshrl.u32 %v4641, 16
        %v4785 = vrot.slane %v4783, 4
        %v4786 = vor.u32 %v4785, %v4781
        %v4787 = vrot.slane %v4786, 4
        %v4789 = vshll.u32 %v4642, 16
        %v4791 = vrot.slane %v4789, 5
        %v4792 = vsel %vm1909, %v4787, %v4791
        %v4794 = vshrl.u32 %v4643, 16
        %v4796 = vrot.slane %v4794, 4
        %v4797 = vshll.u32 %v4643, 16
        %v4799 = vrot.slane %v4797, 5
        %v4800 = vor.u32 %v4796, %v4799
        %v4801 = vrot.slane %v4800, 4
        %v4803 = vshll.u32 %v4644, 16
        %v4805 = vrot.slane %v4803, 5
        %v4806 = vsel %vm1909, %v4801, %v4805
        %v4807 = vshrl.u32 %v4644, 16
        %v4809 = vrot.slane %v4807, 4
        %v4810 = vor.u32 %v4809, %v4805
        %v4811 = vrot.slane %v4810, 4
        %v4813 = vshll.u32 %v4645, 16
        %v4815 = vrot.slane %v4813, 5
        %v4816 = vsel %vm1909, %v4811, %v4815
        %v4818 = vshrl.u32 %v4646, 16
        %v4820 = vrot.slane %v4818, 4
        %v4821 = vshll.u32 %v4646, 16
        %v4823 = vrot.slane %v4821, 5
        %v4824 = vor.u32 %v4820, %v4823
        %v4825 = vrot.slane %v4824, 4
        %v4827 = vshll.u32 %v4647, 16
        %v4829 = vrot.slane %v4827, 5
        %v4830 = vsel %vm1909, %v4825, %v4829
        %v4831 = vshrl.u32 %v4647, 16
        %v4833 = vrot.slane %v4831, 4
        %v4834 = vor.u32 %v4833, %v4829
        %v4835 = vrot.slane %v4834, 4
        %v4837 = vshll.u32 %v4648, 16
        %v4839 = vrot.slane %v4837, 5
        %v4840 = vsel %vm1909, %v4835, %v4839
        %v4857 = vunpack.c.l.bf16 %v4662
        %v4858 = vunpack.c.l.bf16 %v4672
        %v4859 = vunpack.c.l.bf16 %v4686
        %v4860 = vunpack.c.l.bf16 %v4696
        %v4861 = vunpack.c.l.bf16 %v4710
        %v4862 = vunpack.c.l.bf16 %v4720
        %v4863 = vunpack.c.l.bf16 %v4734
        %v4864 = vunpack.c.l.bf16 %v4744
        %v4865 = vunpack.c.l.bf16 %v4758
        %v4866 = vunpack.c.l.bf16 %v4768
        %v4867 = vunpack.c.l.bf16 %v4782
        %v4868 = vunpack.c.l.bf16 %v4792
        %v4869 = vunpack.c.l.bf16 %v4806
        %v4870 = vunpack.c.l.bf16 %v4816
        %v4871 = vunpack.c.l.bf16 %v4830
        %v4872 = vunpack.c.l.bf16 %v4840
        %v4873 = vadd.f32 %v4608, %v4857
        %v4874 = vadd.f32 %v4609, %v4858
        %v4875 = vadd.f32 %v4610, %v4859
        %v4876 = vadd.f32 %v4611, %v4860
        %v4877 = vadd.f32 %v4612, %v4861
        %v4878 = vadd.f32 %v4613, %v4862
        %v4879 = vadd.f32 %v4614, %v4863
        %v4880 = vadd.f32 %v4615, %v4864
        %v4881 = vadd.f32 %v4616, %v4865
        %v4882 = vadd.f32 %v4617, %v4866
        %v4883 = vadd.f32 %v4618, %v4867
        %v4884 = vadd.f32 %v4619, %v4868
        %v4885 = vadd.f32 %v4620, %v4869
        %v4886 = vadd.f32 %v4621, %v4870
        %v4887 = vadd.f32 %v4622, %v4871
        %v4888 = vadd.f32 %v4623, %v4872
        %v4889 = vpack.c.bf16 %v4873, %v4873
        %v4890 = vpack.c.bf16 %v4874, %v4874
        %v4891 = vpack.c.bf16 %v4875, %v4875
        %v4892 = vpack.c.bf16 %v4876, %v4876
        %v4893 = vpack.c.bf16 %v4877, %v4877
        %v4894 = vpack.c.bf16 %v4878, %v4878
        %v4895 = vpack.c.bf16 %v4879, %v4879
        %v4896 = vpack.c.bf16 %v4880, %v4880
        %v4897 = vpack.c.bf16 %v4881, %v4881
        %v4898 = vpack.c.bf16 %v4882, %v4882
        %v4899 = vpack.c.bf16 %v4883, %v4883
        %v4900 = vpack.c.bf16 %v4884, %v4884
        %v4901 = vpack.c.bf16 %v4885, %v4885
        %v4902 = vpack.c.bf16 %v4886, %v4886
        %v4903 = vpack.c.bf16 %v4887, %v4887
        %v4904 = vpack.c.bf16 %v4888, %v4888
        %4905 = vst [vmem:[%s385] sm:$0xf] %v4889
        %4906 = vst [vmem:[%s385 + $0x4] sm:$0xf] %v4890
        %4907 = vst [vmem:[%s385 + $0x8] sm:$0xf] %v4891
        %4908 = vst [vmem:[%s385 + $0xc] sm:$0xf] %v4892
        %4909 = vst [vmem:[%s385 + $0x10] sm:$0xf] %v4893
        %4910 = vst [vmem:[%s385 + $0x14] sm:$0xf] %v4894
        %4911 = vst [vmem:[%s385 + $0x18] sm:$0xf] %v4895
        %4912 = vst [vmem:[%s385 + $0x1c] sm:$0xf] %v4896
        %4913 = vst [vmem:[%s385 + $0x20] sm:$0xf] %v4897
        %4914 = vst [vmem:[%s385 + $0x24] sm:$0xf] %v4898
        %4915 = vst [vmem:[%s385 + $0x28] sm:$0xf] %v4899
        %4916 = vst [vmem:[%s385 + $0x2c] sm:$0xf] %v4900
        %4917 = vst [vmem:[%s385 + $0x30] sm:$0xf] %v4901
        %4918 = vst [vmem:[%s385 + $0x34] sm:$0xf] %v4902
        %4919 = vst [vmem:[%s385 + $0x38] sm:$0xf] %v4903
        %4920 = vst [vmem:[%s385 + $0x3c] sm:$0xf] %v4904
        %s4921 = sand.u32 %s193, 1
        %s4922 = scalar_lea.sflag [#allocation5], %s4921
        %s4923 = sand.u32 %s193, 1
        %s4924 = smul.addr %s4923, 64
        %s4925 = scalar_lea.vmem [#allocation11], %s4924
        // Predicated region
        $region61: #{tpu_custom_call.1} parent=43 // pred_check
          %p4926 = pneg %p203
        $region62: #{tpu_custom_call.1} parent=43 // pred_check_branch
          %4928 = sbr.rel (%p4926) target = $region64
        $region63: #{tpu_custom_call.1} parent=43 // pred_region
          %s4929 = smul.u32 16, %s32
          %4931 = vsyncadd %s4922, 0
          %s4932 = smul.addr %s31, 32
          %s4933 = sadd.s32 %s4929, %s4932
          %s4934 = smul.addr %s4933, 4
          %s4935 = scalar_lea.hbm %s6, %s4934
          %s4936 = sshll.u32 %s4925, 4
          %s4937 = int_to_ptr.vmem [resolvable:$true] %s4936
          %s4938 = sshll.u32 %s4935, 4
          %s4939 = int_to_ptr.hbm [resolvable:$true] %s4938
          %4944 = dma.vmem_to_hbm [thread:$0]  %s4937, 1024, %s4939, %s4922, 64, 64, 4
        $region64: #{tpu_custom_call.1} parent=43 // pred_fallthru
          _
      $region44: #{tpu_custom_call.1} parent=5 // pred_fallthru
        _
      %p4945 = scmp.le.s32.totalorder 2, %s22
      // Predicated region
      $region65: #{tpu_custom_call.1} parent=5 // pred_check
        %p4946 = pneg %p4945
      $region66: #{tpu_custom_call.1} parent=5 // pred_check_branch
        %4948 = sbr.rel (%p4946) target = $region68
      $region67: #{tpu_custom_call.1} parent=5 // pred_region
        %s4949 = ssub.s32 %s22, 2
        // Predicated region
        $region69: #{tpu_custom_call.1} parent=67 // pred_check
          %p4950 = pneg %p209
        $region70: #{tpu_custom_call.1} parent=67 // pred_check_branch
          %4952 = sbr.rel (%p4950) target = $region72
        $region71: #{tpu_custom_call.1} parent=67 // pred_region
          %s4953 = sand.u32 %s194, 1
          %s4954 = scalar_lea.sflag [#allocation5], %s4953
          %s4955 = sand.u32 %s194, 1
          %s4956 = smul.addr %s4955, 64
          %s4957 = scalar_lea.vmem [#allocation11], %s4956
          %4959 = dma.done %s4954, 1024
        $region72: #{tpu_custom_call.1} parent=67 // pred_fallthru
          _
      $region68: #{tpu_custom_call.1} parent=5 // pred_fallthru
        _
    $region6: #{tpu_custom_call.1} parent=1 // loop_footer
      %s26 = sadd.s32 1, %s22
    $region7: #{tpu_custom_call.1} parent=1 // loop_footer_branch
      %21 = sbr.rel target = $region3
    $region8: #{tpu_custom_call.1} parent=1 // loop_exit
      _
    %4960 = vsyncpa [#allocation4], 1
    %s4961 = scalar_lea.sflag [#allocation4], 1
    %4962 = vsyncpa %s4961, 1
    %4963 = vsyncpa [#allocation7], 1
    %s4964 = scalar_lea.sflag [#allocation7], 1
    %4965 = vsyncpa %s4964, 1
    %4966 = vsyncpa [#allocation10], 1
    %4967 = vsyncpa [#allocation5], 1
    %s4968 = scalar_lea.sflag [#allocation5], 1
    %4969 = vsyncpa %s4968, 1

</llo_original>
